<compile_context>
chip_gen: v7x
topology: tpu7x:2x2x1
jax: 0.10.0
libtpu: 0.0.40
codegen_flags: <defaults>
</compile_context>

<pallas_src>
import jax
import jax.numpy as jnp
from jax.experimental import pallas as pl
from jax.experimental.pallas import tpu as pltpu


BTILE = 8  # images per grid step -> slab of BTILE*32 = 256 sublane rows


# ----------------------------- fused kernel --------------------------------
#
# Activation layout inside the kernel: rows = (image, h), lanes = (channel, w).
#   input slab : (256, 32)        conv1 out : (254, 180)   pool1 : (253, 90)
#   conv2 out  : (249, 208)       pool2     : (247, 96)
#   fc acts    : (BTILE, 120/84/128)
# Pooled rows are kept "lazily compacted": pool1 row p of image b lives at
# slab row b*32 + 2p, pool2 row q at b*32 + 4q.  Rows that fall outside the
# valid region hold finite junk (never -inf/NaN) and are either never read or
# multiplied by 0 in the selection matmuls.

def _lenet_kernel(x_ref, v1_ref, cb1_ref, ph1_ref, v2_ref, cb2_ref, ph2_ref,
                  sel_ref, fw1_ref, fb1_ref, fw2_ref, fb2_ref, fw3_ref,
                  fb3_ref, o_ref):
    f32 = jnp.float32
    mm = lambda a, b: jnp.dot(a, b, preferred_element_type=f32)

    x = x_ref[...]                                     # (N, 32): rows=(b,h), lanes=w
    n = x.shape[0]                                     # N = BTILE*32 (static)

    # ---- conv1 (1->6, 3x3, valid) as ONE matmul: K = 3*32 = 96 ----
    lhs1 = jnp.concatenate([x[0:n - 2], x[1:n - 1], x[2:n]], axis=1)   # (N-2, 96)
    y1 = jnp.maximum(mm(lhs1, v1_ref[...]) + cb1_ref[...], 0.0)        # (N-2, 180)

    # ---- 2x2 max-pool / stride 2 ----
    # Sublane half: max of adjacent rows (pooled row p stays at slab row 2p).
    a1 = jnp.maximum(y1[0:n - 3], y1[1:n - 2])                         # (N-3, 180)
    # Lane half: max of adjacent lanes.  NOTE: lane o*30+29 mixes channel o
    # (w=29) with channel o+1 (w=0); this is safe ONLY because PH1 never
    # selects lanes with w odd / w==29.  Keep in mind if PH1 changes.
    u1 = jnp.maximum(a1[:, 0:179], a1[:, 1:180])                       # (N-3, 179)
    h1 = mm(u1, ph1_ref[...])                                          # (N-3, 90)

    # ---- conv2 (6->16, 3x3, valid) as ONE matmul: K = 3*90 = 270 ----
    # pool1 rows p, p+1, p+2 live at slab offsets 0, 2, 4 (lazy compaction).
    m = n - 7
    lhs2 = jnp.concatenate([h1[0:m], h1[2:m + 2], h1[4:m + 4]], axis=1)  # (N-7, 270)
    y2 = jnp.maximum(mm(lhs2, v2_ref[...]) + cb2_ref[...], 0.0)          # (N-7, 208)

    # ---- 2x2 max-pool / stride 2 (floor) ----
    a2 = jnp.maximum(y2[0:n - 9], y2[2:n - 7])                         # (N-9, 208)
    u2 = jnp.maximum(a2[:, 0:207], a2[:, 1:208])                       # (N-9, 207)
    h2 = mm(u2, ph2_ref[...])                                          # (N-9, 96)
    # pool2[b, c, q, s] now sits at h2[b*32 + 4q, c*6 + s].

    # ---- flatten + fc1 (576 -> 120) as ONE matmul ----
    # Gather the 6 pooled rows of every image with tiny 0/1 selection matmuls
    # and lane-concatenate into the (BTILE, 576) flat-feature layout.
    feats = jnp.concatenate([mm(sel_ref[q], h2) for q in range(6)], axis=1)
    z = jnp.maximum(mm(feats, fw1_ref[...]) + fb1_ref[...], 0.0)       # (Bt, 120)

    # ---- fc2 (120 -> 84) + ReLU, fc3 (84 -> 10, lane-padded to 128) ----
    z = jnp.maximum(mm(z, fw2_ref[...]) + fb2_ref[...], 0.0)           # (Bt, 84)
    o_ref[...] = mm(z, fw3_ref[...]) + fb3_ref[...]                    # (Bt, 128)


# ------------------------ parameter pre-packing -----------------------------

def _conv_tap_matrix(w, win, wout):
    """Pack conv weight (OC, IC, K, K) into ONE tap matrix of shape
    (K*IC*win, OC*wout) with
        V[i*IC*win + c*win + u, o*wout + v] = w[o, c, i, u - v]  (0 <= u-v < K).
    The kernel's LHS lane index is (row-tap i, in-channel c, input col u)."""
    OC, IC, K, _ = w.shape
    rows = jnp.arange(K * IC * win)
    cols = jnp.arange(OC * wout)
    i_r = rows // (IC * win)
    c_r = (rows // win) % IC
    u_r = rows % win
    o_c = cols // wout
    v_c = cols % wout
    j = u_r[:, None] - v_c[None, :]
    valid = (j >= 0) & (j < K)
    jc = jnp.clip(j, 0, K - 1)
    vals = w[o_c[None, :], c_r[:, None], i_r[:, None], jc]
    return jnp.where(valid, vals, 0.0).astype(jnp.float32)


def _lane_pool_matrix(C, S):
    """0/1 matrix implementing the stride-2 lane downsample of a 2x2 max-pool
    in (c, w) lane layout: shape (C*S - 1, C*(S//2))."""
    P = S // 2
    r = jnp.arange(C * S - 1)
    c = jnp.arange(C * P)
    m = ((r[:, None] // S == c[None, :] // P) &
         (r[:, None] % S == 2 * (c[None, :] % P)))
    return m.astype(jnp.float32)


def _row_select_matrices(btile):
    """SEL[q, b, r] = 1 iff r == b*32 + 4q : gathers pooled row q of every
    image from the lazily-compacted (btile*32 - 9)-row slab."""
    n = btile * 32
    b = jnp.arange(btile)
    r = jnp.arange(n - 9)
    mats = [(r[None, :] == (b[:, None] * 32 + 4 * q)).astype(jnp.float32)
            for q in range(6)]
    return jnp.stack(mats, axis=0)                    # (6, btile, n-9)


def prepare_params(p):
    """One-time repack of PyTorch-layout params into kernel-ready constants."""
    kp = {}
    kp["v1"] = _conv_tap_matrix(p["conv1_w"], 32, 30)            # (96, 180)
    kp["cb1"] = jnp.repeat(p["conv1_b"], 30)[None, :]            # (1, 180)
    kp["ph1"] = _lane_pool_matrix(6, 30)                         # (179, 90)
    kp["v2"] = _conv_tap_matrix(p["conv2_w"], 15, 13)            # (270, 208)
    kp["cb2"] = jnp.repeat(p["conv2_b"], 13)[None, :]            # (1, 208)
    kp["ph2"] = _lane_pool_matrix(16, 13)                        # (207, 96)
    kp["sel"] = _row_select_matrices(BTILE)                      # (6, Bt, Bt*32-9)
    # fc1: fold the NCHW (c, h, w) flatten into the packing:
    # fw1[q*96 + c*6 + s, n] = fc1_w[n, c*36 + q*6 + s]
    kp["fw1"] = (p["fc1_w"].reshape(120, 16, 6, 6)
                 .transpose(2, 1, 3, 0).reshape(576, 120).astype(jnp.float32))
    kp["fb1"] = p["fc1_b"][None, :]
    kp["fw2"] = p["fc2_w"].T                                     # (120, 84)
    kp["fb2"] = p["fc2_b"][None, :]
    # fc3: lane-pad to 128 so the output store is lane-dense.
    kp["fw3"] = jnp.pad(p["fc3_w"].T, ((0, 0), (0, 118)))        # (84, 128)
    kp["fb3"] = jnp.pad(p["fc3_b"], (0, 118))[None, :]           # (1, 128)
    return kp


# -------------------------------- forward -----------------------------------

@jax.jit
def lenet_forward(kp, x):
    """x: (B, 1, 32, 32) f32 NCHW -> logits (B, 10)."""
    B = x.shape[0]
    assert x.shape[1:] == (1, 32, 32)
    Bp = -(-B // BTILE) * BTILE                       # pad batch to BTILE multiple
    xr = x.reshape(B, 32, 32).astype(jnp.float32)
    if Bp != B:
        xr = jnp.concatenate(
            [xr, jnp.zeros((Bp - B, 32, 32), jnp.float32)], axis=0)
    x2 = xr.reshape(Bp * 32, 32)                      # free reshape, no transpose

    n = BTILE * 32
    c2d = lambda i: (0, 0)
    c3d = lambda i: (0, 0, 0)
    out = pl.pallas_call(
        _lenet_kernel,
        out_shape=jax.ShapeDtypeStruct((Bp, 128), jnp.float32),
        grid=(Bp // BTILE,),
        in_specs=[
            pl.BlockSpec((n, 32), lambda i: (i, 0)),          # input slab
            pl.BlockSpec((96, 180), c2d),                     # conv1 taps (fused)
            pl.BlockSpec((1, 180), c2d),                      # conv1 bias
            pl.BlockSpec((179, 90), c2d),                     # pool1 lane select
            pl.BlockSpec((270, 208), c2d),                    # conv2 taps (fused)
            pl.BlockSpec((1, 208), c2d),                      # conv2 bias
            pl.BlockSpec((207, 96), c2d),                     # pool2 lane select
            pl.BlockSpec((6, BTILE, n - 9), c3d),             # fc1 row gathers
            pl.BlockSpec((576, 120), c2d),                    # fc1 weight
            pl.BlockSpec((1, 120), c2d),                      # fc1 bias
            pl.BlockSpec((120, 84), c2d),                     # fc2 weight
            pl.BlockSpec((1, 84), c2d),                       # fc2 bias
            pl.BlockSpec((84, 128), c2d),                     # fc3 weight (padded)
            pl.BlockSpec((1, 128), c2d),                      # fc3 bias (padded)
        ],
        out_specs=pl.BlockSpec((BTILE, 128), lambda i: (i, 0)),
        compiler_params=pltpu.CompilerParams(
            dimension_semantics=("parallel",),
            vmem_limit_bytes=32 * 1024 * 1024),
    )(x2, kp["v1"], kp["cb1"], kp["ph1"], kp["v2"], kp["cb2"], kp["ph2"],
      kp["sel"], kp["fw1"], kp["fb1"], kp["fw2"], kp["fb2"], kp["fw3"],
      kp["fb3"])
    return out[:B, :10]


# ------------------------------- parameters ---------------------------------

def init_params(key):
    """Deterministic init mimicking PyTorch's default U(-1/sqrt(fan_in), ...)."""
    def uniform(k, shape, fan_in):
        bound = 1.0 / jnp.sqrt(jnp.asarray(fan_in, jnp.float32))
        return jax.random.uniform(k, shape, jnp.float32, -bound, bound)

    ks = jax.random.split(key, 10)
    return {
        "conv1_w": uniform(ks[0], (6, 1, 3, 3), 1 * 3 * 3),
        "conv1_b": uniform(ks[1], (6,), 1 * 3 * 3),
        "conv2_w": uniform(ks[2], (16, 6, 3, 3), 6 * 3 * 3),
        "conv2_b": uniform(ks[3], (16,), 6 * 3 * 3),
        "fc1_w": uniform(ks[4], (120, 16 * 6 * 6), 16 * 6 * 6),
        "fc1_b": uniform(ks[5], (120,), 16 * 6 * 6),
        "fc2_w": uniform(ks[6], (84, 120), 120),
        "fc2_b": uniform(ks[7], (84,), 120),
        "fc3_w": uniform(ks[8], (10, 84), 84),
        "fc3_b": uniform(ks[9], (10,), 84),
    }


def lenet_reference(p, x):
    """Pure-JAX reference for a correctness sanity check."""
    def conv(x, w, b):
        y = jax.lax.conv_general_dilated(
            x, w, (1, 1), "VALID",
            dimension_numbers=("NCHW", "OIHW", "NCHW"))
        return jax.nn.relu(y + b.reshape(1, -1, 1, 1))

    def pool(x):
        return jax.lax.reduce_window(
            x, -jnp.inf, jax.lax.max, (1, 1, 2, 2), (1, 1, 2, 2), "VALID")

    x = pool(conv(x, p["conv1_w"], p["conv1_b"]))
    x = pool(conv(x, p["conv2_w"], p["conv2_b"]))
    x = x.reshape(x.shape[0], -1)
    x = jax.nn.relu(x @ p["fc1_w"].T + p["fc1_b"])
    x = jax.nn.relu(x @ p["fc2_w"].T + p["fc2_b"])
    return x @ p["fc3_w"].T + p["fc3_b"]


# ---------------------------------- main -------------------------------------

if __name__ == "__main__":
    key = jax.random.PRNGKey(0)
    k_params, k_x = jax.random.split(key)

    params = init_params(k_params)
    kparams = prepare_params(params)           # one-time weight repack

    # LeNet as written requires 32x32 inputs (conv->pool->conv->pool -> 16*6*6).
    # B = 16 -> two grid steps of BTILE=8 images each.
    x = jax.random.normal(k_x, (16, 1, 32, 32), jnp.float32)

    out = jax.block_until_ready(lenet_forward(kparams, x))
    assert out.shape == (16, 10) and out.dtype == jnp.float32

    ref = jax.block_until_ready(lenet_reference(params, x))
    assert jnp.allclose(out, ref, rtol=1e-2, atol=1e-2)

    print("KERNEL_OK")
</pallas_src>

<mosaic_0001>
module attributes {stable_mosaic.version = 11 : i64} {
  func.func @_lenet_kernel(%arg0: i32, %arg1: memref<256x32xf32, #tpu.memory_space<vmem>>, %arg2: memref<96x180xf32, #tpu.memory_space<vmem>>, %arg3: memref<1x180xf32, #tpu.memory_space<vmem>>, %arg4: memref<179x90xf32, #tpu.memory_space<vmem>>, %arg5: memref<270x208xf32, #tpu.memory_space<vmem>>, %arg6: memref<1x208xf32, #tpu.memory_space<vmem>>, %arg7: memref<207x96xf32, #tpu.memory_space<vmem>>, %arg8: memref<6x8x247xf32, #tpu.memory_space<vmem>>, %arg9: memref<576x120xf32, #tpu.memory_space<vmem>>, %arg10: memref<1x120xf32, #tpu.memory_space<vmem>>, %arg11: memref<120x84xf32, #tpu.memory_space<vmem>>, %arg12: memref<1x84xf32, #tpu.memory_space<vmem>>, %arg13: memref<84x128xf32, #tpu.memory_space<vmem>>, %arg14: memref<1x128xf32, #tpu.memory_space<vmem>>, %arg15: memref<8x128xf32, #tpu.memory_space<vmem>>) attributes {dimension_semantics = [#tpu.dimension_semantics<parallel>], iteration_bounds = array<i64: 2>, scalar_prefetch = 0 : i64, scratch_operands = 0 : i64, tpu.core_type = #tpu.core_type<tc>, window_params = [{transform_indices = @transform_0, window_bounds = array<i64: 256, 32>}, {pipeline_mode = #tpu.pipeline_mode<synchronous>, transform_indices = @transform_1, window_bounds = array<i64: 96, 180>}, {pipeline_mode = #tpu.pipeline_mode<synchronous>, transform_indices = @transform_2, window_bounds = array<i64: 1, 180>}, {pipeline_mode = #tpu.pipeline_mode<synchronous>, transform_indices = @transform_3, window_bounds = array<i64: 179, 90>}, {pipeline_mode = #tpu.pipeline_mode<synchronous>, transform_indices = @transform_4, window_bounds = array<i64: 270, 208>}, {pipeline_mode = #tpu.pipeline_mode<synchronous>, transform_indices = @transform_5, window_bounds = array<i64: 1, 208>}, {pipeline_mode = #tpu.pipeline_mode<synchronous>, transform_indices = @transform_6, window_bounds = array<i64: 207, 96>}, {pipeline_mode = #tpu.pipeline_mode<synchronous>, transform_indices = @transform_7, window_bounds = array<i64: 6, 8, 247>}, {pipeline_mode = #tpu.pipeline_mode<synchronous>, transform_indices = @transform_8, window_bounds = array<i64: 576, 120>}, {pipeline_mode = #tpu.pipeline_mode<synchronous>, transform_indices = @transform_9, window_bounds = array<i64: 1, 120>}, {pipeline_mode = #tpu.pipeline_mode<synchronous>, transform_indices = @transform_10, window_bounds = array<i64: 120, 84>}, {pipeline_mode = #tpu.pipeline_mode<synchronous>, transform_indices = @transform_11, window_bounds = array<i64: 1, 84>}, {pipeline_mode = #tpu.pipeline_mode<synchronous>, transform_indices = @transform_12, window_bounds = array<i64: 84, 128>}, {pipeline_mode = #tpu.pipeline_mode<synchronous>, transform_indices = @transform_13, window_bounds = array<i64: 1, 128>}, {transform_indices = @transform_14, window_bounds = array<i64: 8, 128>}]} {
    %c0 = arith.constant 0 : index
    %c0_0 = arith.constant 0 : index
    %0 = vector.load %arg1[%c0, %c0_0] : memref<256x32xf32, #tpu.memory_space<vmem>>, vector<256x32xf32>
    %1 = vector.extract_strided_slice %0 {offsets = [0, 0], sizes = [254, 32], strides = [1, 1]} : vector<256x32xf32> to vector<254x32xf32>
    %2 = vector.extract_strided_slice %0 {offsets = [1, 0], sizes = [254, 32], strides = [1, 1]} : vector<256x32xf32> to vector<254x32xf32>
    %3 = vector.extract_strided_slice %0 {offsets = [2, 0], sizes = [254, 32], strides = [1, 1]} : vector<256x32xf32> to vector<254x32xf32>
    %4 = tpu.concatenate %1, %2, %3 in 1 : vector<254x32xf32>, vector<254x32xf32>, vector<254x32xf32> -> vector<254x96xf32>
    %c0_1 = arith.constant 0 : index
    %c0_2 = arith.constant 0 : index
    %5 = vector.load %arg2[%c0_1, %c0_2] : memref<96x180xf32, #tpu.memory_space<vmem>>, vector<96x180xf32>
    %cst = arith.constant dense<0.000000e+00> : vector<254x180xf32>
    %6 = tpu.matmul %4, %5, %cst {dimension_numbers = #tpu.dot_dimension_numbers<[1], [0], [0], [1], [0, 0, 1, 1], [], []>} : vector<254x96xf32>, vector<96x180xf32>, vector<254x180xf32> -> vector<254x180xf32>
    %c0_3 = arith.constant 0 : index
    %c0_4 = arith.constant 0 : index
    %7 = vector.load %arg3[%c0_3, %c0_4] : memref<1x180xf32, #tpu.memory_space<vmem>>, vector<1x180xf32>
    %8 = vector.broadcast %7 : vector<1x180xf32> to vector<254x180xf32>
    %9 = arith.addf %6, %8 : vector<254x180xf32>
    %cst_5 = arith.constant 0.000000e+00 : f32
    %10 = vector.broadcast %cst_5 : f32 to vector<254x180xf32>
    %11 = arith.maximumf %9, %10 : vector<254x180xf32>
    %12 = vector.extract_strided_slice %11 {offsets = [0, 0], sizes = [253, 180], strides = [1, 1]} : vector<254x180xf32> to vector<253x180xf32>
    %13 = vector.extract_strided_slice %11 {offsets = [1, 0], sizes = [253, 180], strides = [1, 1]} : vector<254x180xf32> to vector<253x180xf32>
    %14 = arith.maximumf %12, %13 : vector<253x180xf32>
    %15 = vector.extract_strided_slice %14 {offsets = [0, 0], sizes = [253, 179], strides = [1, 1]} : vector<253x180xf32> to vector<253x179xf32>
    %16 = vector.extract_strided_slice %14 {offsets = [0, 1], sizes = [253, 179], strides = [1, 1]} : vector<253x180xf32> to vector<253x179xf32>
    %17 = arith.maximumf %15, %16 : vector<253x179xf32>
    %c0_6 = arith.constant 0 : index
    %c0_7 = arith.constant 0 : index
    %18 = vector.load %arg4[%c0_6, %c0_7] : memref<179x90xf32, #tpu.memory_space<vmem>>, vector<179x90xf32>
    %cst_8 = arith.constant dense<0.000000e+00> : vector<253x90xf32>
    %19 = tpu.matmul %17, %18, %cst_8 {dimension_numbers = #tpu.dot_dimension_numbers<[1], [0], [0], [1], [0, 0, 1, 1], [], []>} : vector<253x179xf32>, vector<179x90xf32>, vector<253x90xf32> -> vector<253x90xf32>
    %20 = vector.extract_strided_slice %19 {offsets = [0, 0], sizes = [249, 90], strides = [1, 1]} : vector<253x90xf32> to vector<249x90xf32>
    %21 = vector.extract_strided_slice %19 {offsets = [2, 0], sizes = [249, 90], strides = [1, 1]} : vector<253x90xf32> to vector<249x90xf32>
    %22 = vector.extract_strided_slice %19 {offsets = [4, 0], sizes = [249, 90], strides = [1, 1]} : vector<253x90xf32> to vector<249x90xf32>
    %23 = tpu.concatenate %20, %21, %22 in 1 : vector<249x90xf32>, vector<249x90xf32>, vector<249x90xf32> -> vector<249x270xf32>
    %c0_9 = arith.constant 0 : index
    %c0_10 = arith.constant 0 : index
    %24 = vector.load %arg5[%c0_9, %c0_10] : memref<270x208xf32, #tpu.memory_space<vmem>>, vector<270x208xf32>
    %cst_11 = arith.constant dense<0.000000e+00> : vector<249x208xf32>
    %25 = tpu.matmul %23, %24, %cst_11 {dimension_numbers = #tpu.dot_dimension_numbers<[1], [0], [0], [1], [0, 0, 1, 1], [], []>} : vector<249x270xf32>, vector<270x208xf32>, vector<249x208xf32> -> vector<249x208xf32>
    %c0_12 = arith.constant 0 : index
    %c0_13 = arith.constant 0 : index
    %26 = vector.load %arg6[%c0_12, %c0_13] : memref<1x208xf32, #tpu.memory_space<vmem>>, vector<1x208xf32>
    %27 = vector.broadcast %26 : vector<1x208xf32> to vector<249x208xf32>
    %28 = arith.addf %25, %27 : vector<249x208xf32>
    %cst_14 = arith.constant 0.000000e+00 : f32
    %29 = vector.broadcast %cst_14 : f32 to vector<249x208xf32>
    %30 = arith.maximumf %28, %29 : vector<249x208xf32>
    %31 = vector.extract_strided_slice %30 {offsets = [0, 0], sizes = [247, 208], strides = [1, 1]} : vector<249x208xf32> to vector<247x208xf32>
    %32 = vector.extract_strided_slice %30 {offsets = [2, 0], sizes = [247, 208], strides = [1, 1]} : vector<249x208xf32> to vector<247x208xf32>
    %33 = arith.maximumf %31, %32 : vector<247x208xf32>
    %34 = vector.extract_strided_slice %33 {offsets = [0, 0], sizes = [247, 207], strides = [1, 1]} : vector<247x208xf32> to vector<247x207xf32>
    %35 = vector.extract_strided_slice %33 {offsets = [0, 1], sizes = [247, 207], strides = [1, 1]} : vector<247x208xf32> to vector<247x207xf32>
    %36 = arith.maximumf %34, %35 : vector<247x207xf32>
    %c0_15 = arith.constant 0 : index
    %c0_16 = arith.constant 0 : index
    %37 = vector.load %arg7[%c0_15, %c0_16] : memref<207x96xf32, #tpu.memory_space<vmem>>, vector<207x96xf32>
    %cst_17 = arith.constant dense<0.000000e+00> : vector<247x96xf32>
    %38 = tpu.matmul %36, %37, %cst_17 {dimension_numbers = #tpu.dot_dimension_numbers<[1], [0], [0], [1], [0, 0, 1, 1], [], []>} : vector<247x207xf32>, vector<207x96xf32>, vector<247x96xf32> -> vector<247x96xf32>
    %c0_18 = arith.constant 0 : index
    %c0_19 = arith.constant 0 : index
    %c0_20 = arith.constant 0 : index
    %39 = vector.load %arg8[%c0_18, %c0_19, %c0_20] : memref<6x8x247xf32, #tpu.memory_space<vmem>>, vector<1x8x247xf32>
    %40 = vector.shape_cast %39 : vector<1x8x247xf32> to vector<8x247xf32>
    %cst_21 = arith.constant dense<0.000000e+00> : vector<8x96xf32>
    %41 = tpu.matmul %40, %38, %cst_21 {dimension_numbers = #tpu.dot_dimension_numbers<[1], [0], [0], [1], [0, 0, 1, 1], [], []>} : vector<8x247xf32>, vector<247x96xf32>, vector<8x96xf32> -> vector<8x96xf32>
    %c1 = arith.constant 1 : index
    %c0_22 = arith.constant 0 : index
    %c0_23 = arith.constant 0 : index
    %42 = vector.load %arg8[%c1, %c0_22, %c0_23] : memref<6x8x247xf32, #tpu.memory_space<vmem>>, vector<1x8x247xf32>
    %43 = vector.shape_cast %42 : vector<1x8x247xf32> to vector<8x247xf32>
    %cst_24 = arith.constant dense<0.000000e+00> : vector<8x96xf32>
    %44 = tpu.matmul %43, %38, %cst_24 {dimension_numbers = #tpu.dot_dimension_numbers<[1], [0], [0], [1], [0, 0, 1, 1], [], []>} : vector<8x247xf32>, vector<247x96xf32>, vector<8x96xf32> -> vector<8x96xf32>
    %c2 = arith.constant 2 : index
    %c0_25 = arith.constant 0 : index
    %c0_26 = arith.constant 0 : index
    %45 = vector.load %arg8[%c2, %c0_25, %c0_26] : memref<6x8x247xf32, #tpu.memory_space<vmem>>, vector<1x8x247xf32>
    %46 = vector.shape_cast %45 : vector<1x8x247xf32> to vector<8x247xf32>
    %cst_27 = arith.constant dense<0.000000e+00> : vector<8x96xf32>
    %47 = tpu.matmul %46, %38, %cst_27 {dimension_numbers = #tpu.dot_dimension_numbers<[1], [0], [0], [1], [0, 0, 1, 1], [], []>} : vector<8x247xf32>, vector<247x96xf32>, vector<8x96xf32> -> vector<8x96xf32>
    %c3 = arith.constant 3 : index
    %c0_28 = arith.constant 0 : index
    %c0_29 = arith.constant 0 : index
    %48 = vector.load %arg8[%c3, %c0_28, %c0_29] : memref<6x8x247xf32, #tpu.memory_space<vmem>>, vector<1x8x247xf32>
    %49 = vector.shape_cast %48 : vector<1x8x247xf32> to vector<8x247xf32>
    %cst_30 = arith.constant dense<0.000000e+00> : vector<8x96xf32>
    %50 = tpu.matmul %49, %38, %cst_30 {dimension_numbers = #tpu.dot_dimension_numbers<[1], [0], [0], [1], [0, 0, 1, 1], [], []>} : vector<8x247xf32>, vector<247x96xf32>, vector<8x96xf32> -> vector<8x96xf32>
    %c4 = arith.constant 4 : index
    %c0_31 = arith.constant 0 : index
    %c0_32 = arith.constant 0 : index
    %51 = vector.load %arg8[%c4, %c0_31, %c0_32] : memref<6x8x247xf32, #tpu.memory_space<vmem>>, vector<1x8x247xf32>
    %52 = vector.shape_cast %51 : vector<1x8x247xf32> to vector<8x247xf32>
    %cst_33 = arith.constant dense<0.000000e+00> : vector<8x96xf32>
    %53 = tpu.matmul %52, %38, %cst_33 {dimension_numbers = #tpu.dot_dimension_numbers<[1], [0], [0], [1], [0, 0, 1, 1], [], []>} : vector<8x247xf32>, vector<247x96xf32>, vector<8x96xf32> -> vector<8x96xf32>
    %c5 = arith.constant 5 : index
    %c0_34 = arith.constant 0 : index
    %c0_35 = arith.constant 0 : index
    %54 = vector.load %arg8[%c5, %c0_34, %c0_35] : memref<6x8x247xf32, #tpu.memory_space<vmem>>, vector<1x8x247xf32>
    %55 = vector.shape_cast %54 : vector<1x8x247xf32> to vector<8x247xf32>
    %cst_36 = arith.constant dense<0.000000e+00> : vector<8x96xf32>
    %56 = tpu.matmul %55, %38, %cst_36 {dimension_numbers = #tpu.dot_dimension_numbers<[1], [0], [0], [1], [0, 0, 1, 1], [], []>} : vector<8x247xf32>, vector<247x96xf32>, vector<8x96xf32> -> vector<8x96xf32>
    %57 = tpu.concatenate %41, %44, %47, %50, %53, %56 in 1 : vector<8x96xf32>, vector<8x96xf32>, vector<8x96xf32>, vector<8x96xf32>, vector<8x96xf32>, vector<8x96xf32> -> vector<8x576xf32>
    %c0_37 = arith.constant 0 : index
    %c0_38 = arith.constant 0 : index
    %58 = vector.load %arg9[%c0_37, %c0_38] : memref<576x120xf32, #tpu.memory_space<vmem>>, vector<576x120xf32>
    %cst_39 = arith.constant dense<0.000000e+00> : vector<8x120xf32>
    %59 = tpu.matmul %57, %58, %cst_39 {dimension_numbers = #tpu.dot_dimension_numbers<[1], [0], [0], [1], [0, 0, 1, 1], [], []>} : vector<8x576xf32>, vector<576x120xf32>, vector<8x120xf32> -> vector<8x120xf32>
    %c0_40 = arith.constant 0 : index
    %c0_41 = arith.constant 0 : index
    %60 = vector.load %arg10[%c0_40, %c0_41] : memref<1x120xf32, #tpu.memory_space<vmem>>, vector<1x120xf32>
    %61 = vector.broadcast %60 : vector<1x120xf32> to vector<8x120xf32>
    %62 = arith.addf %59, %61 : vector<8x120xf32>
    %cst_42 = arith.constant 0.000000e+00 : f32
    %63 = vector.broadcast %cst_42 : f32 to vector<8x120xf32>
    %64 = arith.maximumf %62, %63 : vector<8x120xf32>
    %c0_43 = arith.constant 0 : index
    %c0_44 = arith.constant 0 : index
    %65 = vector.load %arg11[%c0_43, %c0_44] : memref<120x84xf32, #tpu.memory_space<vmem>>, vector<120x84xf32>
    %cst_45 = arith.constant dense<0.000000e+00> : vector<8x84xf32>
    %66 = tpu.matmul %64, %65, %cst_45 {dimension_numbers = #tpu.dot_dimension_numbers<[1], [0], [0], [1], [0, 0, 1, 1], [], []>} : vector<8x120xf32>, vector<120x84xf32>, vector<8x84xf32> -> vector<8x84xf32>
    %c0_46 = arith.constant 0 : index
    %c0_47 = arith.constant 0 : index
    %67 = vector.load %arg12[%c0_46, %c0_47] : memref<1x84xf32, #tpu.memory_space<vmem>>, vector<1x84xf32>
    %68 = vector.broadcast %67 : vector<1x84xf32> to vector<8x84xf32>
    %69 = arith.addf %66, %68 : vector<8x84xf32>
    %cst_48 = arith.constant 0.000000e+00 : f32
    %70 = vector.broadcast %cst_48 : f32 to vector<8x84xf32>
    %71 = arith.maximumf %69, %70 : vector<8x84xf32>
    %c0_49 = arith.constant 0 : index
    %c0_50 = arith.constant 0 : index
    %72 = vector.load %arg13[%c0_49, %c0_50] : memref<84x128xf32, #tpu.memory_space<vmem>>, vector<84x128xf32>
    %cst_51 = arith.constant dense<0.000000e+00> : vector<8x128xf32>
    %73 = tpu.matmul %71, %72, %cst_51 {dimension_numbers = #tpu.dot_dimension_numbers<[1], [0], [0], [1], [0, 0, 1, 1], [], []>} : vector<8x84xf32>, vector<84x128xf32>, vector<8x128xf32> -> vector<8x128xf32>
    %c0_52 = arith.constant 0 : index
    %c0_53 = arith.constant 0 : index
    %74 = vector.load %arg14[%c0_52, %c0_53] : memref<1x128xf32, #tpu.memory_space<vmem>>, vector<1x128xf32>
    %75 = vector.broadcast %74 : vector<1x128xf32> to vector<8x128xf32>
    %76 = arith.addf %73, %75 : vector<8x128xf32>
    %c0_54 = arith.constant 0 : index
    %c0_55 = arith.constant 0 : index
    %77 = vector.load %arg15[%c0_54, %c0_55] : memref<8x128xf32, #tpu.memory_space<vmem>>, vector<8x128xf32>
    tpu.vector_store %arg15[%c0_54, %c0_55], %76 {strides = array<i32>} : memref<8x128xf32, #tpu.memory_space<vmem>>, vector<8x128xf32>,
    return
  }
  func.func @transform_0(%arg0: i32) -> (i32, i32) {
    %c0_i32 = arith.constant 0 : i32
    %c0_i32_0 = arith.constant 0 : i32
    return %arg0, %c0_i32 : i32, i32
  }
  func.func @transform_1(%arg0: i32) -> (i32, i32) {
    %c0_i32 = arith.constant 0 : i32
    %c0_i32_0 = arith.constant 0 : i32
    %c0_i32_1 = arith.constant 0 : i32
    return %c0_i32, %c0_i32_0 : i32, i32
  }
  func.func @transform_2(%arg0: i32) -> (i32, i32) {
    %c0_i32 = arith.constant 0 : i32
    %c0_i32_0 = arith.constant 0 : i32
    %c0_i32_1 = arith.constant 0 : i32
    return %c0_i32, %c0_i32_0 : i32, i32
  }
  func.func @transform_3(%arg0: i32) -> (i32, i32) {
    %c0_i32 = arith.constant 0 : i32
    %c0_i32_0 = arith.constant 0 : i32
    %c0_i32_1 = arith.constant 0 : i32
    return %c0_i32, %c0_i32_0 : i32, i32
  }
  func.func @transform_4(%arg0: i32) -> (i32, i32) {
    %c0_i32 = arith.constant 0 : i32
    %c0_i32_0 = arith.constant 0 : i32
    %c0_i32_1 = arith.constant 0 : i32
    return %c0_i32, %c0_i32_0 : i32, i32
  }
  func.func @transform_5(%arg0: i32) -> (i32, i32) {
    %c0_i32 = arith.constant 0 : i32
    %c0_i32_0 = arith.constant 0 : i32
    %c0_i32_1 = arith.constant 0 : i32
    return %c0_i32, %c0_i32_0 : i32, i32
  }
  func.func @transform_6(%arg0: i32) -> (i32, i32) {
    %c0_i32 = arith.constant 0 : i32
    %c0_i32_0 = arith.constant 0 : i32
    %c0_i32_1 = arith.constant 0 : i32
    return %c0_i32, %c0_i32_0 : i32, i32
  }
  func.func @transform_7(%arg0: i32) -> (i32, i32, i32) {
    %c0_i32 = arith.constant 0 : i32
    %c0_i32_0 = arith.constant 0 : i32
    %c0_i32_1 = arith.constant 0 : i32
    %c0_i32_2 = arith.constant 0 : i32
    return %c0_i32, %c0_i32_0, %c0_i32_1 : i32, i32, i32
  }
  func.func @transform_8(%arg0: i32) -> (i32, i32) {
    %c0_i32 = arith.constant 0 : i32
    %c0_i32_0 = arith.constant 0 : i32
    %c0_i32_1 = arith.constant 0 : i32
    return %c0_i32, %c0_i32_0 : i32, i32
  }
  func.func @transform_9(%arg0: i32) -> (i32, i32) {
    %c0_i32 = arith.constant 0 : i32
    %c0_i32_0 = arith.constant 0 : i32
    %c0_i32_1 = arith.constant 0 : i32
    return %c0_i32, %c0_i32_0 : i32, i32
  }
  func.func @transform_10(%arg0: i32) -> (i32, i32) {
    %c0_i32 = arith.constant 0 : i32
    %c0_i32_0 = arith.constant 0 : i32
    %c0_i32_1 = arith.constant 0 : i32
    return %c0_i32, %c0_i32_0 : i32, i32
  }
  func.func @transform_11(%arg0: i32) -> (i32, i32) {
    %c0_i32 = arith.constant 0 : i32
    %c0_i32_0 = arith.constant 0 : i32
    %c0_i32_1 = arith.constant 0 : i32
    return %c0_i32, %c0_i32_0 : i32, i32
  }
  func.func @transform_12(%arg0: i32) -> (i32, i32) {
    %c0_i32 = arith.constant 0 : i32
    %c0_i32_0 = arith.constant 0 : i32
    %c0_i32_1 = arith.constant 0 : i32
    return %c0_i32, %c0_i32_0 : i32, i32
  }
  func.func @transform_13(%arg0: i32) -> (i32, i32) {
    %c0_i32 = arith.constant 0 : i32
    %c0_i32_0 = arith.constant 0 : i32
    %c0_i32_1 = arith.constant 0 : i32
    return %c0_i32, %c0_i32_0 : i32, i32
  }
  func.func @transform_14(%arg0: i32) -> (i32, i32) {
    %c0_i32 = arith.constant 0 : i32
    %c0_i32_0 = arith.constant 0 : i32
    return %arg0, %c0_i32 : i32, i32
  }
}

</mosaic_0001>

<llo_original>
// kernel: lenet_forward.1
$region0: #{lenet_forward.1}
  #allocation0 [shape = 'u32[]', space=smem, size = 0x4, offset = 0x4, fixed_abs, tag = 'smem constant byte address 0x4 - core index']
  #allocation1 [shape = 'u32[144,128]{1,0:T(1,128)}', space=vmem, size = 0x12000, scoped, tag = 'internal scratch']
  %s0 = inlined_call_operand.hbm [shape: f32[512,32], index: 0, kind: input, shape index: {}]
  %s1 = inlined_call_operand.vmem [shape: f32[96,180], index: 1, kind: input, shape index: {}]
  %s2 = inlined_call_operand.vmem [shape: f32[1,180], index: 2, kind: input, shape index: {}]
  %s3 = inlined_call_operand.hbm [shape: f32[179,90], index: 3, kind: input, shape index: {}]
  %s4 = inlined_call_operand.hbm [shape: f32[270,208], index: 4, kind: input, shape index: {}]
  %s5 = inlined_call_operand.vmem [shape: f32[1,208], index: 5, kind: input, shape index: {}]
  %s6 = inlined_call_operand.vmem [shape: f32[207,96], index: 6, kind: input, shape index: {}]
  %s7 = inlined_call_operand.hbm [shape: f32[6,8,247], index: 7, kind: input, shape index: {}]
  %s8 = inlined_call_operand.vmem [shape: f32[576,120], index: 8, kind: input, shape index: {}]
  %s9 = inlined_call_operand.vmem [shape: f32[1,120], index: 9, kind: input, shape index: {}]
  %s10 = inlined_call_operand.vmem [shape: f32[120,84], index: 10, kind: input, shape index: {}]
  %s11 = inlined_call_operand.vmem [shape: f32[1,84], index: 11, kind: input, shape index: {}]
  %s12 = inlined_call_operand.hbm [shape: f32[84,128], index: 12, kind: input, shape index: {}]
  %s13 = inlined_call_operand.vmem [shape: f32[1,128], index: 13, kind: input, shape index: {}]
  %s14 = inlined_call_operand.hbm [shape: f32[16,128], index: 14, kind: output, shape index: {}]
  %s15 = sld [smem:[#allocation0]]
  $region109: #{lenet_forward.1} parent=0
    _
  %s17 = ssub.s32 1, %s15
  %s18 = scalar_select 0, %s17, %s15
  $region1: #{lenet_forward.1} parent=0
    #allocation2 [shape = 'u8[262144]{0}', space=vmem, size = 0x40000, scoped, tag = 'input window, operand 0']
    #allocation3 [shape = 's32[2]{0}', space=sflag, size = 0x8, scoped, tag = 'scoped memory for lenet_forward.1']
    #allocation4 [shape = 's32[2]{0}', space=sflag, size = 0x8, scoped, tag = 'scoped memory for lenet_forward.1']
    #allocation5 [shape = 'u8[94208]{0}', space=vmem, size = 0x17000, scoped, tag = 'input window, operand 3, single buffered']
    #allocation6 [shape = 's32[1]{0}', space=sflag, size = 0x4, scoped, tag = 'scoped memory for lenet_forward.1']
    #allocation7 [shape = 'u8[278528]{0}', space=vmem, size = 0x44000, scoped, tag = 'input window, operand 4, single buffered']
    #allocation8 [shape = 'u8[49152]{0}', space=vmem, size = 0xc000, scoped, tag = 'input window, operand 7, single buffered']
    #allocation9 [shape = 's32[1]{0}', space=sflag, size = 0x4, scoped, tag = 'scoped memory for lenet_forward.1']
    #allocation10 [shape = 'u8[45056]{0}', space=vmem, size = 0xb000, scoped, tag = 'input window, operand 12, single buffered']
    #allocation11 [shape = 'u8[8192]{0}', space=vmem, size = 0x2000, scoped, tag = 'output window, operand 0']
    %19 = vsyncpa [#allocation3], 0
    %s20 = scalar_lea.sflag [#allocation3], 1
    %21 = vsyncpa %s20, 0
    %22 = vsyncpa [#allocation6], 0
    %23 = vsyncpa [#allocation9], 0
    %24 = vsyncpa [#allocation4], 0
    %s25 = scalar_lea.sflag [#allocation4], 1
    %26 = vsyncpa %s25, 0
    loop: start=0, step=1, limit=4
    $region2: #{lenet_forward.1} parent=1 // loop_pre_header
      _
    $region3: #{lenet_forward.1} parent=1 // loop_header
      %s28 = sphi 0, %s32
      %p29 = scmp.ge.s32.totalorder %s28, 4
      %s38 = sphi 0, %s40
      %s41 = sphi 0, %s38
      %s42 = sphi 0, %s41
      %s58 = sphi 0, %s42
      %s62 = sphi 0, %s62
      %s64 = sphi 0, %s62
      %s65 = sphi 0, %s64
      %s79 = sphi 0, %s65
      %s83 = sphi 0, %s83
      %s85 = sphi 0, %s83
      %s86 = sphi 0, %s85
      %s100 = sphi 0, %s86
      %s104 = sphi 0, %s104
      %s106 = sphi 0, %s104
      %s107 = sphi 0, %s106
      %s121 = sphi 0, %s107
      %s125 = sphi 0, %s125
      %s127 = sphi 0, %s125
      %s128 = sphi 0, %s127
      %s142 = sphi 0, %s128
      %s146 = sphi 0, %s146
      %s148 = sphi 0, %s146
      %s149 = sphi 0, %s148
      %s163 = sphi 0, %s149
      %s167 = sphi 0, %s167
      %s169 = sphi 0, %s167
      %s170 = sphi 0, %s169
      %s184 = sphi 0, %s170
      %s188 = sphi 0, %s188
      %s190 = sphi 0, %s188
      %s191 = sphi 0, %s190
      %s205 = sphi 0, %s191
      %s209 = sphi 0, %s209
      %s211 = sphi 0, %s209
      %s212 = sphi 0, %s211
      %s226 = sphi 0, %s212
      %s230 = sphi 0, %s230
      %s232 = sphi 0, %s230
      %s233 = sphi 0, %s232
      %s247 = sphi 0, %s233
      %s251 = sphi 0, %s251
      %s253 = sphi 0, %s251
      %s254 = sphi 0, %s253
      %s268 = sphi 0, %s254
      %s272 = sphi 0, %s272
      %s274 = sphi 0, %s272
      %s275 = sphi 0, %s274
      %s289 = sphi 0, %s275
      %s293 = sphi 0, %s293
      %s295 = sphi 0, %s293
      %s296 = sphi 0, %s295
      %s310 = sphi 0, %s296
      %s314 = sphi 0, %s314
      %s316 = sphi 0, %s314
      %s317 = sphi 0, %s316
      %s331 = sphi 0, %s317
      %s337 = sphi 0, %s339
      %s340 = sphi 0, %s337
      %s341 = sphi 0, %s340
      %s357 = sphi 0, %s341
    $region4: #{lenet_forward.1} parent=1 // loop_header_branch
      %31 = sbr.rel (%p29) target = $region8
    $region5: #{lenet_forward.1} parent=1 // loop_body
      %s33 = ssub.s32 %s28, 1
      %s34 = ssub.s32 %s28, 2
      %s35 = sadd.s32 %s28, 1
      %s36 = ssub.s32 %s28, %s35
      %p37 = scmp.eq.s32.totalorder %s36, 0
      %s39 = sadd.s32 %s38, 1
      %s40 = scalar_select %p37, %s38, %s39
      %p43 = pneg %p37
      %p44 = scmp.eq.s32.totalorder %s28, 1
      %p45 = por %p43, %p44
      %p46 = scmp.ne.s32.totalorder %s38, %s41
      %p47 = scmp.eq.s32.totalorder %s28, 0
      %p48 = por %p46, %p47
      %p49 = scmp.ne.s32.totalorder %s38, %s41
      %p50 = scmp.eq.s32.totalorder %s33, 1
      %p51 = por %p49, %p50
      %p52 = scmp.ne.s32.totalorder %s41, %s42
      %p53 = scmp.eq.s32.totalorder %s33, 0
      %p54 = por %p52, %p53
      %p55 = scmp.ne.s32.totalorder %s41, %s42
      %p56 = scmp.eq.s32.totalorder %s34, 1
      %p57 = por %p55, %p56
      %p59 = scmp.ne.s32.totalorder %s42, %s58
      %p60 = scmp.eq.s32.totalorder %s34, 0
      %p61 = por %p59, %p60
      %s63 = sadd.s32 %s62, 1
      %p66 = scmp.eq.s32.totalorder %s28, 1
      %p67 = scmp.ne.s32.totalorder %s62, %s64
      %p68 = scmp.eq.s32.totalorder %s28, 0
      %p69 = por %p67, %p68
      %p70 = scmp.ne.s32.totalorder %s62, %s64
      %p71 = scmp.eq.s32.totalorder %s33, 1
      %p72 = por %p70, %p71
      %p73 = scmp.ne.s32.totalorder %s64, %s65
      %p74 = scmp.eq.s32.totalorder %s33, 0
      %p75 = por %p73, %p74
      %p76 = scmp.ne.s32.totalorder %s64, %s65
      %p77 = scmp.eq.s32.totalorder %s34, 1
      %p78 = por %p76, %p77
      %p80 = scmp.ne.s32.totalorder %s65, %s79
      %p81 = scmp.eq.s32.totalorder %s34, 0
      %p82 = por %p80, %p81
      %s84 = sadd.s32 %s83, 1
      %p87 = scmp.eq.s32.totalorder %s28, 1
      %p88 = scmp.ne.s32.totalorder %s83, %s85
      %p89 = scmp.eq.s32.totalorder %s28, 0
      %p90 = por %p88, %p89
      %p91 = scmp.ne.s32.totalorder %s83, %s85
      %p92 = scmp.eq.s32.totalorder %s33, 1
      %p93 = por %p91, %p92
      %p94 = scmp.ne.s32.totalorder %s85, %s86
      %p95 = scmp.eq.s32.totalorder %s33, 0
      %p96 = por %p94, %p95
      %p97 = scmp.ne.s32.totalorder %s85, %s86
      %p98 = scmp.eq.s32.totalorder %s34, 1
      %p99 = por %p97, %p98
      %p101 = scmp.ne.s32.totalorder %s86, %s100
      %p102 = scmp.eq.s32.totalorder %s34, 0
      %p103 = por %p101, %p102
      %s105 = sadd.s32 %s104, 1
      %p108 = scmp.eq.s32.totalorder %s28, 1
      %p109 = scmp.ne.s32.totalorder %s104, %s106
      %p110 = scmp.eq.s32.totalorder %s28, 0
      %p111 = por %p109, %p110
      %p112 = scmp.ne.s32.totalorder %s104, %s106
      %p113 = scmp.eq.s32.totalorder %s33, 1
      %p114 = por %p112, %p113
      %p115 = scmp.ne.s32.totalorder %s106, %s107
      %p116 = scmp.eq.s32.totalorder %s33, 0
      %p117 = por %p115, %p116
      %p118 = scmp.ne.s32.totalorder %s106, %s107
      %p119 = scmp.eq.s32.totalorder %s34, 1
      %p120 = por %p118, %p119
      %p122 = scmp.ne.s32.totalorder %s107, %s121
      %p123 = scmp.eq.s32.totalorder %s34, 0
      %p124 = por %p122, %p123
      %s126 = sadd.s32 %s125, 1
      %p129 = scmp.eq.s32.totalorder %s28, 1
      %p130 = scmp.ne.s32.totalorder %s125, %s127
      %p131 = scmp.eq.s32.totalorder %s28, 0
      %p132 = por %p130, %p131
      %p133 = scmp.ne.s32.totalorder %s125, %s127
      %p134 = scmp.eq.s32.totalorder %s33, 1
      %p135 = por %p133, %p134
      %p136 = scmp.ne.s32.totalorder %s127, %s128
      %p137 = scmp.eq.s32.totalorder %s33, 0
      %p138 = por %p136, %p137
      %p139 = scmp.ne.s32.totalorder %s127, %s128
      %p140 = scmp.eq.s32.totalorder %s34, 1
      %p141 = por %p139, %p140
      %p143 = scmp.ne.s32.totalorder %s128, %s142
      %p144 = scmp.eq.s32.totalorder %s34, 0
      %p145 = por %p143, %p144
      %s147 = sadd.s32 %s146, 1
      %p150 = scmp.eq.s32.totalorder %s28, 1
      %p151 = scmp.ne.s32.totalorder %s146, %s148
      %p152 = scmp.eq.s32.totalorder %s28, 0
      %p153 = por %p151, %p152
      %p154 = scmp.ne.s32.totalorder %s146, %s148
      %p155 = scmp.eq.s32.totalorder %s33, 1
      %p156 = por %p154, %p155
      %p157 = scmp.ne.s32.totalorder %s148, %s149
      %p158 = scmp.eq.s32.totalorder %s33, 0
      %p159 = por %p157, %p158
      %p160 = scmp.ne.s32.totalorder %s148, %s149
      %p161 = scmp.eq.s32.totalorder %s34, 1
      %p162 = por %p160, %p161
      %p164 = scmp.ne.s32.totalorder %s149, %s163
      %p165 = scmp.eq.s32.totalorder %s34, 0
      %p166 = por %p164, %p165
      %s168 = sadd.s32 %s167, 1
      %p171 = scmp.eq.s32.totalorder %s28, 1
      %p172 = scmp.ne.s32.totalorder %s167, %s169
      %p173 = scmp.eq.s32.totalorder %s28, 0
      %p174 = por %p172, %p173
      %p175 = scmp.ne.s32.totalorder %s167, %s169
      %p176 = scmp.eq.s32.totalorder %s33, 1
      %p177 = por %p175, %p176
      %p178 = scmp.ne.s32.totalorder %s169, %s170
      %p179 = scmp.eq.s32.totalorder %s33, 0
      %p180 = por %p178, %p179
      %p181 = scmp.ne.s32.totalorder %s169, %s170
      %p182 = scmp.eq.s32.totalorder %s34, 1
      %p183 = por %p181, %p182
      %p185 = scmp.ne.s32.totalorder %s170, %s184
      %p186 = scmp.eq.s32.totalorder %s34, 0
      %p187 = por %p185, %p186
      %s189 = sadd.s32 %s188, 1
      %p192 = scmp.eq.s32.totalorder %s28, 1
      %p193 = scmp.ne.s32.totalorder %s188, %s190
      %p194 = scmp.eq.s32.totalorder %s28, 0
      %p195 = por %p193, %p194
      %p196 = scmp.ne.s32.totalorder %s188, %s190
      %p197 = scmp.eq.s32.totalorder %s33, 1
      %p198 = por %p196, %p197
      %p199 = scmp.ne.s32.totalorder %s190, %s191
      %p200 = scmp.eq.s32.totalorder %s33, 0
      %p201 = por %p199, %p200
      %p202 = scmp.ne.s32.totalorder %s190, %s191
      %p203 = scmp.eq.s32.totalorder %s34, 1
      %p204 = por %p202, %p203
      %p206 = scmp.ne.s32.totalorder %s191, %s205
      %p207 = scmp.eq.s32.totalorder %s34, 0
      %p208 = por %p206, %p207
      %s210 = sadd.s32 %s209, 1
      %p213 = scmp.eq.s32.totalorder %s28, 1
      %p214 = scmp.ne.s32.totalorder %s209, %s211
      %p215 = scmp.eq.s32.totalorder %s28, 0
      %p216 = por %p214, %p215
      %p217 = scmp.ne.s32.totalorder %s209, %s211
      %p218 = scmp.eq.s32.totalorder %s33, 1
      %p219 = por %p217, %p218
      %p220 = scmp.ne.s32.totalorder %s211, %s212
      %p221 = scmp.eq.s32.totalorder %s33, 0
      %p222 = por %p220, %p221
      %p223 = scmp.ne.s32.totalorder %s211, %s212
      %p224 = scmp.eq.s32.totalorder %s34, 1
      %p225 = por %p223, %p224
      %p227 = scmp.ne.s32.totalorder %s212, %s226
      %p228 = scmp.eq.s32.totalorder %s34, 0
      %p229 = por %p227, %p228
      %s231 = sadd.s32 %s230, 1
      %p234 = scmp.eq.s32.totalorder %s28, 1
      %p235 = scmp.ne.s32.totalorder %s230, %s232
      %p236 = scmp.eq.s32.totalorder %s28, 0
      %p237 = por %p235, %p236
      %p238 = scmp.ne.s32.totalorder %s230, %s232
      %p239 = scmp.eq.s32.totalorder %s33, 1
      %p240 = por %p238, %p239
      %p241 = scmp.ne.s32.totalorder %s232, %s233
      %p242 = scmp.eq.s32.totalorder %s33, 0
      %p243 = por %p241, %p242
      %p244 = scmp.ne.s32.totalorder %s232, %s233
      %p245 = scmp.eq.s32.totalorder %s34, 1
      %p246 = por %p244, %p245
      %p248 = scmp.ne.s32.totalorder %s233, %s247
      %p249 = scmp.eq.s32.totalorder %s34, 0
      %p250 = por %p248, %p249
      %s252 = sadd.s32 %s251, 1
      %p255 = scmp.eq.s32.totalorder %s28, 1
      %p256 = scmp.ne.s32.totalorder %s251, %s253
      %p257 = scmp.eq.s32.totalorder %s28, 0
      %p258 = por %p256, %p257
      %p259 = scmp.ne.s32.totalorder %s251, %s253
      %p260 = scmp.eq.s32.totalorder %s33, 1
      %p261 = por %p259, %p260
      %p262 = scmp.ne.s32.totalorder %s253, %s254
      %p263 = scmp.eq.s32.totalorder %s33, 0
      %p264 = por %p262, %p263
      %p265 = scmp.ne.s32.totalorder %s253, %s254
      %p266 = scmp.eq.s32.totalorder %s34, 1
      %p267 = por %p265, %p266
      %p269 = scmp.ne.s32.totalorder %s254, %s268
      %p270 = scmp.eq.s32.totalorder %s34, 0
      %p271 = por %p269, %p270
      %s273 = sadd.s32 %s272, 1
      %p276 = scmp.eq.s32.totalorder %s28, 1
      %p277 = scmp.ne.s32.totalorder %s272, %s274
      %p278 = scmp.eq.s32.totalorder %s28, 0
      %p279 = por %p277, %p278
      %p280 = scmp.ne.s32.totalorder %s272, %s274
      %p281 = scmp.eq.s32.totalorder %s33, 1
      %p282 = por %p280, %p281
      %p283 = scmp.ne.s32.totalorder %s274, %s275
      %p284 = scmp.eq.s32.totalorder %s33, 0
      %p285 = por %p283, %p284
      %p286 = scmp.ne.s32.totalorder %s274, %s275
      %p287 = scmp.eq.s32.totalorder %s34, 1
      %p288 = por %p286, %p287
      %p290 = scmp.ne.s32.totalorder %s275, %s289
      %p291 = scmp.eq.s32.totalorder %s34, 0
      %p292 = por %p290, %p291
      %s294 = sadd.s32 %s293, 1
      %p297 = scmp.eq.s32.totalorder %s28, 1
      %p298 = scmp.ne.s32.totalorder %s293, %s295
      %p299 = scmp.eq.s32.totalorder %s28, 0
      %p300 = por %p298, %p299
      %p301 = scmp.ne.s32.totalorder %s293, %s295
      %p302 = scmp.eq.s32.totalorder %s33, 1
      %p303 = por %p301, %p302
      %p304 = scmp.ne.s32.totalorder %s295, %s296
      %p305 = scmp.eq.s32.totalorder %s33, 0
      %p306 = por %p304, %p305
      %p307 = scmp.ne.s32.totalorder %s295, %s296
      %p308 = scmp.eq.s32.totalorder %s34, 1
      %p309 = por %p307, %p308
      %p311 = scmp.ne.s32.totalorder %s296, %s310
      %p312 = scmp.eq.s32.totalorder %s34, 0
      %p313 = por %p311, %p312
      %s315 = sadd.s32 %s314, 1
      %p318 = scmp.eq.s32.totalorder %s28, 1
      %p319 = scmp.ne.s32.totalorder %s314, %s316
      %p320 = scmp.eq.s32.totalorder %s28, 0
      %p321 = por %p319, %p320
      %p322 = scmp.ne.s32.totalorder %s314, %s316
      %p323 = scmp.eq.s32.totalorder %s33, 1
      %p324 = por %p322, %p323
      %p325 = scmp.ne.s32.totalorder %s316, %s317
      %p326 = scmp.eq.s32.totalorder %s33, 0
      %p327 = por %p325, %p326
      %p328 = scmp.ne.s32.totalorder %s316, %s317
      %p329 = scmp.eq.s32.totalorder %s34, 1
      %p330 = por %p328, %p329
      %p332 = scmp.ne.s32.totalorder %s317, %s331
      %p333 = scmp.eq.s32.totalorder %s34, 0
      %p334 = por %p332, %p333
      %s335 = ssub.s32 %s28, %s35
      %p336 = scmp.eq.s32.totalorder %s335, 0
      %s338 = sadd.s32 %s337, 1
      %s339 = scalar_select %p336, %s337, %s338
      %p342 = pneg %p336
      %p343 = scmp.eq.s32.totalorder %s28, 1
      %p344 = por %p342, %p343
      %p345 = scmp.ne.s32.totalorder %s337, %s340
      %p346 = scmp.eq.s32.totalorder %s28, 0
      %p347 = por %p345, %p346
      %p348 = scmp.ne.s32.totalorder %s337, %s340
      %p349 = scmp.eq.s32.totalorder %s33, 1
      %p350 = por %p348, %p349
      %p351 = scmp.ne.s32.totalorder %s340, %s341
      %p352 = scmp.eq.s32.totalorder %s33, 0
      %p353 = por %p351, %p352
      %p354 = scmp.ne.s32.totalorder %s340, %s341
      %p355 = scmp.eq.s32.totalorder %s34, 1
      %p356 = por %p354, %p355
      %p358 = scmp.ne.s32.totalorder %s341, %s357
      %p359 = scmp.eq.s32.totalorder %s34, 0
      %p360 = por %p358, %p359
      %p361 = scmp.le.s32.totalorder 1, %s28
      %p362 = scmp.lt.s32.totalorder %s28, 3
      %p363 = pnand %p361, %p362
      %p364 = pneg %p363
      // Predicated region
      $region9: #{lenet_forward.1} parent=5 // pred_check
        _
      $region10: #{lenet_forward.1} parent=5 // pred_check_branch
        %366 = sbr.rel (%p363) target = $region12
      $region11: #{lenet_forward.1} parent=5 // pred_region
        %s367 = ssub.s32 %s28, 1
        // Predicated region
        $region13: #{lenet_forward.1} parent=11 // pred_check
          %p368 = pneg %p75
        $region14: #{lenet_forward.1} parent=11 // pred_check_branch
          %370 = sbr.rel (%p368) target = $region16
        $region15: #{lenet_forward.1} parent=11 // pred_region
          _
        $region16: #{lenet_forward.1} parent=11 // pred_fallthru
          _
        // Predicated region
        $region17: #{lenet_forward.1} parent=11 // pred_check
          %p371 = pneg %p96
        $region18: #{lenet_forward.1} parent=11 // pred_check_branch
          %373 = sbr.rel (%p371) target = $region20
        $region19: #{lenet_forward.1} parent=11 // pred_region
          _
        $region20: #{lenet_forward.1} parent=11 // pred_fallthru
          _
        // Predicated region
        $region21: #{lenet_forward.1} parent=11 // pred_check
          %p374 = pneg %p117
        $region22: #{lenet_forward.1} parent=11 // pred_check_branch
          %376 = sbr.rel (%p374) target = $region24
        $region23: #{lenet_forward.1} parent=11 // pred_region
          %s378 = ssub.s32 2944, 2944
          %379 = vsyncadd [#allocation6], %s378
          %s380 = sshll.u32 [#allocation5], 4
          %s381 = int_to_ptr.vmem [resolvable:$true] %s380
          %386 = dma.hbm_to_vmem [thread:$0]  %s3, 2944, %s381, [#allocation6], 128, 128, 8
        $region24: #{lenet_forward.1} parent=11 // pred_fallthru
          _
        // Predicated region
        $region25: #{lenet_forward.1} parent=11 // pred_check
          %p387 = pneg %p138
        $region26: #{lenet_forward.1} parent=11 // pred_check_branch
          %389 = sbr.rel (%p387) target = $region28
        $region27: #{lenet_forward.1} parent=11 // pred_region
          %s391 = ssub.s32 8704, 8704
          %392 = vsyncadd [#allocation6], %s391
          %s393 = sshll.u32 [#allocation7], 4
          %s394 = int_to_ptr.vmem [resolvable:$true] %s393
          %399 = dma.hbm_to_vmem [thread:$0]  %s4, 8704, %s394, [#allocation6], 256, 256, 16
        $region28: #{lenet_forward.1} parent=11 // pred_fallthru
          _
        // Predicated region
        $region29: #{lenet_forward.1} parent=11 // pred_check
          %p400 = pneg %p159
        $region30: #{lenet_forward.1} parent=11 // pred_check_branch
          %402 = sbr.rel (%p400) target = $region32
        $region31: #{lenet_forward.1} parent=11 // pred_region
          _
        $region32: #{lenet_forward.1} parent=11 // pred_fallthru
          _
        // Predicated region
        $region33: #{lenet_forward.1} parent=11 // pred_check
          %p403 = pneg %p180
        $region34: #{lenet_forward.1} parent=11 // pred_check_branch
          %405 = sbr.rel (%p403) target = $region36
        $region35: #{lenet_forward.1} parent=11 // pred_region
          _
        $region36: #{lenet_forward.1} parent=11 // pred_fallthru
          _
        // Predicated region
        $region37: #{lenet_forward.1} parent=11 // pred_check
          %p406 = pneg %p201
        $region38: #{lenet_forward.1} parent=11 // pred_check_branch
          %408 = sbr.rel (%p406) target = $region40
        $region39: #{lenet_forward.1} parent=11 // pred_region
          %s410 = ssub.s32 1536, 1536
          %411 = vsyncadd [#allocation9], %s410
          %s412 = sshll.u32 [#allocation8], 4
          %s413 = int_to_ptr.vmem [resolvable:$true] %s412
          %418 = dma.hbm_to_vmem [thread:$0]  %s7, 1536, %s413, [#allocation9], 256, 256, 16
        $region40: #{lenet_forward.1} parent=11 // pred_fallthru
          _
        // Predicated region
        $region41: #{lenet_forward.1} parent=11 // pred_check
          %p419 = pneg %p222
        $region42: #{lenet_forward.1} parent=11 // pred_check_branch
          %421 = sbr.rel (%p419) target = $region44
        $region43: #{lenet_forward.1} parent=11 // pred_region
          _
        $region44: #{lenet_forward.1} parent=11 // pred_fallthru
          _
        // Predicated region
        $region45: #{lenet_forward.1} parent=11 // pred_check
          %p422 = pneg %p243
        $region46: #{lenet_forward.1} parent=11 // pred_check_branch
          %424 = sbr.rel (%p422) target = $region48
        $region47: #{lenet_forward.1} parent=11 // pred_region
          _
        $region48: #{lenet_forward.1} parent=11 // pred_fallthru
          _
        // Predicated region
        $region49: #{lenet_forward.1} parent=11 // pred_check
          %p425 = pneg %p264
        $region50: #{lenet_forward.1} parent=11 // pred_check_branch
          %427 = sbr.rel (%p425) target = $region52
        $region51: #{lenet_forward.1} parent=11 // pred_region
          _
        $region52: #{lenet_forward.1} parent=11 // pred_fallthru
          _
        // Predicated region
        $region53: #{lenet_forward.1} parent=11 // pred_check
          %p428 = pneg %p285
        $region54: #{lenet_forward.1} parent=11 // pred_check_branch
          %430 = sbr.rel (%p428) target = $region56
        $region55: #{lenet_forward.1} parent=11 // pred_region
          _
        $region56: #{lenet_forward.1} parent=11 // pred_fallthru
          _
        // Predicated region
        $region57: #{lenet_forward.1} parent=11 // pred_check
          %p431 = pneg %p306
        $region58: #{lenet_forward.1} parent=11 // pred_check_branch
          %433 = sbr.rel (%p431) target = $region60
        $region59: #{lenet_forward.1} parent=11 // pred_region
          %s435 = ssub.s32 1408, 1408
          %436 = vsyncadd [#allocation9], %s435
          %s437 = sshll.u32 [#allocation10], 4
          %s438 = int_to_ptr.vmem [resolvable:$true] %s437
          %443 = dma.hbm_to_vmem [thread:$0]  %s12, 1408, %s438, [#allocation9], 128, 128, 8
        $region60: #{lenet_forward.1} parent=11 // pred_fallthru
          _
        // Predicated region
        $region61: #{lenet_forward.1} parent=11 // pred_check
          %p444 = pneg %p327
        $region62: #{lenet_forward.1} parent=11 // pred_check_branch
          %446 = sbr.rel (%p444) target = $region64
        $region63: #{lenet_forward.1} parent=11 // pred_region
          _
        $region64: #{lenet_forward.1} parent=11 // pred_fallthru
          _
      $region12: #{lenet_forward.1} parent=5 // pred_fallthru
        _
      %p447 = scmp.lt.s32.totalorder %s28, 2
      // Predicated region
      $region65: #{lenet_forward.1} parent=5 // pred_check
        %p448 = pneg %p447
      $region66: #{lenet_forward.1} parent=5 // pred_check_branch
        %450 = sbr.rel (%p448) target = $region68
      $region67: #{lenet_forward.1} parent=5 // pred_region
        // Predicated region
        $region69: #{lenet_forward.1} parent=67 // pred_check
          %p451 = pneg %p48
        $region70: #{lenet_forward.1} parent=67 // pred_check_branch
          %453 = sbr.rel (%p451) target = $region72
        $region71: #{lenet_forward.1} parent=67 // pred_region
          %s454 = sand.u32 %s38, 1
          %s455 = scalar_lea.sflag [#allocation3], %s454
          %s456 = sand.u32 %s38, 1
          %s457 = smul.addr %s456, 256
          %s458 = scalar_lea.vmem [#allocation2], %s457
          %s459 = smul.u32 32, %s28
          %s461 = ssub.s32 4096, 4096
          %462 = vsyncadd %s455, %s461
          %s463 = smul.addr %s459, 128
          %s464 = scalar_lea.hbm %s0, %s463
          %s465 = sshll.u32 %s458, 4
          %s466 = int_to_ptr.vmem [resolvable:$true] %s465
          %471 = dma.hbm_to_vmem [thread:$0]  %s464, 4096, %s466, %s455, 128, 128, 8
        $region72: #{lenet_forward.1} parent=67 // pred_fallthru
          _
      $region68: #{lenet_forward.1} parent=5 // pred_fallthru
        _
      %p472 = scmp.le.s32.totalorder 1, %s28
      %p473 = scmp.lt.s32.totalorder %s28, 3
      %p474 = pnand %p472, %p473
      %p475 = pneg %p474
      // Predicated region
      $region73: #{lenet_forward.1} parent=5 // pred_check
        _
      $region74: #{lenet_forward.1} parent=5 // pred_check_branch
        %477 = sbr.rel (%p474) target = $region76
      $region75: #{lenet_forward.1} parent=5 // pred_region
        %s478 = ssub.s32 %s28, 1
        %s479 = sand.u32 %s41, 1
        %s480 = scalar_lea.sflag [#allocation3], %s479
        %s481 = sand.u32 %s41, 1
        %s482 = smul.addr %s481, 256
        %s483 = scalar_lea.vmem [#allocation2], %s482
        // Predicated region
        $region77: #{lenet_forward.1} parent=75 // pred_check
          %p484 = pneg %p54
        $region78: #{lenet_forward.1} parent=75 // pred_check_branch
          %486 = sbr.rel (%p484) target = $region80
        $region79: #{lenet_forward.1} parent=75 // pred_region
          %487 = dma.done %s480, 4096
        $region80: #{lenet_forward.1} parent=75 // pred_fallthru
          _
        // Predicated region
        $region81: #{lenet_forward.1} parent=75 // pred_check
          %p488 = pneg %p117
        $region82: #{lenet_forward.1} parent=75 // pred_check_branch
          %490 = sbr.rel (%p488) target = $region84
        $region83: #{lenet_forward.1} parent=75 // pred_region
          %491 = dma.done [#allocation6], 2944
        $region84: #{lenet_forward.1} parent=75 // pred_fallthru
          _
        // Predicated region
        $region85: #{lenet_forward.1} parent=75 // pred_check
          %p492 = pneg %p138
        $region86: #{lenet_forward.1} parent=75 // pred_check_branch
          %494 = sbr.rel (%p492) target = $region88
        $region87: #{lenet_forward.1} parent=75 // pred_region
          %495 = dma.done [#allocation6], 8704
        $region88: #{lenet_forward.1} parent=75 // pred_fallthru
          _
        // Predicated region
        $region89: #{lenet_forward.1} parent=75 // pred_check
          %p496 = pneg %p201
        $region90: #{lenet_forward.1} parent=75 // pred_check_branch
          %498 = sbr.rel (%p496) target = $region92
        $region91: #{lenet_forward.1} parent=75 // pred_region
          %499 = dma.done [#allocation9], 1536
        $region92: #{lenet_forward.1} parent=75 // pred_fallthru
          _
        // Predicated region
        $region93: #{lenet_forward.1} parent=75 // pred_check
          %p500 = pneg %p306
        $region94: #{lenet_forward.1} parent=75 // pred_check_branch
          %502 = sbr.rel (%p500) target = $region96
        $region95: #{lenet_forward.1} parent=75 // pred_region
          %503 = dma.done [#allocation9], 1408
        $region96: #{lenet_forward.1} parent=75 // pred_fallthru
          _
        %s504 = sand.u32 %s41, 1
        %s505 = scalar_lea.sflag [#allocation3], %s504
        %s506 = sand.u32 %s41, 1
        %s507 = smul.addr %s506, 256
        %s508 = scalar_lea.vmem [#allocation2], %s507
        %p509 = pneg %p54
        %p510 = pneg %p51
        %p511 = pneg %p75
        %p512 = pneg %p72
        %p513 = pneg %p96
        %p514 = pneg %p93
        %p515 = pneg %p117
        %p516 = pneg %p114
        %p517 = pneg %p138
        %p518 = pneg %p135
        %p519 = pneg %p159
        %p520 = pneg %p156
        %p521 = pneg %p180
        %p522 = pneg %p177
        %p523 = pneg %p201
        %p524 = pneg %p198
        %p525 = pneg %p222
        %p526 = pneg %p219
        %p527 = pneg %p243
        %p528 = pneg %p240
        %p529 = pneg %p264
        %p530 = pneg %p261
        %p531 = pneg %p285
        %p532 = pneg %p282
        %p533 = pneg %p306
        %p534 = pneg %p303
        %p535 = pneg %p327
        %p536 = pneg %p324
        %p537 = pneg %p353
        %p538 = pneg %p350
        %s539 = sand.u32 %s340, 1
        %s540 = scalar_lea.sflag [#allocation4], %s539
        %s541 = sand.u32 %s340, 1
        %s542 = smul.addr %s541, 8
        %s543 = scalar_lea.vmem [#allocation11], %s542
        %s544 = smul.u32 32, %s33
        %v545 = vld [vmem:[%s483] sm:$0xff]
        %v546 = vld [vmem:[%s483 + $0x8] sm:$0xff]
        %v547 = vld [vmem:[%s483 + $0x10] sm:$0xff]
        %v548 = vld [vmem:[%s483 + $0x18] sm:$0xff]
        %v549 = vld [vmem:[%s483 + $0x20] sm:$0xff]
        %v550 = vld [vmem:[%s483 + $0x28] sm:$0xff]
        %v551 = vld [vmem:[%s483 + $0x30] sm:$0xff]
        %v552 = vld [vmem:[%s483 + $0x38] sm:$0xff]
        %v553 = vld [vmem:[%s483 + $0x40] sm:$0xff]
        %v554 = vld [vmem:[%s483 + $0x48] sm:$0xff]
        %v555 = vld [vmem:[%s483 + $0x50] sm:$0xff]
        %v556 = vld [vmem:[%s483 + $0x58] sm:$0xff]
        %v557 = vld [vmem:[%s483 + $0x60] sm:$0xff]
        %v558 = vld [vmem:[%s483 + $0x68] sm:$0xff]
        %v559 = vld [vmem:[%s483 + $0x70] sm:$0xff]
        %v560 = vld [vmem:[%s483 + $0x78] sm:$0xff]
        %v561 = vld [vmem:[%s483 + $0x80] sm:$0xff]
        %v562 = vld [vmem:[%s483 + $0x88] sm:$0xff]
        %v563 = vld [vmem:[%s483 + $0x90] sm:$0xff]
        %v564 = vld [vmem:[%s483 + $0x98] sm:$0xff]
        %v565 = vld [vmem:[%s483 + $0xa0] sm:$0xff]
        %v566 = vld [vmem:[%s483 + $0xa8] sm:$0xff]
        %v567 = vld [vmem:[%s483 + $0xb0] sm:$0xff]
        %v568 = vld [vmem:[%s483 + $0xb8] sm:$0xff]
        %v569 = vld [vmem:[%s483 + $0xc0] sm:$0xff]
        %v570 = vld [vmem:[%s483 + $0xc8] sm:$0xff]
        %v571 = vld [vmem:[%s483 + $0xd0] sm:$0xff]
        %v572 = vld [vmem:[%s483 + $0xd8] sm:$0xff]
        %v573 = vld [vmem:[%s483 + $0xe0] sm:$0xff]
        %v574 = vld [vmem:[%s483 + $0xe8] sm:$0xff]
        %v575 = vld [vmem:[%s483 + $0xf0] sm:$0xff]
        %v576 = vld [vmem:[%s483 + $0xf8] sm:$0xff]
        %vm609 = vcmask 1046528
        %v610 = vrot.slane %v545, 1
        %v611 = vrot.slane %v546, 1
        %v612 = vsel %vm609, %v610, %v611
        %v613 = vrot.slane %v547, 1
        %v614 = vsel %vm609, %v611, %v613
        %v615 = vrot.slane %v548, 1
        %v616 = vsel %vm609, %v613, %v615
        %v617 = vrot.slane %v549, 1
        %v618 = vsel %vm609, %v615, %v617
        %v619 = vrot.slane %v550, 1
        %v620 = vsel %vm609, %v617, %v619
        %v621 = vrot.slane %v551, 1
        %v622 = vsel %vm609, %v619, %v621
        %v623 = vrot.slane %v552, 1
        %v624 = vsel %vm609, %v621, %v623
        %v625 = vrot.slane %v553, 1
        %v626 = vsel %vm609, %v623, %v625
        %v627 = vrot.slane %v554, 1
        %v628 = vsel %vm609, %v625, %v627
        %v629 = vrot.slane %v555, 1
        %v630 = vsel %vm609, %v627, %v629
        %v631 = vrot.slane %v556, 1
        %v632 = vsel %vm609, %v629, %v631
        %v633 = vrot.slane %v557, 1
        %v634 = vsel %vm609, %v631, %v633
        %v635 = vrot.slane %v558, 1
        %v636 = vsel %vm609, %v633, %v635
        %v637 = vrot.slane %v559, 1
        %v638 = vsel %vm609, %v635, %v637
        %v639 = vrot.slane %v560, 1
        %v640 = vsel %vm609, %v637, %v639
        %v641 = vrot.slane %v561, 1
        %v642 = vsel %vm609, %v639, %v641
        %v643 = vrot.slane %v562, 1
        %v644 = vsel %vm609, %v641, %v643
        %v645 = vrot.slane %v563, 1
        %v646 = vsel %vm609, %v643, %v645
        %v647 = vrot.slane %v564, 1
        %v648 = vsel %vm609, %v645, %v647
        %v649 = vrot.slane %v565, 1
        %v650 = vsel %vm609, %v647, %v649
        %v651 = vrot.slane %v566, 1
        %v652 = vsel %vm609, %v649, %v651
        %v653 = vrot.slane %v567, 1
        %v654 = vsel %vm609, %v651, %v653
        %v655 = vrot.slane %v568, 1
        %v656 = vsel %vm609, %v653, %v655
        %v657 = vrot.slane %v569, 1
        %v658 = vsel %vm609, %v655, %v657
        %v659 = vrot.slane %v570, 1
        %v660 = vsel %vm609, %v657, %v659
        %v661 = vrot.slane %v571, 1
        %v662 = vsel %vm609, %v659, %v661
        %v663 = vrot.slane %v572, 1
        %v664 = vsel %vm609, %v661, %v663
        %v665 = vrot.slane %v573, 1
        %v666 = vsel %vm609, %v663, %v665
        %v667 = vrot.slane %v574, 1
        %v668 = vsel %vm609, %v665, %v667
        %v669 = vrot.slane %v575, 1
        %v670 = vsel %vm609, %v667, %v669
        %v671 = vrot.slane %v576, 1
        %v672 = vsel %vm609, %v669, %v671
        %673 = vrot.lane.b32.xlu0 %v612, 32
        %v674 = vpop.permute.xlu0 %673
        %675 = vrot.lane.b32.xlu0 %v614, 32
        %v676 = vpop.permute.xlu0 %675
        %677 = vrot.lane.b32.xlu0 %v616, 32
        %v678 = vpop.permute.xlu0 %677
        %679 = vrot.lane.b32.xlu0 %v618, 32
        %v680 = vpop.permute.xlu0 %679
        %681 = vrot.lane.b32.xlu0 %v620, 32
        %v682 = vpop.permute.xlu0 %681
        %683 = vrot.lane.b32.xlu0 %v622, 32
        %v684 = vpop.permute.xlu0 %683
        %685 = vrot.lane.b32.xlu0 %v624, 32
        %v686 = vpop.permute.xlu0 %685
        %687 = vrot.lane.b32.xlu0 %v626, 32
        %v688 = vpop.permute.xlu0 %687
        %689 = vrot.lane.b32.xlu0 %v628, 32
        %v690 = vpop.permute.xlu0 %689
        %691 = vrot.lane.b32.xlu0 %v630, 32
        %v692 = vpop.permute.xlu0 %691
        %693 = vrot.lane.b32.xlu0 %v632, 32
        %v694 = vpop.permute.xlu0 %693
        %695 = vrot.lane.b32.xlu0 %v634, 32
        %v696 = vpop.permute.xlu0 %695
        %697 = vrot.lane.b32.xlu0 %v636, 32
        %v698 = vpop.permute.xlu0 %697
        %699 = vrot.lane.b32.xlu0 %v638, 32
        %v700 = vpop.permute.xlu0 %699
        %701 = vrot.lane.b32.xlu0 %v640, 32
        %v702 = vpop.permute.xlu0 %701
        %703 = vrot.lane.b32.xlu0 %v642, 32
        %v704 = vpop.permute.xlu0 %703
        %705 = vrot.lane.b32.xlu0 %v644, 32
        %v706 = vpop.permute.xlu0 %705
        %707 = vrot.lane.b32.xlu0 %v646, 32
        %v708 = vpop.permute.xlu0 %707
        %709 = vrot.lane.b32.xlu0 %v648, 32
        %v710 = vpop.permute.xlu0 %709
        %711 = vrot.lane.b32.xlu0 %v650, 32
        %v712 = vpop.permute.xlu0 %711
        %713 = vrot.lane.b32.xlu0 %v652, 32
        %v714 = vpop.permute.xlu0 %713
        %715 = vrot.lane.b32.xlu0 %v654, 32
        %v716 = vpop.permute.xlu0 %715
        %717 = vrot.lane.b32.xlu0 %v656, 32
        %v718 = vpop.permute.xlu0 %717
        %719 = vrot.lane.b32.xlu0 %v658, 32
        %v720 = vpop.permute.xlu0 %719
        %721 = vrot.lane.b32.xlu0 %v660, 32
        %v722 = vpop.permute.xlu0 %721
        %723 = vrot.lane.b32.xlu0 %v662, 32
        %v724 = vpop.permute.xlu0 %723
        %725 = vrot.lane.b32.xlu0 %v664, 32
        %v726 = vpop.permute.xlu0 %725
        %727 = vrot.lane.b32.xlu0 %v666, 32
        %v728 = vpop.permute.xlu0 %727
        %729 = vrot.lane.b32.xlu0 %v668, 32
        %v730 = vpop.permute.xlu0 %729
        %731 = vrot.lane.b32.xlu0 %v670, 32
        %v732 = vpop.permute.xlu0 %731
        %733 = vrot.lane.b32.xlu0 %v672, 32
        %v734 = vpop.permute.xlu0 %733
        %735 = vrot.lane.b32.xlu0 %v671, 32
        %v736 = vpop.permute.xlu0 %735
        %vm769 = vcmask 1045504
        %v770 = vrot.slane %v545, 2
        %v771 = vrot.slane %v546, 2
        %v772 = vsel %vm769, %v770, %v771
        %v773 = vrot.slane %v547, 2
        %v774 = vsel %vm769, %v771, %v773
        %v775 = vrot.slane %v548, 2
        %v776 = vsel %vm769, %v773, %v775
        %v777 = vrot.slane %v549, 2
        %v778 = vsel %vm769, %v775, %v777
        %v779 = vrot.slane %v550, 2
        %v780 = vsel %vm769, %v777, %v779
        %v781 = vrot.slane %v551, 2
        %v782 = vsel %vm769, %v779, %v781
        %v783 = vrot.slane %v552, 2
        %v784 = vsel %vm769, %v781, %v783
        %v785 = vrot.slane %v553, 2
        %v786 = vsel %vm769, %v783, %v785
        %v787 = vrot.slane %v554, 2
        %v788 = vsel %vm769, %v785, %v787
        %v789 = vrot.slane %v555, 2
        %v790 = vsel %vm769, %v787, %v789
        %v791 = vrot.slane %v556, 2
        %v792 = vsel %vm769, %v789, %v791
        %v793 = vrot.slane %v557, 2
        %v794 = vsel %vm769, %v791, %v793
        %v795 = vrot.slane %v558, 2
        %v796 = vsel %vm769, %v793, %v795
        %v797 = vrot.slane %v559, 2
        %v798 = vsel %vm769, %v795, %v797
        %v799 = vrot.slane %v560, 2
        %v800 = vsel %vm769, %v797, %v799
        %v801 = vrot.slane %v561, 2
        %v802 = vsel %vm769, %v799, %v801
        %v803 = vrot.slane %v562, 2
        %v804 = vsel %vm769, %v801, %v803
        %v805 = vrot.slane %v563, 2
        %v806 = vsel %vm769, %v803, %v805
        %v807 = vrot.slane %v564, 2
        %v808 = vsel %vm769, %v805, %v807
        %v809 = vrot.slane %v565, 2
        %v810 = vsel %vm769, %v807, %v809
        %v811 = vrot.slane %v566, 2
        %v812 = vsel %vm769, %v809, %v811
        %v813 = vrot.slane %v567, 2
        %v814 = vsel %vm769, %v811, %v813
        %v815 = vrot.slane %v568, 2
        %v816 = vsel %vm769, %v813, %v815
        %v817 = vrot.slane %v569, 2
        %v818 = vsel %vm769, %v815, %v817
        %v819 = vrot.slane %v570, 2
        %v820 = vsel %vm769, %v817, %v819
        %v821 = vrot.slane %v571, 2
        %v822 = vsel %vm769, %v819, %v821
        %v823 = vrot.slane %v572, 2
        %v824 = vsel %vm769, %v821, %v823
        %v825 = vrot.slane %v573, 2
        %v826 = vsel %vm769, %v823, %v825
        %v827 = vrot.slane %v574, 2
        %v828 = vsel %vm769, %v825, %v827
        %v829 = vrot.slane %v575, 2
        %v830 = vsel %vm769, %v827, %v829
        %v831 = vrot.slane %v576, 2
        %v832 = vsel %vm769, %v829, %v831
        %833 = vrot.lane.b32.xlu0 %v772, 64
        %v834 = vpop.permute.xlu0 %833
        %835 = vrot.lane.b32.xlu0 %v774, 64
        %v836 = vpop.permute.xlu0 %835
        %837 = vrot.lane.b32.xlu0 %v776, 64
        %v838 = vpop.permute.xlu0 %837
        %839 = vrot.lane.b32.xlu0 %v778, 64
        %v840 = vpop.permute.xlu0 %839
        %841 = vrot.lane.b32.xlu0 %v780, 64
        %v842 = vpop.permute.xlu0 %841
        %843 = vrot.lane.b32.xlu0 %v782, 64
        %v844 = vpop.permute.xlu0 %843
        %845 = vrot.lane.b32.xlu0 %v784, 64
        %v846 = vpop.permute.xlu0 %845
        %847 = vrot.lane.b32.xlu0 %v786, 64
        %v848 = vpop.permute.xlu0 %847
        %849 = vrot.lane.b32.xlu0 %v788, 64
        %v850 = vpop.permute.xlu0 %849
        %851 = vrot.lane.b32.xlu0 %v790, 64
        %v852 = vpop.permute.xlu0 %851
        %853 = vrot.lane.b32.xlu0 %v792, 64
        %v854 = vpop.permute.xlu0 %853
        %855 = vrot.lane.b32.xlu0 %v794, 64
        %v856 = vpop.permute.xlu0 %855
        %857 = vrot.lane.b32.xlu0 %v796, 64
        %v858 = vpop.permute.xlu0 %857
        %859 = vrot.lane.b32.xlu0 %v798, 64
        %v860 = vpop.permute.xlu0 %859
        %861 = vrot.lane.b32.xlu0 %v800, 64
        %v862 = vpop.permute.xlu0 %861
        %863 = vrot.lane.b32.xlu0 %v802, 64
        %v864 = vpop.permute.xlu0 %863
        %865 = vrot.lane.b32.xlu0 %v804, 64
        %v866 = vpop.permute.xlu0 %865
        %867 = vrot.lane.b32.xlu0 %v806, 64
        %v868 = vpop.permute.xlu0 %867
        %869 = vrot.lane.b32.xlu0 %v808, 64
        %v870 = vpop.permute.xlu0 %869
        %871 = vrot.lane.b32.xlu0 %v810, 64
        %v872 = vpop.permute.xlu0 %871
        %873 = vrot.lane.b32.xlu0 %v812, 64
        %v874 = vpop.permute.xlu0 %873
        %875 = vrot.lane.b32.xlu0 %v814, 64
        %v876 = vpop.permute.xlu0 %875
        %877 = vrot.lane.b32.xlu0 %v816, 64
        %v878 = vpop.permute.xlu0 %877
        %879 = vrot.lane.b32.xlu0 %v818, 64
        %v880 = vpop.permute.xlu0 %879
        %881 = vrot.lane.b32.xlu0 %v820, 64
        %v882 = vpop.permute.xlu0 %881
        %883 = vrot.lane.b32.xlu0 %v822, 64
        %v884 = vpop.permute.xlu0 %883
        %885 = vrot.lane.b32.xlu0 %v824, 64
        %v886 = vpop.permute.xlu0 %885
        %887 = vrot.lane.b32.xlu0 %v826, 64
        %v888 = vpop.permute.xlu0 %887
        %889 = vrot.lane.b32.xlu0 %v828, 64
        %v890 = vpop.permute.xlu0 %889
        %891 = vrot.lane.b32.xlu0 %v830, 64
        %v892 = vpop.permute.xlu0 %891
        %893 = vrot.lane.b32.xlu0 %v832, 64
        %v894 = vpop.permute.xlu0 %893
        %895 = vrot.lane.b32.xlu0 %v831, 64
        %v896 = vpop.permute.xlu0 %895
        %vm929 = vcmask 261120
        %v930 = vsel %vm929, %v545, %v674
        %v931 = vsel %vm929, %v546, %v676
        %v932 = vsel %vm929, %v547, %v678
        %v933 = vsel %vm929, %v548, %v680
        %v934 = vsel %vm929, %v549, %v682
        %v935 = vsel %vm929, %v550, %v684
        %v936 = vsel %vm929, %v551, %v686
        %v937 = vsel %vm929, %v552, %v688
        %v938 = vsel %vm929, %v553, %v690
        %v939 = vsel %vm929, %v554, %v692
        %v940 = vsel %vm929, %v555, %v694
        %v941 = vsel %vm929, %v556, %v696
        %v942 = vsel %vm929, %v557, %v698
        %v943 = vsel %vm929, %v558, %v700
        %v944 = vsel %vm929, %v559, %v702
        %v945 = vsel %vm929, %v560, %v704
        %v946 = vsel %vm929, %v561, %v706
        %v947 = vsel %vm929, %v562, %v708
        %v948 = vsel %vm929, %v563, %v710
        %v949 = vsel %vm929, %v564, %v712
        %v950 = vsel %vm929, %v565, %v714
        %v951 = vsel %vm929, %v566, %v716
        %v952 = vsel %vm929, %v567, %v718
        %v953 = vsel %vm929, %v568, %v720
        %v954 = vsel %vm929, %v569, %v722
        %v955 = vsel %vm929, %v570, %v724
        %v956 = vsel %vm929, %v571, %v726
        %v957 = vsel %vm929, %v572, %v728
        %v958 = vsel %vm929, %v573, %v730
        %v959 = vsel %vm929, %v574, %v732
        %v960 = vsel %vm929, %v575, %v734
        %v961 = vsel %vm929, %v576, %v736
        %vm962 = vcmask 523264
        %v963 = vsel %vm962, %v930, %v834
        %v964 = vsel %vm962, %v931, %v836
        %v965 = vsel %vm962, %v932, %v838
        %v966 = vsel %vm962, %v933, %v840
        %v967 = vsel %vm962, %v934, %v842
        %v968 = vsel %vm962, %v935, %v844
        %v969 = vsel %vm962, %v936, %v846
        %v970 = vsel %vm962, %v937, %v848
        %v971 = vsel %vm962, %v938, %v850
        %v972 = vsel %vm962, %v939, %v852
        %v973 = vsel %vm962, %v940, %v854
        %v974 = vsel %vm962, %v941, %v856
        %v975 = vsel %vm962, %v942, %v858
        %v976 = vsel %vm962, %v943, %v860
        %v977 = vsel %vm962, %v944, %v862
        %v978 = vsel %vm962, %v945, %v864
        %v979 = vsel %vm962, %v946, %v866
        %v980 = vsel %vm962, %v947, %v868
        %v981 = vsel %vm962, %v948, %v870
        %v982 = vsel %vm962, %v949, %v872
        %v983 = vsel %vm962, %v950, %v874
        %v984 = vsel %vm962, %v951, %v876
        %v985 = vsel %vm962, %v952, %v878
        %v986 = vsel %vm962, %v953, %v880
        %v987 = vsel %vm962, %v954, %v882
        %v988 = vsel %vm962, %v955, %v884
        %v989 = vsel %vm962, %v956, %v886
        %v990 = vsel %vm962, %v957, %v888
        %v991 = vsel %vm962, %v958, %v890
        %v992 = vsel %vm962, %v959, %v892
        %v993 = vsel %vm962, %v960, %v894
        %v994 = vsel %vm962, %v961, %v896
        %v995 = vld [vmem:[%s1] sm:$0xff]
        %v996 = vld [vmem:[%s1 + $0x8] sm:$0xff]
        %v997 = vld [vmem:[%s1 + $0x10] sm:$0xff]
        %v998 = vld [vmem:[%s1 + $0x18] sm:$0xff]
        %v999 = vld [vmem:[%s1 + $0x20] sm:$0xff]
        %v1000 = vld [vmem:[%s1 + $0x28] sm:$0xff]
        %v1001 = vld [vmem:[%s1 + $0x30] sm:$0xff]
        %v1002 = vld [vmem:[%s1 + $0x38] sm:$0xff]
        %v1003 = vld [vmem:[%s1 + $0x40] sm:$0xff]
        %v1004 = vld [vmem:[%s1 + $0x48] sm:$0xff]
        %v1005 = vld [vmem:[%s1 + $0x50] sm:$0xff]
        %v1006 = vld [vmem:[%s1 + $0x58] sm:$0xff]
        %v1007 = vld [vmem:[%s1 + $0x60] sm:$0xff]
        %v1008 = vld [vmem:[%s1 + $0x68] sm:$0xff]
        %v1009 = vld [vmem:[%s1 + $0x70] sm:$0xff]
        %v1010 = vld [vmem:[%s1 + $0x78] sm:$0xff]
        %v1011 = vld [vmem:[%s1 + $0x80] sm:$0xff]
        %v1012 = vld [vmem:[%s1 + $0x88] sm:$0xff]
        %v1013 = vld [vmem:[%s1 + $0x90] sm:$0xff]
        %v1014 = vld [vmem:[%s1 + $0x98] sm:$0xff]
        %v1015 = vld [vmem:[%s1 + $0xa0] sm:$0xff]
        %v1016 = vld [vmem:[%s1 + $0xa8] sm:$0xff]
        %v1017 = vld [vmem:[%s1 + $0xb0] sm:$0xff]
        %v1018 = vld [vmem:[%s1 + $0xb8] sm:$0xff]
        %v1019 = vld [vmem:[%s2] sm:$0x3]
        %v1021 = vlaneseq
        %v1022 = vshrl.u32 %v1021, 7
        %v1023 = vsub.s32 0, %v1022
        %v1024 = vrot.slane %v1019, %v1023
        %v1025 = vlaneseq
        %v1026 = vshrl.u32 %v1025, 7
        %v1027 = vsub.s32 1, %v1026
        %v1028 = vrot.slane %v1019, %v1027
        %vm1031 = vcmask 785408
        %v1033 = vsel %vm1031, %v963, 0
        %v1036 = vsel %vm1031, %v964, 0
        %v1039 = vsel %vm1031, %v965, 0
        %v1042 = vsel %vm1031, %v966, 0
        %v1045 = vsel %vm1031, %v967, 0
        %v1048 = vsel %vm1031, %v968, 0
        %v1051 = vsel %vm1031, %v969, 0
        %v1054 = vsel %vm1031, %v970, 0
        %v1057 = vsel %vm1031, %v971, 0
        %v1060 = vsel %vm1031, %v972, 0
        %v1063 = vsel %vm1031, %v973, 0
        %v1066 = vsel %vm1031, %v974, 0
        %v1069 = vsel %vm1031, %v975, 0
        %v1072 = vsel %vm1031, %v976, 0
        %v1075 = vsel %vm1031, %v977, 0
        %v1078 = vsel %vm1031, %v978, 0
        %v1081 = vsel %vm1031, %v979, 0
        %v1084 = vsel %vm1031, %v980, 0
        %v1087 = vsel %vm1031, %v981, 0
        %v1090 = vsel %vm1031, %v982, 0
        %v1093 = vsel %vm1031, %v983, 0
        %v1096 = vsel %vm1031, %v984, 0
        %v1099 = vsel %vm1031, %v985, 0
        %v1102 = vsel %vm1031, %v986, 0
        %v1105 = vsel %vm1031, %v987, 0
        %v1108 = vsel %vm1031, %v988, 0
        %v1111 = vsel %vm1031, %v989, 0
        %v1114 = vsel %vm1031, %v990, 0
        %v1117 = vsel %vm1031, %v991, 0
        %v1120 = vsel %vm1031, %v992, 0
        %v1123 = vsel %vm1031, %v993, 0
        %v1126 = vsel %vm1031, %v994, 0
        %1128 = vmatprep.subr.mxu0 %v996
        %1129 = vmatpush1.msra.mxu0 %v995
        %1130 = vmatprep.subr.mxu0 %v998
        %1131 = vmatpush1.msra.mxu0 %v997
        %1132 = vmatprep.subr.mxu0 %v1000
        %1133 = vmatpush1.msra.mxu0 %v999
        %1134 = vmatprep.subr.mxu0 %v1002
        %1135 = vmatpush1.msra.mxu0 %v1001
        %1136 = vmatprep.subr.mxu0 %v1004
        %1137 = vmatpush1.msra.mxu0 %v1003
        %1138 = vmatprep.subr.mxu0 %v1006
        %1139 = vmatpush1.msra.mxu0 %v1005
        %1140 = vmatprep.subr.mxu0 %v1008
        %1141 = vmatpush1.msra.mxu0 %v1007
        %1142 = vmatprep.subr.mxu0 %v1010
        %1143 = vmatpush1.msra.mxu0 %v1009
        %1144 = vmatprep.subr.mxu0 %v1012
        %1145 = vmatpush1.msra.mxu0 %v1011
        %1146 = vmatprep.subr.mxu0 %v1014
        %1147 = vmatpush1.msra.mxu0 %v1013
        %1148 = vmatprep.subr.mxu0 %v1016
        %1149 = vmatpush1.msra.mxu0 %v1015
        %1150 = vmatprep.subr.mxu0 %v1018
        %1151 = vmatpush1.msra.mxu0 %v1017
        %1152 = vmatprep.subr.mxu0 0.0
        %1153 = vmatpush1.msra.mxu0 0.0
        %1154 = vmatprep.subr.mxu0 0.0
        %1155 = vmatpush1.msra.mxu0 0.0
        %1156 = vmatprep.subr.mxu0 0.0
        %1157 = vmatpush1.msra.mxu0 0.0
        %1158 = vmatprep.subr.mxu0 0.0
        %1159 = vmatpush1.msra.mxu0 0.0
        %1160 = vmatprep.subr.mxu0 0.0
        %1161 = vmatpush1.msra.mxu0 0.0
        %1162 = vmatprep.subr.mxu0 0.0
        %1163 = vmatpush1.msra.mxu0 0.0
        %1164 = vmatprep.subr.mxu0 0.0
        %1165 = vmatpush1.msra.mxu0 0.0
        %1166 = vmatprep.subr.mxu0 0.0
        %1167 = vmatpush1.msra.mxu0 0.0
        %1168 = vmatprep.subr.mxu0 0.0
        %1169 = vmatpush1.msra.mxu0 0.0
        %1170 = vmatprep.subr.mxu0 0.0
        %1171 = vmatpush1.msra.mxu0 0.0
        %1172 = vmatprep.subr.mxu0 0.0
        %1173 = vmatpush1.msra.mxu0 0.0
        %1174 = vmatprep.subr.mxu0 0.0
        %1175 = vmatpush1.msra.mxu0 0.0
        %1176 = vmatprep.subr.mxu0 0.0
        %1177 = vmatpush1.msra.mxu0 0.0
        %1178 = vmatprep.subr.mxu0 0.0
        %1179 = vmatpush1.msra.mxu0 0.0
        %1180 = vmatprep.subr.mxu0 0.0
        %1181 = vmatpush1.msra.mxu0 0.0
        %1182 = vmatprep.subr.mxu0 0.0
        %1183 = vmatpush1.msra.mxu0 0.0
        %1184 = vmatprep.subr.mxu0 0.0
        %1185 = vmatpush1.msra.mxu0 0.0
        %1186 = vmatprep.subr.mxu0 0.0
        %1187 = vmatpush1.msra.mxu0 0.0
        %1188 = vmatprep.subr.mxu0 0.0
        %1189 = vmatpush1.msra.mxu0 0.0
        %1190 = vmatprep.subr.mxu0 0.0
        %1191 = vmatpush1.msra.mxu0 0.0
        %1192 = vmatprep.mubr.f32.mxu0 0.0
        %1193 = vmatmul.mubr.f32.gmra.mrb[0].mxu0 %v1033
        %v1194 = vpop.f32.mrb[0].mxu0
        %v1195 = vadd.f32 %v1024, %v1194
        %v1196 = vpop.f32.mrb[0].mxu0
        %v1197 = vadd.f32 %v1028, %v1196
        %1198 = vmatprep.mubr.f32.mxu0 0.0
        %1199 = vmatmul.mubr.f32.gmra.mrb[0].mxu0 %v1036
        %v1200 = vpop.f32.mrb[0].mxu0
        %v1201 = vadd.f32 %v1024, %v1200
        %v1202 = vpop.f32.mrb[0].mxu0
        %v1203 = vadd.f32 %v1028, %v1202
        %1204 = vmatprep.mubr.f32.mxu0 0.0
        %1205 = vmatmul.mubr.f32.gmra.mrb[0].mxu0 %v1039
        %v1206 = vpop.f32.mrb[0].mxu0
        %v1207 = vadd.f32 %v1024, %v1206
        %v1208 = vpop.f32.mrb[0].mxu0
        %v1209 = vadd.f32 %v1028, %v1208
        %1210 = vmatprep.mubr.f32.mxu0 0.0
        %1211 = vmatmul.mubr.f32.gmra.mrb[0].mxu0 %v1042
        %v1212 = vpop.f32.mrb[0].mxu0
        %v1213 = vadd.f32 %v1024, %v1212
        %v1214 = vpop.f32.mrb[0].mxu0
        %v1215 = vadd.f32 %v1028, %v1214
        %1216 = vmatprep.mubr.f32.mxu0 0.0
        %1217 = vmatmul.mubr.f32.gmra.mrb[0].mxu0 %v1045
        %v1218 = vpop.f32.mrb[0].mxu0
        %v1219 = vadd.f32 %v1024, %v1218
        %v1220 = vpop.f32.mrb[0].mxu0
        %v1221 = vadd.f32 %v1028, %v1220
        %1222 = vmatprep.mubr.f32.mxu0 0.0
        %1223 = vmatmul.mubr.f32.gmra.mrb[0].mxu0 %v1048
        %v1224 = vpop.f32.mrb[0].mxu0
        %v1225 = vadd.f32 %v1024, %v1224
        %v1226 = vpop.f32.mrb[0].mxu0
        %v1227 = vadd.f32 %v1028, %v1226
        %1228 = vmatprep.mubr.f32.mxu0 0.0
        %1229 = vmatmul.mubr.f32.gmra.mrb[0].mxu0 %v1051
        %v1230 = vpop.f32.mrb[0].mxu0
        %v1231 = vadd.f32 %v1024, %v1230
        %v1232 = vpop.f32.mrb[0].mxu0
        %v1233 = vadd.f32 %v1028, %v1232
        %1234 = vmatprep.mubr.f32.mxu0 0.0
        %1235 = vmatmul.mubr.f32.gmra.mrb[0].mxu0 %v1054
        %v1236 = vpop.f32.mrb[0].mxu0
        %v1237 = vadd.f32 %v1024, %v1236
        %v1238 = vpop.f32.mrb[0].mxu0
        %v1239 = vadd.f32 %v1028, %v1238
        %1240 = vmatprep.mubr.f32.mxu0 0.0
        %1241 = vmatmul.mubr.f32.gmra.mrb[0].mxu0 %v1057
        %v1242 = vpop.f32.mrb[0].mxu0
        %v1243 = vadd.f32 %v1024, %v1242
        %v1244 = vpop.f32.mrb[0].mxu0
        %v1245 = vadd.f32 %v1028, %v1244
        %1246 = vmatprep.mubr.f32.mxu0 0.0
        %1247 = vmatmul.mubr.f32.gmra.mrb[0].mxu0 %v1060
        %v1248 = vpop.f32.mrb[0].mxu0
        %v1249 = vadd.f32 %v1024, %v1248
        %v1250 = vpop.f32.mrb[0].mxu0
        %v1251 = vadd.f32 %v1028, %v1250
        %1252 = vmatprep.mubr.f32.mxu0 0.0
        %1253 = vmatmul.mubr.f32.gmra.mrb[0].mxu0 %v1063
        %v1254 = vpop.f32.mrb[0].mxu0
        %v1255 = vadd.f32 %v1024, %v1254
        %v1256 = vpop.f32.mrb[0].mxu0
        %v1257 = vadd.f32 %v1028, %v1256
        %1258 = vmatprep.mubr.f32.mxu0 0.0
        %1259 = vmatmul.mubr.f32.gmra.mrb[0].mxu0 %v1066
        %v1260 = vpop.f32.mrb[0].mxu0
        %v1261 = vadd.f32 %v1024, %v1260
        %v1262 = vpop.f32.mrb[0].mxu0
        %v1263 = vadd.f32 %v1028, %v1262
        %1264 = vmatprep.mubr.f32.mxu0 0.0
        %1265 = vmatmul.mubr.f32.gmra.mrb[0].mxu0 %v1069
        %v1266 = vpop.f32.mrb[0].mxu0
        %v1267 = vadd.f32 %v1024, %v1266
        %v1268 = vpop.f32.mrb[0].mxu0
        %v1269 = vadd.f32 %v1028, %v1268
        %1270 = vmatprep.mubr.f32.mxu0 0.0
        %1271 = vmatmul.mubr.f32.gmra.mrb[0].mxu0 %v1072
        %v1272 = vpop.f32.mrb[0].mxu0
        %v1273 = vadd.f32 %v1024, %v1272
        %v1274 = vpop.f32.mrb[0].mxu0
        %v1275 = vadd.f32 %v1028, %v1274
        %1276 = vmatprep.mubr.f32.mxu0 0.0
        %1277 = vmatmul.mubr.f32.gmra.mrb[0].mxu0 %v1075
        %v1278 = vpop.f32.mrb[0].mxu0
        %v1279 = vadd.f32 %v1024, %v1278
        %v1280 = vpop.f32.mrb[0].mxu0
        %v1281 = vadd.f32 %v1028, %v1280
        %1282 = vmatprep.mubr.f32.mxu0 0.0
        %1283 = vmatmul.mubr.f32.gmra.mrb[0].mxu0 %v1078
        %v1284 = vpop.f32.mrb[0].mxu0
        %v1285 = vadd.f32 %v1024, %v1284
        %v1286 = vpop.f32.mrb[0].mxu0
        %v1287 = vadd.f32 %v1028, %v1286
        %1288 = vmatprep.mubr.f32.mxu0 0.0
        %1289 = vmatmul.mubr.f32.gmra.mrb[0].mxu0 %v1081
        %v1290 = vpop.f32.mrb[0].mxu0
        %v1291 = vadd.f32 %v1024, %v1290
        %v1292 = vpop.f32.mrb[0].mxu0
        %v1293 = vadd.f32 %v1028, %v1292
        %1294 = vmatprep.mubr.f32.mxu0 0.0
        %1295 = vmatmul.mubr.f32.gmra.mrb[0].mxu0 %v1084
        %v1296 = vpop.f32.mrb[0].mxu0
        %v1297 = vadd.f32 %v1024, %v1296
        %v1298 = vpop.f32.mrb[0].mxu0
        %v1299 = vadd.f32 %v1028, %v1298
        %1300 = vmatprep.mubr.f32.mxu0 0.0
        %1301 = vmatmul.mubr.f32.gmra.mrb[0].mxu0 %v1087
        %v1302 = vpop.f32.mrb[0].mxu0
        %v1303 = vadd.f32 %v1024, %v1302
        %v1304 = vpop.f32.mrb[0].mxu0
        %v1305 = vadd.f32 %v1028, %v1304
        %1306 = vmatprep.mubr.f32.mxu0 0.0
        %1307 = vmatmul.mubr.f32.gmra.mrb[0].mxu0 %v1090
        %v1308 = vpop.f32.mrb[0].mxu0
        %v1309 = vadd.f32 %v1024, %v1308
        %v1310 = vpop.f32.mrb[0].mxu0
        %v1311 = vadd.f32 %v1028, %v1310
        %1312 = vmatprep.mubr.f32.mxu0 0.0
        %1313 = vmatmul.mubr.f32.gmra.mrb[0].mxu0 %v1093
        %v1314 = vpop.f32.mrb[0].mxu0
        %v1315 = vadd.f32 %v1024, %v1314
        %v1316 = vpop.f32.mrb[0].mxu0
        %v1317 = vadd.f32 %v1028, %v1316
        %1318 = vmatprep.mubr.f32.mxu0 0.0
        %1319 = vmatmul.mubr.f32.gmra.mrb[0].mxu0 %v1096
        %v1320 = vpop.f32.mrb[0].mxu0
        %v1321 = vadd.f32 %v1024, %v1320
        %v1322 = vpop.f32.mrb[0].mxu0
        %v1323 = vadd.f32 %v1028, %v1322
        %1324 = vmatprep.mubr.f32.mxu0 0.0
        %1325 = vmatmul.mubr.f32.gmra.mrb[0].mxu0 %v1099
        %v1326 = vpop.f32.mrb[0].mxu0
        %v1327 = vadd.f32 %v1024, %v1326
        %v1328 = vpop.f32.mrb[0].mxu0
        %v1329 = vadd.f32 %v1028, %v1328
        %1330 = vmatprep.mubr.f32.mxu0 0.0
        %1331 = vmatmul.mubr.f32.gmra.mrb[0].mxu0 %v1102
        %v1332 = vpop.f32.mrb[0].mxu0
        %v1333 = vadd.f32 %v1024, %v1332
        %v1334 = vpop.f32.mrb[0].mxu0
        %v1335 = vadd.f32 %v1028, %v1334
        %1336 = vmatprep.mubr.f32.mxu0 0.0
        %1337 = vmatmul.mubr.f32.gmra.mrb[0].mxu0 %v1105
        %v1338 = vpop.f32.mrb[0].mxu0
        %v1339 = vadd.f32 %v1024, %v1338
        %v1340 = vpop.f32.mrb[0].mxu0
        %v1341 = vadd.f32 %v1028, %v1340
        %1342 = vmatprep.mubr.f32.mxu0 0.0
        %1343 = vmatmul.mubr.f32.gmra.mrb[0].mxu0 %v1108
        %v1344 = vpop.f32.mrb[0].mxu0
        %v1345 = vadd.f32 %v1024, %v1344
        %v1346 = vpop.f32.mrb[0].mxu0
        %v1347 = vadd.f32 %v1028, %v1346
        %1348 = vmatprep.mubr.f32.mxu0 0.0
        %1349 = vmatmul.mubr.f32.gmra.mrb[0].mxu0 %v1111
        %v1350 = vpop.f32.mrb[0].mxu0
        %v1351 = vadd.f32 %v1024, %v1350
        %v1352 = vpop.f32.mrb[0].mxu0
        %v1353 = vadd.f32 %v1028, %v1352
        %1354 = vmatprep.mubr.f32.mxu0 0.0
        %1355 = vmatmul.mubr.f32.gmra.mrb[0].mxu0 %v1114
        %v1356 = vpop.f32.mrb[0].mxu0
        %v1357 = vadd.f32 %v1024, %v1356
        %v1358 = vpop.f32.mrb[0].mxu0
        %v1359 = vadd.f32 %v1028, %v1358
        %1360 = vmatprep.mubr.f32.mxu0 0.0
        %1361 = vmatmul.mubr.f32.gmra.mrb[0].mxu0 %v1117
        %v1362 = vpop.f32.mrb[0].mxu0
        %v1363 = vadd.f32 %v1024, %v1362
        %v1364 = vpop.f32.mrb[0].mxu0
        %v1365 = vadd.f32 %v1028, %v1364
        %1366 = vmatprep.mubr.f32.mxu0 0.0
        %1367 = vmatmul.mubr.f32.gmra.mrb[0].mxu0 %v1120
        %v1368 = vpop.f32.mrb[0].mxu0
        %v1369 = vadd.f32 %v1024, %v1368
        %v1370 = vpop.f32.mrb[0].mxu0
        %v1371 = vadd.f32 %v1028, %v1370
        %1372 = vmatprep.mubr.f32.mxu0 0.0
        %1373 = vmatmul.mubr.f32.gmra.mrb[0].mxu0 %v1123
        %v1374 = vpop.f32.mrb[0].mxu0
        %v1375 = vadd.f32 %v1024, %v1374
        %v1376 = vpop.f32.mrb[0].mxu0
        %v1377 = vadd.f32 %v1028, %v1376
        %1378 = vmatprep.mubr.f32.mxu0 0.0
        %1379 = vmatmul.mubr.f32.gmra.mrb[0].mxu0 %v1126
        %v1380 = vpop.f32.mrb[0].mxu0
        %v1381 = vadd.f32 %v1024, %v1380
        %v1382 = vpop.f32.mrb[0].mxu0
        %v1383 = vadd.f32 %v1028, %v1382
        %1384 = vdwg.mxu0
        %v1385 = vmax.f32 %v1195, 0.0
        %v1386 = vmax.f32 %v1197, 0.0
        %v1387 = vmax.f32 %v1201, 0.0
        %v1388 = vmax.f32 %v1203, 0.0
        %v1389 = vmax.f32 %v1207, 0.0
        %v1390 = vmax.f32 %v1209, 0.0
        %v1391 = vmax.f32 %v1213, 0.0
        %v1392 = vmax.f32 %v1215, 0.0
        %v1393 = vmax.f32 %v1219, 0.0
        %v1394 = vmax.f32 %v1221, 0.0
        %v1395 = vmax.f32 %v1225, 0.0
        %v1396 = vmax.f32 %v1227, 0.0
        %v1397 = vmax.f32 %v1231, 0.0
        %v1398 = vmax.f32 %v1233, 0.0
        %v1399 = vmax.f32 %v1237, 0.0
        %v1400 = vmax.f32 %v1239, 0.0
        %v1401 = vmax.f32 %v1243, 0.0
        %v1402 = vmax.f32 %v1245, 0.0
        %v1403 = vmax.f32 %v1249, 0.0
        %v1404 = vmax.f32 %v1251, 0.0
        %v1405 = vmax.f32 %v1255, 0.0
        %v1406 = vmax.f32 %v1257, 0.0
        %v1407 = vmax.f32 %v1261, 0.0
        %v1408 = vmax.f32 %v1263, 0.0
        %v1409 = vmax.f32 %v1267, 0.0
        %v1410 = vmax.f32 %v1269, 0.0
        %v1411 = vmax.f32 %v1273, 0.0
        %v1412 = vmax.f32 %v1275, 0.0
        %v1413 = vmax.f32 %v1279, 0.0
        %v1414 = vmax.f32 %v1281, 0.0
        %v1415 = vmax.f32 %v1285, 0.0
        %v1416 = vmax.f32 %v1287, 0.0
        %v1417 = vmax.f32 %v1291, 0.0
        %v1418 = vmax.f32 %v1293, 0.0
        %v1419 = vmax.f32 %v1297, 0.0
        %v1420 = vmax.f32 %v1299, 0.0
        %v1421 = vmax.f32 %v1303, 0.0
        %v1422 = vmax.f32 %v1305, 0.0
        %v1423 = vmax.f32 %v1309, 0.0
        %v1424 = vmax.f32 %v1311, 0.0
        %v1425 = vmax.f32 %v1315, 0.0
        %v1426 = vmax.f32 %v1317, 0.0
        %v1427 = vmax.f32 %v1321, 0.0
        %v1428 = vmax.f32 %v1323, 0.0
        %v1429 = vmax.f32 %v1327, 0.0
        %v1430 = vmax.f32 %v1329, 0.0
        %v1431 = vmax.f32 %v1333, 0.0
        %v1432 = vmax.f32 %v1335, 0.0
        %v1433 = vmax.f32 %v1339, 0.0
        %v1434 = vmax.f32 %v1341, 0.0
        %v1435 = vmax.f32 %v1345, 0.0
        %v1436 = vmax.f32 %v1347, 0.0
        %v1437 = vmax.f32 %v1351, 0.0
        %v1438 = vmax.f32 %v1353, 0.0
        %v1439 = vmax.f32 %v1357, 0.0
        %v1440 = vmax.f32 %v1359, 0.0
        %v1441 = vmax.f32 %v1363, 0.0
        %v1442 = vmax.f32 %v1365, 0.0
        %v1443 = vmax.f32 %v1369, 0.0
        %v1444 = vmax.f32 %v1371, 0.0
        %v1445 = vmax.f32 %v1375, 0.0
        %v1446 = vmax.f32 %v1377, 0.0
        %v1447 = vmax.f32 %v1381, 0.0
        %v1448 = vmax.f32 %v1383, 0.0
        %v1513 = vrot.slane %v1385, 1
        %v1514 = vrot.slane %v1387, 1
        %v1515 = vsel %vm609, %v1513, %v1514
        %v1516 = vrot.slane %v1386, 1
        %v1517 = vrot.slane %v1388, 1
        %v1518 = vsel %vm609, %v1516, %v1517
        %v1519 = vrot.slane %v1389, 1
        %v1520 = vsel %vm609, %v1514, %v1519
        %v1521 = vrot.slane %v1390, 1
        %v1522 = vsel %vm609, %v1517, %v1521
        %v1523 = vrot.slane %v1391, 1
        %v1524 = vsel %vm609, %v1519, %v1523
        %v1525 = vrot.slane %v1392, 1
        %v1526 = vsel %vm609, %v1521, %v1525
        %v1527 = vrot.slane %v1393, 1
        %v1528 = vsel %vm609, %v1523, %v1527
        %v1529 = vrot.slane %v1394, 1
        %v1530 = vsel %vm609, %v1525, %v1529
        %v1531 = vrot.slane %v1395, 1
        %v1532 = vsel %vm609, %v1527, %v1531
        %v1533 = vrot.slane %v1396, 1
        %v1534 = vsel %vm609, %v1529, %v1533
        %v1535 = vrot.slane %v1397, 1
        %v1536 = vsel %vm609, %v1531, %v1535
        %v1537 = vrot.slane %v1398, 1
        %v1538 = vsel %vm609, %v1533, %v1537
        %v1539 = vrot.slane %v1399, 1
        %v1540 = vsel %vm609, %v1535, %v1539
        %v1541 = vrot.slane %v1400, 1
        %v1542 = vsel %vm609, %v1537, %v1541
        %v1543 = vrot.slane %v1401, 1
        %v1544 = vsel %vm609, %v1539, %v1543
        %v1545 = vrot.slane %v1402, 1
        %v1546 = vsel %vm609, %v1541, %v1545
        %v1547 = vrot.slane %v1403, 1
        %v1548 = vsel %vm609, %v1543, %v1547
        %v1549 = vrot.slane %v1404, 1
        %v1550 = vsel %vm609, %v1545, %v1549
        %v1551 = vrot.slane %v1405, 1
        %v1552 = vsel %vm609, %v1547, %v1551
        %v1553 = vrot.slane %v1406, 1
        %v1554 = vsel %vm609, %v1549, %v1553
        %v1555 = vrot.slane %v1407, 1
        %v1556 = vsel %vm609, %v1551, %v1555
        %v1557 = vrot.slane %v1408, 1
        %v1558 = vsel %vm609, %v1553, %v1557
        %v1559 = vrot.slane %v1409, 1
        %v1560 = vsel %vm609, %v1555, %v1559
        %v1561 = vrot.slane %v1410, 1
        %v1562 = vsel %vm609, %v1557, %v1561
        %v1563 = vrot.slane %v1411, 1
        %v1564 = vsel %vm609, %v1559, %v1563
        %v1565 = vrot.slane %v1412, 1
        %v1566 = vsel %vm609, %v1561, %v1565
        %v1567 = vrot.slane %v1413, 1
        %v1568 = vsel %vm609, %v1563, %v1567
        %v1569 = vrot.slane %v1414, 1
        %v1570 = vsel %vm609, %v1565, %v1569
        %v1571 = vrot.slane %v1415, 1
        %v1572 = vsel %vm609, %v1567, %v1571
        %v1573 = vrot.slane %v1416, 1
        %v1574 = vsel %vm609, %v1569, %v1573
        %v1575 = vrot.slane %v1417, 1
        %v1576 = vsel %vm609, %v1571, %v1575
        %v1577 = vrot.slane %v1418, 1
        %v1578 = vsel %vm609, %v1573, %v1577
        %v1579 = vrot.slane %v1419, 1
        %v1580 = vsel %vm609, %v1575, %v1579
        %v1581 = vrot.slane %v1420, 1
        %v1582 = vsel %vm609, %v1577, %v1581
        %v1583 = vrot.slane %v1421, 1
        %v1584 = vsel %vm609, %v1579, %v1583
        %v1585 = vrot.slane %v1422, 1
        %v1586 = vsel %vm609, %v1581, %v1585
        %v1587 = vrot.slane %v1423, 1
        %v1588 = vsel %vm609, %v1583, %v1587
        %v1589 = vrot.slane %v1424, 1
        %v1590 = vsel %vm609, %v1585, %v1589
        %v1591 = vrot.slane %v1425, 1
        %v1592 = vsel %vm609, %v1587, %v1591
        %v1593 = vrot.slane %v1426, 1
        %v1594 = vsel %vm609, %v1589, %v1593
        %v1595 = vrot.slane %v1427, 1
        %v1596 = vsel %vm609, %v1591, %v1595
        %v1597 = vrot.slane %v1428, 1
        %v1598 = vsel %vm609, %v1593, %v1597
        %v1599 = vrot.slane %v1429, 1
        %v1600 = vsel %vm609, %v1595, %v1599
        %v1601 = vrot.slane %v1430, 1
        %v1602 = vsel %vm609, %v1597, %v1601
        %v1603 = vrot.slane %v1431, 1
        %v1604 = vsel %vm609, %v1599, %v1603
        %v1605 = vrot.slane %v1432, 1
        %v1606 = vsel %vm609, %v1601, %v1605
        %v1607 = vrot.slane %v1433, 1
        %v1608 = vsel %vm609, %v1603, %v1607
        %v1609 = vrot.slane %v1434, 1
        %v1610 = vsel %vm609, %v1605, %v1609
        %v1611 = vrot.slane %v1435, 1
        %v1612 = vsel %vm609, %v1607, %v1611
        %v1613 = vrot.slane %v1436, 1
        %v1614 = vsel %vm609, %v1609, %v1613
        %v1615 = vrot.slane %v1437, 1
        %v1616 = vsel %vm609, %v1611, %v1615
        %v1617 = vrot.slane %v1438, 1
        %v1618 = vsel %vm609, %v1613, %v1617
        %v1619 = vrot.slane %v1439, 1
        %v1620 = vsel %vm609, %v1615, %v1619
        %v1621 = vrot.slane %v1440, 1
        %v1622 = vsel %vm609, %v1617, %v1621
        %v1623 = vrot.slane %v1441, 1
        %v1624 = vsel %vm609, %v1619, %v1623
        %v1625 = vrot.slane %v1442, 1
        %v1626 = vsel %vm609, %v1621, %v1625
        %v1627 = vrot.slane %v1443, 1
        %v1628 = vsel %vm609, %v1623, %v1627
        %v1629 = vrot.slane %v1444, 1
        %v1630 = vsel %vm609, %v1625, %v1629
        %v1631 = vrot.slane %v1445, 1
        %v1632 = vsel %vm609, %v1627, %v1631
        %v1633 = vrot.slane %v1446, 1
        %v1634 = vsel %vm609, %v1629, %v1633
        %v1635 = vrot.slane %v1447, 1
        %v1636 = vsel %vm609, %v1631, %v1635
        %v1637 = vrot.slane %v1448, 1
        %v1638 = vsel %vm609, %v1633, %v1637
        %v1703 = vmax.f32 %v1385, %v1515
        %v1704 = vmax.f32 %v1386, %v1518
        %v1705 = vmax.f32 %v1387, %v1520
        %v1706 = vmax.f32 %v1388, %v1522
        %v1707 = vmax.f32 %v1389, %v1524
        %v1708 = vmax.f32 %v1390, %v1526
        %v1709 = vmax.f32 %v1391, %v1528
        %v1710 = vmax.f32 %v1392, %v1530
        %v1711 = vmax.f32 %v1393, %v1532
        %v1712 = vmax.f32 %v1394, %v1534
        %v1713 = vmax.f32 %v1395, %v1536
        %v1714 = vmax.f32 %v1396, %v1538
        %v1715 = vmax.f32 %v1397, %v1540
        %v1716 = vmax.f32 %v1398, %v1542
        %v1717 = vmax.f32 %v1399, %v1544
        %v1718 = vmax.f32 %v1400, %v1546
        %v1719 = vmax.f32 %v1401, %v1548
        %v1720 = vmax.f32 %v1402, %v1550
        %v1721 = vmax.f32 %v1403, %v1552
        %v1722 = vmax.f32 %v1404, %v1554
        %v1723 = vmax.f32 %v1405, %v1556
        %v1724 = vmax.f32 %v1406, %v1558
        %v1725 = vmax.f32 %v1407, %v1560
        %v1726 = vmax.f32 %v1408, %v1562
        %v1727 = vmax.f32 %v1409, %v1564
        %v1728 = vmax.f32 %v1410, %v1566
        %v1729 = vmax.f32 %v1411, %v1568
        %v1730 = vmax.f32 %v1412, %v1570
        %v1731 = vmax.f32 %v1413, %v1572
        %v1732 = vmax.f32 %v1414, %v1574
        %v1733 = vmax.f32 %v1415, %v1576
        %v1734 = vmax.f32 %v1416, %v1578
        %v1735 = vmax.f32 %v1417, %v1580
        %v1736 = vmax.f32 %v1418, %v1582
        %v1737 = vmax.f32 %v1419, %v1584
        %v1738 = vmax.f32 %v1420, %v1586
        %v1739 = vmax.f32 %v1421, %v1588
        %v1740 = vmax.f32 %v1422, %v1590
        %v1741 = vmax.f32 %v1423, %v1592
        %v1742 = vmax.f32 %v1424, %v1594
        %v1743 = vmax.f32 %v1425, %v1596
        %v1744 = vmax.f32 %v1426, %v1598
        %v1745 = vmax.f32 %v1427, %v1600
        %v1746 = vmax.f32 %v1428, %v1602
        %v1747 = vmax.f32 %v1429, %v1604
        %v1748 = vmax.f32 %v1430, %v1606
        %v1749 = vmax.f32 %v1431, %v1608
        %v1750 = vmax.f32 %v1432, %v1610
        %v1751 = vmax.f32 %v1433, %v1612
        %v1752 = vmax.f32 %v1434, %v1614
        %v1753 = vmax.f32 %v1435, %v1616
        %v1754 = vmax.f32 %v1436, %v1618
        %v1755 = vmax.f32 %v1437, %v1620
        %v1756 = vmax.f32 %v1438, %v1622
        %v1757 = vmax.f32 %v1439, %v1624
        %v1758 = vmax.f32 %v1440, %v1626
        %v1759 = vmax.f32 %v1441, %v1628
        %v1760 = vmax.f32 %v1442, %v1630
        %v1761 = vmax.f32 %v1443, %v1632
        %v1762 = vmax.f32 %v1444, %v1634
        %v1763 = vmax.f32 %v1445, %v1636
        %v1764 = vmax.f32 %v1446, %v1638
        %v1765 = vmax.f32 %v1447, %v1635
        %v1766 = vmax.f32 %v1448, %v1637
        %1831 = vrot.lane.b32.xlu0 %v1703, 127
        %v1832 = vpop.permute.xlu0 %1831
        %1833 = vrot.lane.b32.xlu0 %v1704, 127
        %v1834 = vpop.permute.xlu0 %1833
        %1835 = vrot.lane.b32.xlu0 %v1705, 127
        %v1836 = vpop.permute.xlu0 %1835
        %1837 = vrot.lane.b32.xlu0 %v1706, 127
        %v1838 = vpop.permute.xlu0 %1837
        %1839 = vrot.lane.b32.xlu0 %v1707, 127
        %v1840 = vpop.permute.xlu0 %1839
        %1841 = vrot.lane.b32.xlu0 %v1708, 127
        %v1842 = vpop.permute.xlu0 %1841
        %1843 = vrot.lane.b32.xlu0 %v1709, 127
        %v1844 = vpop.permute.xlu0 %1843
        %1845 = vrot.lane.b32.xlu0 %v1710, 127
        %v1846 = vpop.permute.xlu0 %1845
        %1847 = vrot.lane.b32.xlu0 %v1711, 127
        %v1848 = vpop.permute.xlu0 %1847
        %1849 = vrot.lane.b32.xlu0 %v1712, 127
        %v1850 = vpop.permute.xlu0 %1849
        %1851 = vrot.lane.b32.xlu0 %v1713, 127
        %v1852 = vpop.permute.xlu0 %1851
        %1853 = vrot.lane.b32.xlu0 %v1714, 127
        %v1854 = vpop.permute.xlu0 %1853
        %1855 = vrot.lane.b32.xlu0 %v1715, 127
        %v1856 = vpop.permute.xlu0 %1855
        %1857 = vrot.lane.b32.xlu0 %v1716, 127
        %v1858 = vpop.permute.xlu0 %1857
        %1859 = vrot.lane.b32.xlu0 %v1717, 127
        %v1860 = vpop.permute.xlu0 %1859
        %1861 = vrot.lane.b32.xlu0 %v1718, 127
        %v1862 = vpop.permute.xlu0 %1861
        %1863 = vrot.lane.b32.xlu0 %v1719, 127
        %v1864 = vpop.permute.xlu0 %1863
        %1865 = vrot.lane.b32.xlu0 %v1720, 127
        %v1866 = vpop.permute.xlu0 %1865
        %1867 = vrot.lane.b32.xlu0 %v1721, 127
        %v1868 = vpop.permute.xlu0 %1867
        %1869 = vrot.lane.b32.xlu0 %v1722, 127
        %v1870 = vpop.permute.xlu0 %1869
        %1871 = vrot.lane.b32.xlu0 %v1723, 127
        %v1872 = vpop.permute.xlu0 %1871
        %1873 = vrot.lane.b32.xlu0 %v1724, 127
        %v1874 = vpop.permute.xlu0 %1873
        %1875 = vrot.lane.b32.xlu0 %v1725, 127
        %v1876 = vpop.permute.xlu0 %1875
        %1877 = vrot.lane.b32.xlu0 %v1726, 127
        %v1878 = vpop.permute.xlu0 %1877
        %1879 = vrot.lane.b32.xlu0 %v1727, 127
        %v1880 = vpop.permute.xlu0 %1879
        %1881 = vrot.lane.b32.xlu0 %v1728, 127
        %v1882 = vpop.permute.xlu0 %1881
        %1883 = vrot.lane.b32.xlu0 %v1729, 127
        %v1884 = vpop.permute.xlu0 %1883
        %1885 = vrot.lane.b32.xlu0 %v1730, 127
        %v1886 = vpop.permute.xlu0 %1885
        %1887 = vrot.lane.b32.xlu0 %v1731, 127
        %v1888 = vpop.permute.xlu0 %1887
        %1889 = vrot.lane.b32.xlu0 %v1732, 127
        %v1890 = vpop.permute.xlu0 %1889
        %1891 = vrot.lane.b32.xlu0 %v1733, 127
        %v1892 = vpop.permute.xlu0 %1891
        %1893 = vrot.lane.b32.xlu0 %v1734, 127
        %v1894 = vpop.permute.xlu0 %1893
        %1895 = vrot.lane.b32.xlu0 %v1735, 127
        %v1896 = vpop.permute.xlu0 %1895
        %1897 = vrot.lane.b32.xlu0 %v1736, 127
        %v1898 = vpop.permute.xlu0 %1897
        %1899 = vrot.lane.b32.xlu0 %v1737, 127
        %v1900 = vpop.permute.xlu0 %1899
        %1901 = vrot.lane.b32.xlu0 %v1738, 127
        %v1902 = vpop.permute.xlu0 %1901
        %1903 = vrot.lane.b32.xlu0 %v1739, 127
        %v1904 = vpop.permute.xlu0 %1903
        %1905 = vrot.lane.b32.xlu0 %v1740, 127
        %v1906 = vpop.permute.xlu0 %1905
        %1907 = vrot.lane.b32.xlu0 %v1741, 127
        %v1908 = vpop.permute.xlu0 %1907
        %1909 = vrot.lane.b32.xlu0 %v1742, 127
        %v1910 = vpop.permute.xlu0 %1909
        %1911 = vrot.lane.b32.xlu0 %v1743, 127
        %v1912 = vpop.permute.xlu0 %1911
        %1913 = vrot.lane.b32.xlu0 %v1744, 127
        %v1914 = vpop.permute.xlu0 %1913
        %1915 = vrot.lane.b32.xlu0 %v1745, 127
        %v1916 = vpop.permute.xlu0 %1915
        %1917 = vrot.lane.b32.xlu0 %v1746, 127
        %v1918 = vpop.permute.xlu0 %1917
        %1919 = vrot.lane.b32.xlu0 %v1747, 127
        %v1920 = vpop.permute.xlu0 %1919
        %1921 = vrot.lane.b32.xlu0 %v1748, 127
        %v1922 = vpop.permute.xlu0 %1921
        %1923 = vrot.lane.b32.xlu0 %v1749, 127
        %v1924 = vpop.permute.xlu0 %1923
        %1925 = vrot.lane.b32.xlu0 %v1750, 127
        %v1926 = vpop.permute.xlu0 %1925
        %1927 = vrot.lane.b32.xlu0 %v1751, 127
        %v1928 = vpop.permute.xlu0 %1927
        %1929 = vrot.lane.b32.xlu0 %v1752, 127
        %v1930 = vpop.permute.xlu0 %1929
        %1931 = vrot.lane.b32.xlu0 %v1753, 127
        %v1932 = vpop.permute.xlu0 %1931
        %1933 = vrot.lane.b32.xlu0 %v1754, 127
        %v1934 = vpop.permute.xlu0 %1933
        %1935 = vrot.lane.b32.xlu0 %v1755, 127
        %v1936 = vpop.permute.xlu0 %1935
        %1937 = vrot.lane.b32.xlu0 %v1756, 127
        %v1938 = vpop.permute.xlu0 %1937
        %1939 = vrot.lane.b32.xlu0 %v1757, 127
        %v1940 = vpop.permute.xlu0 %1939
        %1941 = vrot.lane.b32.xlu0 %v1758, 127
        %v1942 = vpop.permute.xlu0 %1941
        %1943 = vrot.lane.b32.xlu0 %v1759, 127
        %v1944 = vpop.permute.xlu0 %1943
        %1945 = vrot.lane.b32.xlu0 %v1760, 127
        %v1946 = vpop.permute.xlu0 %1945
        %1947 = vrot.lane.b32.xlu0 %v1761, 127
        %v1948 = vpop.permute.xlu0 %1947
        %1949 = vrot.lane.b32.xlu0 %v1762, 127
        %v1950 = vpop.permute.xlu0 %1949
        %1951 = vrot.lane.b32.xlu0 %v1763, 127
        %v1952 = vpop.permute.xlu0 %1951
        %1953 = vrot.lane.b32.xlu0 %v1764, 127
        %v1954 = vpop.permute.xlu0 %1953
        %1955 = vrot.lane.b32.xlu0 %v1765, 127
        %v1956 = vpop.permute.xlu0 %1955
        %1957 = vrot.lane.b32.xlu0 %v1766, 127
        %v1958 = vpop.permute.xlu0 %1957
        %vm1959 = vcmask 1039360
        %v1960 = vsel %vm1959, %v1832, %v1834
        %v1961 = vsel %vm1959, %v1836, %v1838
        %v1962 = vsel %vm1959, %v1840, %v1842
        %v1963 = vsel %vm1959, %v1844, %v1846
        %v1964 = vsel %vm1959, %v1848, %v1850
        %v1965 = vsel %vm1959, %v1852, %v1854
        %v1966 = vsel %vm1959, %v1856, %v1858
        %v1967 = vsel %vm1959, %v1860, %v1862
        %v1968 = vsel %vm1959, %v1864, %v1866
        %v1969 = vsel %vm1959, %v1868, %v1870
        %v1970 = vsel %vm1959, %v1872, %v1874
        %v1971 = vsel %vm1959, %v1876, %v1878
        %v1972 = vsel %vm1959, %v1880, %v1882
        %v1973 = vsel %vm1959, %v1884, %v1886
        %v1974 = vsel %vm1959, %v1888, %v1890
        %v1975 = vsel %vm1959, %v1892, %v1894
        %v1976 = vsel %vm1959, %v1896, %v1898
        %v1977 = vsel %vm1959, %v1900, %v1902
        %v1978 = vsel %vm1959, %v1904, %v1906
        %v1979 = vsel %vm1959, %v1908, %v1910
        %v1980 = vsel %vm1959, %v1912, %v1914
        %v1981 = vsel %vm1959, %v1916, %v1918
        %v1982 = vsel %vm1959, %v1920, %v1922
        %v1983 = vsel %vm1959, %v1924, %v1926
        %v1984 = vsel %vm1959, %v1928, %v1930
        %v1985 = vsel %vm1959, %v1932, %v1934
        %v1986 = vsel %vm1959, %v1936, %v1938
        %v1987 = vsel %vm1959, %v1940, %v1942
        %v1988 = vsel %vm1959, %v1944, %v1946
        %v1989 = vsel %vm1959, %v1948, %v1950
        %v1990 = vsel %vm1959, %v1952, %v1954
        %v1991 = vsel %vm1959, %v1956, %v1958
        %v2056 = vmax.f32 %v1703, %v1960
        %v2057 = vmax.f32 %v1704, %v1834
        %v2058 = vmax.f32 %v1705, %v1961
        %v2059 = vmax.f32 %v1706, %v1838
        %v2060 = vmax.f32 %v1707, %v1962
        %v2061 = vmax.f32 %v1708, %v1842
        %v2062 = vmax.f32 %v1709, %v1963
        %v2063 = vmax.f32 %v1710, %v1846
        %v2064 = vmax.f32 %v1711, %v1964
        %v2065 = vmax.f32 %v1712, %v1850
        %v2066 = vmax.f32 %v1713, %v1965
        %v2067 = vmax.f32 %v1714, %v1854
        %v2068 = vmax.f32 %v1715, %v1966
        %v2069 = vmax.f32 %v1716, %v1858
        %v2070 = vmax.f32 %v1717, %v1967
        %v2071 = vmax.f32 %v1718, %v1862
        %v2072 = vmax.f32 %v1719, %v1968
        %v2073 = vmax.f32 %v1720, %v1866
        %v2074 = vmax.f32 %v1721, %v1969
        %v2075 = vmax.f32 %v1722, %v1870
        %v2076 = vmax.f32 %v1723, %v1970
        %v2077 = vmax.f32 %v1724, %v1874
        %v2078 = vmax.f32 %v1725, %v1971
        %v2079 = vmax.f32 %v1726, %v1878
        %v2080 = vmax.f32 %v1727, %v1972
        %v2081 = vmax.f32 %v1728, %v1882
        %v2082 = vmax.f32 %v1729, %v1973
        %v2083 = vmax.f32 %v1730, %v1886
        %v2084 = vmax.f32 %v1731, %v1974
        %v2085 = vmax.f32 %v1732, %v1890
        %v2086 = vmax.f32 %v1733, %v1975
        %v2087 = vmax.f32 %v1734, %v1894
        %v2088 = vmax.f32 %v1735, %v1976
        %v2089 = vmax.f32 %v1736, %v1898
        %v2090 = vmax.f32 %v1737, %v1977
        %v2091 = vmax.f32 %v1738, %v1902
        %v2092 = vmax.f32 %v1739, %v1978
        %v2093 = vmax.f32 %v1740, %v1906
        %v2094 = vmax.f32 %v1741, %v1979
        %v2095 = vmax.f32 %v1742, %v1910
        %v2096 = vmax.f32 %v1743, %v1980
        %v2097 = vmax.f32 %v1744, %v1914
        %v2098 = vmax.f32 %v1745, %v1981
        %v2099 = vmax.f32 %v1746, %v1918
        %v2100 = vmax.f32 %v1747, %v1982
        %v2101 = vmax.f32 %v1748, %v1922
        %v2102 = vmax.f32 %v1749, %v1983
        %v2103 = vmax.f32 %v1750, %v1926
        %v2104 = vmax.f32 %v1751, %v1984
        %v2105 = vmax.f32 %v1752, %v1930
        %v2106 = vmax.f32 %v1753, %v1985
        %v2107 = vmax.f32 %v1754, %v1934
        %v2108 = vmax.f32 %v1755, %v1986
        %v2109 = vmax.f32 %v1756, %v1938
        %v2110 = vmax.f32 %v1757, %v1987
        %v2111 = vmax.f32 %v1758, %v1942
        %v2112 = vmax.f32 %v1759, %v1988
        %v2113 = vmax.f32 %v1760, %v1946
        %v2114 = vmax.f32 %v1761, %v1989
        %v2115 = vmax.f32 %v1762, %v1950
        %v2116 = vmax.f32 %v1763, %v1990
        %v2117 = vmax.f32 %v1764, %v1954
        %v2118 = vmax.f32 %v1765, %v1991
        %v2119 = vmax.f32 %v1766, %v1958
        %v2120 = vld [vmem:[#allocation5] sm:$0xff]
        %v2121 = vld [vmem:[#allocation5 + $0x8] sm:$0xff]
        %v2122 = vld [vmem:[#allocation5 + $0x10] sm:$0xff]
        %v2123 = vld [vmem:[#allocation5 + $0x18] sm:$0xff]
        %v2124 = vld [vmem:[#allocation5 + $0x20] sm:$0xff]
        %v2125 = vld [vmem:[#allocation5 + $0x28] sm:$0xff]
        %v2126 = vld [vmem:[#allocation5 + $0x30] sm:$0xff]
        %v2127 = vld [vmem:[#allocation5 + $0x38] sm:$0xff]
        %v2128 = vld [vmem:[#allocation5 + $0x40] sm:$0xff]
        %v2129 = vld [vmem:[#allocation5 + $0x48] sm:$0xff]
        %v2130 = vld [vmem:[#allocation5 + $0x50] sm:$0xff]
        %v2131 = vld [vmem:[#allocation5 + $0x58] sm:$0xff]
        %v2132 = vld [vmem:[#allocation5 + $0x60] sm:$0xff]
        %v2133 = vld [vmem:[#allocation5 + $0x68] sm:$0xff]
        %v2134 = vld [vmem:[#allocation5 + $0x70] sm:$0xff]
        %v2135 = vld [vmem:[#allocation5 + $0x78] sm:$0xff]
        %v2136 = vld [vmem:[#allocation5 + $0x80] sm:$0xff]
        %v2137 = vld [vmem:[#allocation5 + $0x88] sm:$0xff]
        %v2138 = vld [vmem:[#allocation5 + $0x90] sm:$0xff]
        %v2139 = vld [vmem:[#allocation5 + $0x98] sm:$0xff]
        %v2140 = vld [vmem:[#allocation5 + $0xa0] sm:$0xff]
        %v2141 = vld [vmem:[#allocation5 + $0xa8] sm:$0xff]
        %v2142 = vld [vmem:[#allocation5 + $0xb0] sm:$0x7]
        %vm2143 = vcmask 416768
        %v2145 = vsel %vm2143, %v2057, 0
        %v2148 = vsel %vm2143, %v2059, 0
        %v2151 = vsel %vm2143, %v2061, 0
        %v2154 = vsel %vm2143, %v2063, 0
        %v2157 = vsel %vm2143, %v2065, 0
        %v2160 = vsel %vm2143, %v2067, 0
        %v2163 = vsel %vm2143, %v2069, 0
        %v2166 = vsel %vm2143, %v2071, 0
        %v2169 = vsel %vm2143, %v2073, 0
        %v2172 = vsel %vm2143, %v2075, 0
        %v2175 = vsel %vm2143, %v2077, 0
        %v2178 = vsel %vm2143, %v2079, 0
        %v2181 = vsel %vm2143, %v2081, 0
        %v2184 = vsel %vm2143, %v2083, 0
        %v2187 = vsel %vm2143, %v2085, 0
        %v2190 = vsel %vm2143, %v2087, 0
        %v2193 = vsel %vm2143, %v2089, 0
        %v2196 = vsel %vm2143, %v2091, 0
        %v2199 = vsel %vm2143, %v2093, 0
        %v2202 = vsel %vm2143, %v2095, 0
        %v2205 = vsel %vm2143, %v2097, 0
        %v2208 = vsel %vm2143, %v2099, 0
        %v2211 = vsel %vm2143, %v2101, 0
        %v2214 = vsel %vm2143, %v2103, 0
        %v2217 = vsel %vm2143, %v2105, 0
        %v2220 = vsel %vm2143, %v2107, 0
        %v2223 = vsel %vm2143, %v2109, 0
        %v2226 = vsel %vm2143, %v2111, 0
        %v2229 = vsel %vm2143, %v2113, 0
        %v2232 = vsel %vm2143, %v2115, 0
        %v2235 = vsel %vm2143, %v2117, 0
        %v2238 = vsel %vm2143, %v2119, 0
        %vm2240 = vcmask 1042432
        %v2242 = vsel %vm2240, %v2142, 0
        %2244 = vmatprep.subr.mxu0 0.0
        %2245 = vmatpush1.msra.mxu0 %v2120
        %2246 = vmatprep.subr.mxu0 0.0
        %2247 = vmatpush1.msra.mxu0 %v2121
        %2248 = vmatprep.subr.mxu0 0.0
        %2249 = vmatpush1.msra.mxu0 %v2122
        %2250 = vmatprep.subr.mxu0 0.0
        %2251 = vmatpush1.msra.mxu0 %v2123
        %2252 = vmatprep.subr.mxu0 0.0
        %2253 = vmatpush1.msra.mxu0 %v2124
        %2254 = vmatprep.subr.mxu0 0.0
        %2255 = vmatpush1.msra.mxu0 %v2125
        %2256 = vmatprep.subr.mxu0 0.0
        %2257 = vmatpush1.msra.mxu0 %v2126
        %2258 = vmatprep.subr.mxu0 0.0
        %2259 = vmatpush1.msra.mxu0 %v2127
        %2260 = vmatprep.subr.mxu0 0.0
        %2261 = vmatpush1.msra.mxu0 %v2128
        %2262 = vmatprep.subr.mxu0 0.0
        %2263 = vmatpush1.msra.mxu0 %v2129
        %2264 = vmatprep.subr.mxu0 0.0
        %2265 = vmatpush1.msra.mxu0 %v2130
        %2266 = vmatprep.subr.mxu0 0.0
        %2267 = vmatpush1.msra.mxu0 %v2131
        %2268 = vmatprep.subr.mxu0 0.0
        %2269 = vmatpush1.msra.mxu0 %v2132
        %2270 = vmatprep.subr.mxu0 0.0
        %2271 = vmatpush1.msra.mxu0 %v2133
        %2272 = vmatprep.subr.mxu0 0.0
        %2273 = vmatpush1.msra.mxu0 %v2134
        %2274 = vmatprep.subr.mxu0 0.0
        %2275 = vmatpush1.msra.mxu0 %v2135
        %2276 = vmatprep.subr.mxu0 0.0
        %2277 = vmatpush1.msra.mxu0 %v2136
        %2278 = vmatprep.subr.mxu0 0.0
        %2279 = vmatpush1.msra.mxu0 %v2137
        %2280 = vmatprep.subr.mxu0 0.0
        %2281 = vmatpush1.msra.mxu0 %v2138
        %2282 = vmatprep.subr.mxu0 0.0
        %2283 = vmatpush1.msra.mxu0 %v2139
        %2284 = vmatprep.subr.mxu0 0.0
        %2285 = vmatpush1.msra.mxu0 %v2140
        %2286 = vmatprep.subr.mxu0 0.0
        %2287 = vmatpush1.msra.mxu0 %v2141
        %2288 = vmatprep.subr.mxu0 0.0
        %2289 = vmatpush1.msra.mxu0 %v2242
        %2290 = vmatprep.subr.mxu0 0.0
        %2291 = vmatpush1.msra.mxu0 0.0
        %2292 = vmatprep.subr.mxu0 0.0
        %2293 = vmatpush1.msra.mxu0 0.0
        %2294 = vmatprep.subr.mxu0 0.0
        %2295 = vmatpush1.msra.mxu0 0.0
        %2296 = vmatprep.subr.mxu0 0.0
        %2297 = vmatpush1.msra.mxu0 0.0
        %2298 = vmatprep.subr.mxu0 0.0
        %2299 = vmatpush1.msra.mxu0 0.0
        %2300 = vmatprep.subr.mxu0 0.0
        %2301 = vmatpush1.msra.mxu0 0.0
        %2302 = vmatprep.subr.mxu0 0.0
        %2303 = vmatpush1.msra.mxu0 0.0
        %2304 = vmatprep.subr.mxu0 0.0
        %2305 = vmatpush1.msra.mxu0 0.0
        %2306 = vmatprep.subr.mxu0 0.0
        %2307 = vmatpush1.msra.mxu0 0.0
        %2308 = vmatprep.mubr.f32.mxu0 %v2145
        %2309 = vmatmul.mubr.f32.gmra.mrb[0].mxu0 %v2056
        %v2310 = vpop.f32.mrb[0].mxu0
        %v2311 = vadd.f32 0.0, %v2310
        %v2312 = vpop.f32.mrb[0].mxu0
        %2313 = vmatprep.mubr.f32.mxu0 %v2148
        %2314 = vmatmul.mubr.f32.gmra.mrb[0].mxu0 %v2058
        %v2315 = vpop.f32.mrb[0].mxu0
        %v2316 = vadd.f32 0.0, %v2315
        %v2317 = vpop.f32.mrb[0].mxu0
        %2318 = vmatprep.mubr.f32.mxu0 %v2151
        %2319 = vmatmul.mubr.f32.gmra.mrb[0].mxu0 %v2060
        %v2320 = vpop.f32.mrb[0].mxu0
        %v2321 = vadd.f32 0.0, %v2320
        %v2322 = vpop.f32.mrb[0].mxu0
        %2323 = vmatprep.mubr.f32.mxu0 %v2154
        %2324 = vmatmul.mubr.f32.gmra.mrb[0].mxu0 %v2062
        %v2325 = vpop.f32.mrb[0].mxu0
        %v2326 = vadd.f32 0.0, %v2325
        %v2327 = vpop.f32.mrb[0].mxu0
        %2328 = vmatprep.mubr.f32.mxu0 %v2157
        %2329 = vmatmul.mubr.f32.gmra.mrb[0].mxu0 %v2064
        %v2330 = vpop.f32.mrb[0].mxu0
        %v2331 = vadd.f32 0.0, %v2330
        %v2332 = vpop.f32.mrb[0].mxu0
        %2333 = vmatprep.mubr.f32.mxu0 %v2160
        %2334 = vmatmul.mubr.f32.gmra.mrb[0].mxu0 %v2066
        %v2335 = vpop.f32.mrb[0].mxu0
        %v2336 = vadd.f32 0.0, %v2335
        %v2337 = vpop.f32.mrb[0].mxu0
        %2338 = vmatprep.mubr.f32.mxu0 %v2163
        %2339 = vmatmul.mubr.f32.gmra.mrb[0].mxu0 %v2068
        %v2340 = vpop.f32.mrb[0].mxu0
        %v2341 = vadd.f32 0.0, %v2340
        %v2342 = vpop.f32.mrb[0].mxu0
        %2343 = vmatprep.mubr.f32.mxu0 %v2166
        %2344 = vmatmul.mubr.f32.gmra.mrb[0].mxu0 %v2070
        %v2345 = vpop.f32.mrb[0].mxu0
        %v2346 = vadd.f32 0.0, %v2345
        %v2347 = vpop.f32.mrb[0].mxu0
        %2348 = vmatprep.mubr.f32.mxu0 %v2169
        %2349 = vmatmul.mubr.f32.gmra.mrb[0].mxu0 %v2072
        %v2350 = vpop.f32.mrb[0].mxu0
        %v2351 = vadd.f32 0.0, %v2350
        %v2352 = vpop.f32.mrb[0].mxu0
        %2353 = vmatprep.mubr.f32.mxu0 %v2172
        %2354 = vmatmul.mubr.f32.gmra.mrb[0].mxu0 %v2074
        %v2355 = vpop.f32.mrb[0].mxu0
        %v2356 = vadd.f32 0.0, %v2355
        %v2357 = vpop.f32.mrb[0].mxu0
        %2358 = vmatprep.mubr.f32.mxu0 %v2175
        %2359 = vmatmul.mubr.f32.gmra.mrb[0].mxu0 %v2076
        %v2360 = vpop.f32.mrb[0].mxu0
        %v2361 = vadd.f32 0.0, %v2360
        %v2362 = vpop.f32.mrb[0].mxu0
        %2363 = vmatprep.mubr.f32.mxu0 %v2178
        %2364 = vmatmul.mubr.f32.gmra.mrb[0].mxu0 %v2078
        %v2365 = vpop.f32.mrb[0].mxu0
        %v2366 = vadd.f32 0.0, %v2365
        %v2367 = vpop.f32.mrb[0].mxu0
        %2368 = vmatprep.mubr.f32.mxu0 %v2181
        %2369 = vmatmul.mubr.f32.gmra.mrb[0].mxu0 %v2080
        %v2370 = vpop.f32.mrb[0].mxu0
        %v2371 = vadd.f32 0.0, %v2370
        %v2372 = vpop.f32.mrb[0].mxu0
        %2373 = vmatprep.mubr.f32.mxu0 %v2184
        %2374 = vmatmul.mubr.f32.gmra.mrb[0].mxu0 %v2082
        %v2375 = vpop.f32.mrb[0].mxu0
        %v2376 = vadd.f32 0.0, %v2375
        %v2377 = vpop.f32.mrb[0].mxu0
        %2378 = vmatprep.mubr.f32.mxu0 %v2187
        %2379 = vmatmul.mubr.f32.gmra.mrb[0].mxu0 %v2084
        %v2380 = vpop.f32.mrb[0].mxu0
        %v2381 = vadd.f32 0.0, %v2380
        %v2382 = vpop.f32.mrb[0].mxu0
        %2383 = vmatprep.mubr.f32.mxu0 %v2190
        %2384 = vmatmul.mubr.f32.gmra.mrb[0].mxu0 %v2086
        %v2385 = vpop.f32.mrb[0].mxu0
        %v2386 = vadd.f32 0.0, %v2385
        %v2387 = vpop.f32.mrb[0].mxu0
        %2388 = vmatprep.mubr.f32.mxu0 %v2193
        %2389 = vmatmul.mubr.f32.gmra.mrb[0].mxu0 %v2088
        %v2390 = vpop.f32.mrb[0].mxu0
        %v2391 = vadd.f32 0.0, %v2390
        %v2392 = vpop.f32.mrb[0].mxu0
        %2393 = vmatprep.mubr.f32.mxu0 %v2196
        %2394 = vmatmul.mubr.f32.gmra.mrb[0].mxu0 %v2090
        %v2395 = vpop.f32.mrb[0].mxu0
        %v2396 = vadd.f32 0.0, %v2395
        %v2397 = vpop.f32.mrb[0].mxu0
        %2398 = vmatprep.mubr.f32.mxu0 %v2199
        %2399 = vmatmul.mubr.f32.gmra.mrb[0].mxu0 %v2092
        %v2400 = vpop.f32.mrb[0].mxu0
        %v2401 = vadd.f32 0.0, %v2400
        %v2402 = vpop.f32.mrb[0].mxu0
        %2403 = vmatprep.mubr.f32.mxu0 %v2202
        %2404 = vmatmul.mubr.f32.gmra.mrb[0].mxu0 %v2094
        %v2405 = vpop.f32.mrb[0].mxu0
        %v2406 = vadd.f32 0.0, %v2405
        %v2407 = vpop.f32.mrb[0].mxu0
        %2408 = vmatprep.mubr.f32.mxu0 %v2205
        %2409 = vmatmul.mubr.f32.gmra.mrb[0].mxu0 %v2096
        %v2410 = vpop.f32.mrb[0].mxu0
        %v2411 = vadd.f32 0.0, %v2410
        %v2412 = vpop.f32.mrb[0].mxu0
        %2413 = vmatprep.mubr.f32.mxu0 %v2208
        %2414 = vmatmul.mubr.f32.gmra.mrb[0].mxu0 %v2098
        %v2415 = vpop.f32.mrb[0].mxu0
        %v2416 = vadd.f32 0.0, %v2415
        %v2417 = vpop.f32.mrb[0].mxu0
        %2418 = vmatprep.mubr.f32.mxu0 %v2211
        %2419 = vmatmul.mubr.f32.gmra.mrb[0].mxu0 %v2100
        %v2420 = vpop.f32.mrb[0].mxu0
        %v2421 = vadd.f32 0.0, %v2420
        %v2422 = vpop.f32.mrb[0].mxu0
        %2423 = vmatprep.mubr.f32.mxu0 %v2214
        %2424 = vmatmul.mubr.f32.gmra.mrb[0].mxu0 %v2102
        %v2425 = vpop.f32.mrb[0].mxu0
        %v2426 = vadd.f32 0.0, %v2425
        %v2427 = vpop.f32.mrb[0].mxu0
        %2428 = vmatprep.mubr.f32.mxu0 %v2217
        %2429 = vmatmul.mubr.f32.gmra.mrb[0].mxu0 %v2104
        %v2430 = vpop.f32.mrb[0].mxu0
        %v2431 = vadd.f32 0.0, %v2430
        %v2432 = vpop.f32.mrb[0].mxu0
        %2433 = vmatprep.mubr.f32.mxu0 %v2220
        %2434 = vmatmul.mubr.f32.gmra.mrb[0].mxu0 %v2106
        %v2435 = vpop.f32.mrb[0].mxu0
        %v2436 = vadd.f32 0.0, %v2435
        %v2437 = vpop.f32.mrb[0].mxu0
        %2438 = vmatprep.mubr.f32.mxu0 %v2223
        %2439 = vmatmul.mubr.f32.gmra.mrb[0].mxu0 %v2108
        %v2440 = vpop.f32.mrb[0].mxu0
        %v2441 = vadd.f32 0.0, %v2440
        %v2442 = vpop.f32.mrb[0].mxu0
        %2443 = vmatprep.mubr.f32.mxu0 %v2226
        %2444 = vmatmul.mubr.f32.gmra.mrb[0].mxu0 %v2110
        %v2445 = vpop.f32.mrb[0].mxu0
        %v2446 = vadd.f32 0.0, %v2445
        %v2447 = vpop.f32.mrb[0].mxu0
        %2448 = vmatprep.mubr.f32.mxu0 %v2229
        %2449 = vmatmul.mubr.f32.gmra.mrb[0].mxu0 %v2112
        %v2450 = vpop.f32.mrb[0].mxu0
        %v2451 = vadd.f32 0.0, %v2450
        %v2452 = vpop.f32.mrb[0].mxu0
        %2453 = vmatprep.mubr.f32.mxu0 %v2232
        %2454 = vmatmul.mubr.f32.gmra.mrb[0].mxu0 %v2114
        %v2455 = vpop.f32.mrb[0].mxu0
        %v2456 = vadd.f32 0.0, %v2455
        %v2457 = vpop.f32.mrb[0].mxu0
        %2458 = vmatprep.mubr.f32.mxu0 %v2235
        %2459 = vmatmul.mubr.f32.gmra.mrb[0].mxu0 %v2116
        %v2460 = vpop.f32.mrb[0].mxu0
        %v2461 = vadd.f32 0.0, %v2460
        %v2462 = vpop.f32.mrb[0].mxu0
        %2463 = vmatprep.mubr.f32.mxu0 %v2238
        %2464 = vmatmul.mubr.f32.gmra.mrb[0].mxu0 %v2118
        %v2465 = vpop.f32.mrb[0].mxu0
        %v2466 = vadd.f32 0.0, %v2465
        %v2467 = vpop.f32.mrb[0].mxu0
        %2468 = vdwg.mxu0
        %v2501 = vrot.slane %v2311, 2
        %v2502 = vrot.slane %v2316, 2
        %v2503 = vsel %vm769, %v2501, %v2502
        %v2504 = vrot.slane %v2321, 2
        %v2505 = vsel %vm769, %v2502, %v2504
        %v2506 = vrot.slane %v2326, 2
        %v2507 = vsel %vm769, %v2504, %v2506
        %v2508 = vrot.slane %v2331, 2
        %v2509 = vsel %vm769, %v2506, %v2508
        %v2510 = vrot.slane %v2336, 2
        %v2511 = vsel %vm769, %v2508, %v2510
        %v2512 = vrot.slane %v2341, 2
        %v2513 = vsel %vm769, %v2510, %v2512
        %v2514 = vrot.slane %v2346, 2
        %v2515 = vsel %vm769, %v2512, %v2514
        %v2516 = vrot.slane %v2351, 2
        %v2517 = vsel %vm769, %v2514, %v2516
        %v2518 = vrot.slane %v2356, 2
        %v2519 = vsel %vm769, %v2516, %v2518
        %v2520 = vrot.slane %v2361, 2
        %v2521 = vsel %vm769, %v2518, %v2520
        %v2522 = vrot.slane %v2366, 2
        %v2523 = vsel %vm769, %v2520, %v2522
        %v2524 = vrot.slane %v2371, 2
        %v2525 = vsel %vm769, %v2522, %v2524
        %v2526 = vrot.slane %v2376, 2
        %v2527 = vsel %vm769, %v2524, %v2526
        %v2528 = vrot.slane %v2381, 2
        %v2529 = vsel %vm769, %v2526, %v2528
        %v2530 = vrot.slane %v2386, 2
        %v2531 = vsel %vm769, %v2528, %v2530
        %v2532 = vrot.slane %v2391, 2
        %v2533 = vsel %vm769, %v2530, %v2532
        %v2534 = vrot.slane %v2396, 2
        %v2535 = vsel %vm769, %v2532, %v2534
        %v2536 = vrot.slane %v2401, 2
        %v2537 = vsel %vm769, %v2534, %v2536
        %v2538 = vrot.slane %v2406, 2
        %v2539 = vsel %vm769, %v2536, %v2538
        %v2540 = vrot.slane %v2411, 2
        %v2541 = vsel %vm769, %v2538, %v2540
        %v2542 = vrot.slane %v2416, 2
        %v2543 = vsel %vm769, %v2540, %v2542
        %v2544 = vrot.slane %v2421, 2
        %v2545 = vsel %vm769, %v2542, %v2544
        %v2546 = vrot.slane %v2426, 2
        %v2547 = vsel %vm769, %v2544, %v2546
        %v2548 = vrot.slane %v2431, 2
        %v2549 = vsel %vm769, %v2546, %v2548
        %v2550 = vrot.slane %v2436, 2
        %v2551 = vsel %vm769, %v2548, %v2550
        %v2552 = vrot.slane %v2441, 2
        %v2553 = vsel %vm769, %v2550, %v2552
        %v2554 = vrot.slane %v2446, 2
        %v2555 = vsel %vm769, %v2552, %v2554
        %v2556 = vrot.slane %v2451, 2
        %v2557 = vsel %vm769, %v2554, %v2556
        %v2558 = vrot.slane %v2456, 2
        %v2559 = vsel %vm769, %v2556, %v2558
        %v2560 = vrot.slane %v2461, 2
        %v2561 = vsel %vm769, %v2558, %v2560
        %v2562 = vrot.slane %v2466, 2
        %v2563 = vsel %vm769, %v2560, %v2562
        %2564 = vrot.lane.b32.xlu0 %v2503, 90
        %v2565 = vpop.permute.xlu0 %2564
        %2566 = vrot.lane.b32.xlu0 %v2505, 90
        %v2567 = vpop.permute.xlu0 %2566
        %2568 = vrot.lane.b32.xlu0 %v2507, 90
        %v2569 = vpop.permute.xlu0 %2568
        %2570 = vrot.lane.b32.xlu0 %v2509, 90
        %v2571 = vpop.permute.xlu0 %2570
        %2572 = vrot.lane.b32.xlu0 %v2511, 90
        %v2573 = vpop.permute.xlu0 %2572
        %2574 = vrot.lane.b32.xlu0 %v2513, 90
        %v2575 = vpop.permute.xlu0 %2574
        %2576 = vrot.lane.b32.xlu0 %v2515, 90
        %v2577 = vpop.permute.xlu0 %2576
        %2578 = vrot.lane.b32.xlu0 %v2517, 90
        %v2579 = vpop.permute.xlu0 %2578
        %2580 = vrot.lane.b32.xlu0 %v2519, 90
        %v2581 = vpop.permute.xlu0 %2580
        %2582 = vrot.lane.b32.xlu0 %v2521, 90
        %v2583 = vpop.permute.xlu0 %2582
        %2584 = vrot.lane.b32.xlu0 %v2523, 90
        %v2585 = vpop.permute.xlu0 %2584
        %2586 = vrot.lane.b32.xlu0 %v2525, 90
        %v2587 = vpop.permute.xlu0 %2586
        %2588 = vrot.lane.b32.xlu0 %v2527, 90
        %v2589 = vpop.permute.xlu0 %2588
        %2590 = vrot.lane.b32.xlu0 %v2529, 90
        %v2591 = vpop.permute.xlu0 %2590
        %2592 = vrot.lane.b32.xlu0 %v2531, 90
        %v2593 = vpop.permute.xlu0 %2592
        %2594 = vrot.lane.b32.xlu0 %v2533, 90
        %v2595 = vpop.permute.xlu0 %2594
        %2596 = vrot.lane.b32.xlu0 %v2535, 90
        %v2597 = vpop.permute.xlu0 %2596
        %2598 = vrot.lane.b32.xlu0 %v2537, 90
        %v2599 = vpop.permute.xlu0 %2598
        %2600 = vrot.lane.b32.xlu0 %v2539, 90
        %v2601 = vpop.permute.xlu0 %2600
        %2602 = vrot.lane.b32.xlu0 %v2541, 90
        %v2603 = vpop.permute.xlu0 %2602
        %2604 = vrot.lane.b32.xlu0 %v2543, 90
        %v2605 = vpop.permute.xlu0 %2604
        %2606 = vrot.lane.b32.xlu0 %v2545, 90
        %v2607 = vpop.permute.xlu0 %2606
        %2608 = vrot.lane.b32.xlu0 %v2547, 90
        %v2609 = vpop.permute.xlu0 %2608
        %2610 = vrot.lane.b32.xlu0 %v2549, 90
        %v2611 = vpop.permute.xlu0 %2610
        %2612 = vrot.lane.b32.xlu0 %v2551, 90
        %v2613 = vpop.permute.xlu0 %2612
        %2614 = vrot.lane.b32.xlu0 %v2553, 90
        %v2615 = vpop.permute.xlu0 %2614
        %2616 = vrot.lane.b32.xlu0 %v2555, 90
        %v2617 = vpop.permute.xlu0 %2616
        %2618 = vrot.lane.b32.xlu0 %v2557, 90
        %v2619 = vpop.permute.xlu0 %2618
        %2620 = vrot.lane.b32.xlu0 %v2559, 90
        %v2621 = vpop.permute.xlu0 %2620
        %2622 = vrot.lane.b32.xlu0 %v2561, 90
        %v2623 = vpop.permute.xlu0 %2622
        %2624 = vrot.lane.b32.xlu0 %v2563, 90
        %v2625 = vpop.permute.xlu0 %2624
        %2626 = vrot.lane.b32.xlu0 %v2562, 90
        %v2627 = vpop.permute.xlu0 %2626
        %vm2660 = vcmask 1043456
        %v2661 = vrot.slane %v2311, 4
        %v2662 = vrot.slane %v2316, 4
        %v2663 = vsel %vm2660, %v2661, %v2662
        %v2664 = vrot.slane %v2321, 4
        %v2665 = vsel %vm2660, %v2662, %v2664
        %v2666 = vrot.slane %v2326, 4
        %v2667 = vsel %vm2660, %v2664, %v2666
        %v2668 = vrot.slane %v2331, 4
        %v2669 = vsel %vm2660, %v2666, %v2668
        %v2670 = vrot.slane %v2336, 4
        %v2671 = vsel %vm2660, %v2668, %v2670
        %v2672 = vrot.slane %v2341, 4
        %v2673 = vsel %vm2660, %v2670, %v2672
        %v2674 = vrot.slane %v2346, 4
        %v2675 = vsel %vm2660, %v2672, %v2674
        %v2676 = vrot.slane %v2351, 4
        %v2677 = vsel %vm2660, %v2674, %v2676
        %v2678 = vrot.slane %v2356, 4
        %v2679 = vsel %vm2660, %v2676, %v2678
        %v2680 = vrot.slane %v2361, 4
        %v2681 = vsel %vm2660, %v2678, %v2680
        %v2682 = vrot.slane %v2366, 4
        %v2683 = vsel %vm2660, %v2680, %v2682
        %v2684 = vrot.slane %v2371, 4
        %v2685 = vsel %vm2660, %v2682, %v2684
        %v2686 = vrot.slane %v2376, 4
        %v2687 = vsel %vm2660, %v2684, %v2686
        %v2688 = vrot.slane %v2381, 4
        %v2689 = vsel %vm2660, %v2686, %v2688
        %v2690 = vrot.slane %v2386, 4
        %v2691 = vsel %vm2660, %v2688, %v2690
        %v2692 = vrot.slane %v2391, 4
        %v2693 = vsel %vm2660, %v2690, %v2692
        %v2694 = vrot.slane %v2396, 4
        %v2695 = vsel %vm2660, %v2692, %v2694
        %v2696 = vrot.slane %v2401, 4
        %v2697 = vsel %vm2660, %v2694, %v2696
        %v2698 = vrot.slane %v2406, 4
        %v2699 = vsel %vm2660, %v2696, %v2698
        %v2700 = vrot.slane %v2411, 4
        %v2701 = vsel %vm2660, %v2698, %v2700
        %v2702 = vrot.slane %v2416, 4
        %v2703 = vsel %vm2660, %v2700, %v2702
        %v2704 = vrot.slane %v2421, 4
        %v2705 = vsel %vm2660, %v2702, %v2704
        %v2706 = vrot.slane %v2426, 4
        %v2707 = vsel %vm2660, %v2704, %v2706
        %v2708 = vrot.slane %v2431, 4
        %v2709 = vsel %vm2660, %v2706, %v2708
        %v2710 = vrot.slane %v2436, 4
        %v2711 = vsel %vm2660, %v2708, %v2710
        %v2712 = vrot.slane %v2441, 4
        %v2713 = vsel %vm2660, %v2710, %v2712
        %v2714 = vrot.slane %v2446, 4
        %v2715 = vsel %vm2660, %v2712, %v2714
        %v2716 = vrot.slane %v2451, 4
        %v2717 = vsel %vm2660, %v2714, %v2716
        %v2718 = vrot.slane %v2456, 4
        %v2719 = vsel %vm2660, %v2716, %v2718
        %v2720 = vrot.slane %v2461, 4
        %v2721 = vsel %vm2660, %v2718, %v2720
        %v2722 = vrot.slane %v2466, 4
        %v2723 = vsel %vm2660, %v2720, %v2722
        %2724 = vrot.lane.b32.xlu0 %v2663, 52
        %v2725 = vpop.permute.xlu0 %2724
        %2726 = vrot.lane.b32.xlu0 %v2665, 52
        %v2727 = vpop.permute.xlu0 %2726
        %2728 = vrot.lane.b32.xlu0 %v2667, 52
        %v2729 = vpop.permute.xlu0 %2728
        %2730 = vrot.lane.b32.xlu0 %v2669, 52
        %v2731 = vpop.permute.xlu0 %2730
        %2732 = vrot.lane.b32.xlu0 %v2671, 52
        %v2733 = vpop.permute.xlu0 %2732
        %2734 = vrot.lane.b32.xlu0 %v2673, 52
        %v2735 = vpop.permute.xlu0 %2734
        %2736 = vrot.lane.b32.xlu0 %v2675, 52
        %v2737 = vpop.permute.xlu0 %2736
        %2738 = vrot.lane.b32.xlu0 %v2677, 52
        %v2739 = vpop.permute.xlu0 %2738
        %2740 = vrot.lane.b32.xlu0 %v2679, 52
        %v2741 = vpop.permute.xlu0 %2740
        %2742 = vrot.lane.b32.xlu0 %v2681, 52
        %v2743 = vpop.permute.xlu0 %2742
        %2744 = vrot.lane.b32.xlu0 %v2683, 52
        %v2745 = vpop.permute.xlu0 %2744
        %2746 = vrot.lane.b32.xlu0 %v2685, 52
        %v2747 = vpop.permute.xlu0 %2746
        %2748 = vrot.lane.b32.xlu0 %v2687, 52
        %v2749 = vpop.permute.xlu0 %2748
        %2750 = vrot.lane.b32.xlu0 %v2689, 52
        %v2751 = vpop.permute.xlu0 %2750
        %2752 = vrot.lane.b32.xlu0 %v2691, 52
        %v2753 = vpop.permute.xlu0 %2752
        %2754 = vrot.lane.b32.xlu0 %v2693, 52
        %v2755 = vpop.permute.xlu0 %2754
        %2756 = vrot.lane.b32.xlu0 %v2695, 52
        %v2757 = vpop.permute.xlu0 %2756
        %2758 = vrot.lane.b32.xlu0 %v2697, 52
        %v2759 = vpop.permute.xlu0 %2758
        %2760 = vrot.lane.b32.xlu0 %v2699, 52
        %v2761 = vpop.permute.xlu0 %2760
        %2762 = vrot.lane.b32.xlu0 %v2701, 52
        %v2763 = vpop.permute.xlu0 %2762
        %2764 = vrot.lane.b32.xlu0 %v2703, 52
        %v2765 = vpop.permute.xlu0 %2764
        %2766 = vrot.lane.b32.xlu0 %v2705, 52
        %v2767 = vpop.permute.xlu0 %2766
        %2768 = vrot.lane.b32.xlu0 %v2707, 52
        %v2769 = vpop.permute.xlu0 %2768
        %2770 = vrot.lane.b32.xlu0 %v2709, 52
        %v2771 = vpop.permute.xlu0 %2770
        %2772 = vrot.lane.b32.xlu0 %v2711, 52
        %v2773 = vpop.permute.xlu0 %2772
        %2774 = vrot.lane.b32.xlu0 %v2713, 52
        %v2775 = vpop.permute.xlu0 %2774
        %2776 = vrot.lane.b32.xlu0 %v2715, 52
        %v2777 = vpop.permute.xlu0 %2776
        %2778 = vrot.lane.b32.xlu0 %v2717, 52
        %v2779 = vpop.permute.xlu0 %2778
        %2780 = vrot.lane.b32.xlu0 %v2719, 52
        %v2781 = vpop.permute.xlu0 %2780
        %2782 = vrot.lane.b32.xlu0 %v2721, 52
        %v2783 = vpop.permute.xlu0 %2782
        %2784 = vrot.lane.b32.xlu0 %v2723, 52
        %v2785 = vpop.permute.xlu0 %2784
        %2786 = vrot.lane.b32.xlu0 %v2722, 52
        %v2787 = vpop.permute.xlu0 %2786
        %vm2820 = vcmask 736256
        %v2821 = vsel %vm2820, %v2311, %v2565
        %v2822 = vsel %vm2820, %v2316, %v2567
        %v2823 = vsel %vm2820, %v2321, %v2569
        %v2824 = vsel %vm2820, %v2326, %v2571
        %v2825 = vsel %vm2820, %v2331, %v2573
        %v2826 = vsel %vm2820, %v2336, %v2575
        %v2827 = vsel %vm2820, %v2341, %v2577
        %v2828 = vsel %vm2820, %v2346, %v2579
        %v2829 = vsel %vm2820, %v2351, %v2581
        %v2830 = vsel %vm2820, %v2356, %v2583
        %v2831 = vsel %vm2820, %v2361, %v2585
        %v2832 = vsel %vm2820, %v2366, %v2587
        %v2833 = vsel %vm2820, %v2371, %v2589
        %v2834 = vsel %vm2820, %v2376, %v2591
        %v2835 = vsel %vm2820, %v2381, %v2593
        %v2836 = vsel %vm2820, %v2386, %v2595
        %v2837 = vsel %vm2820, %v2391, %v2597
        %v2838 = vsel %vm2820, %v2396, %v2599
        %v2839 = vsel %vm2820, %v2401, %v2601
        %v2840 = vsel %vm2820, %v2406, %v2603
        %v2841 = vsel %vm2820, %v2411, %v2605
        %v2842 = vsel %vm2820, %v2416, %v2607
        %v2843 = vsel %vm2820, %v2421, %v2609
        %v2844 = vsel %vm2820, %v2426, %v2611
        %v2845 = vsel %vm2820, %v2431, %v2613
        %v2846 = vsel %vm2820, %v2436, %v2615
        %v2847 = vsel %vm2820, %v2441, %v2617
        %v2848 = vsel %vm2820, %v2446, %v2619
        %v2849 = vsel %vm2820, %v2451, %v2621
        %v2850 = vsel %vm2820, %v2456, %v2623
        %v2851 = vsel %vm2820, %v2461, %v2625
        %v2852 = vsel %vm2820, %v2466, %v2627
        %vm2853 = vcmask 424960
        %v2854 = vsel %vm2853, %v2565, %v2725
        %v2855 = vsel %vm2853, %v2567, %v2727
        %v2856 = vsel %vm2853, %v2569, %v2729
        %v2857 = vsel %vm2853, %v2571, %v2731
        %v2858 = vsel %vm2853, %v2573, %v2733
        %v2859 = vsel %vm2853, %v2575, %v2735
        %v2860 = vsel %vm2853, %v2577, %v2737
        %v2861 = vsel %vm2853, %v2579, %v2739
        %v2862 = vsel %vm2853, %v2581, %v2741
        %v2863 = vsel %vm2853, %v2583, %v2743
        %v2864 = vsel %vm2853, %v2585, %v2745
        %v2865 = vsel %vm2853, %v2587, %v2747
        %v2866 = vsel %vm2853, %v2589, %v2749
        %v2867 = vsel %vm2853, %v2591, %v2751
        %v2868 = vsel %vm2853, %v2593, %v2753
        %v2869 = vsel %vm2853, %v2595, %v2755
        %v2870 = vsel %vm2853, %v2597, %v2757
        %v2871 = vsel %vm2853, %v2599, %v2759
        %v2872 = vsel %vm2853, %v2601, %v2761
        %v2873 = vsel %vm2853, %v2603, %v2763
        %v2874 = vsel %vm2853, %v2605, %v2765
        %v2875 = vsel %vm2853, %v2607, %v2767
        %v2876 = vsel %vm2853, %v2609, %v2769
        %v2877 = vsel %vm2853, %v2611, %v2771
        %v2878 = vsel %vm2853, %v2613, %v2773
        %v2879 = vsel %vm2853, %v2615, %v2775
        %v2880 = vsel %vm2853, %v2617, %v2777
        %v2881 = vsel %vm2853, %v2619, %v2779
        %v2882 = vsel %vm2853, %v2621, %v2781
        %v2883 = vsel %vm2853, %v2623, %v2783
        %v2884 = vsel %vm2853, %v2625, %v2785
        %v2885 = vsel %vm2853, %v2627, %v2787
        %v2886 = vld [vmem:[#allocation7] sm:$0xff]
        %v2887 = vld [vmem:[#allocation7 + $0x8] sm:$0xff]
        %v2888 = vld [vmem:[#allocation7 + $0x10] sm:$0xff]
        %v2889 = vld [vmem:[#allocation7 + $0x18] sm:$0xff]
        %v2890 = vld [vmem:[#allocation7 + $0x20] sm:$0xff]
        %v2891 = vld [vmem:[#allocation7 + $0x28] sm:$0xff]
        %v2892 = vld [vmem:[#allocation7 + $0x30] sm:$0xff]
        %v2893 = vld [vmem:[#allocation7 + $0x38] sm:$0xff]
        %v2894 = vld [vmem:[#allocation7 + $0x40] sm:$0xff]
        %v2895 = vld [vmem:[#allocation7 + $0x48] sm:$0xff]
        %v2896 = vld [vmem:[#allocation7 + $0x50] sm:$0xff]
        %v2897 = vld [vmem:[#allocation7 + $0x58] sm:$0xff]
        %v2898 = vld [vmem:[#allocation7 + $0x60] sm:$0xff]
        %v2899 = vld [vmem:[#allocation7 + $0x68] sm:$0xff]
        %v2900 = vld [vmem:[#allocation7 + $0x70] sm:$0xff]
        %v2901 = vld [vmem:[#allocation7 + $0x78] sm:$0xff]
        %v2902 = vld [vmem:[#allocation7 + $0x80] sm:$0xff]
        %v2903 = vld [vmem:[#allocation7 + $0x88] sm:$0xff]
        %v2904 = vld [vmem:[#allocation7 + $0x90] sm:$0xff]
        %v2905 = vld [vmem:[#allocation7 + $0x98] sm:$0xff]
        %v2906 = vld [vmem:[#allocation7 + $0xa0] sm:$0xff]
        %v2907 = vld [vmem:[#allocation7 + $0xa8] sm:$0xff]
        %v2908 = vld [vmem:[#allocation7 + $0xb0] sm:$0xff]
        %v2909 = vld [vmem:[#allocation7 + $0xb8] sm:$0xff]
        %v2910 = vld [vmem:[#allocation7 + $0xc0] sm:$0xff]
        %v2911 = vld [vmem:[#allocation7 + $0xc8] sm:$0xff]
        %v2912 = vld [vmem:[#allocation7 + $0xd0] sm:$0xff]
        %v2913 = vld [vmem:[#allocation7 + $0xd8] sm:$0xff]
        %v2914 = vld [vmem:[#allocation7 + $0xe0] sm:$0xff]
        %v2915 = vld [vmem:[#allocation7 + $0xe8] sm:$0xff]
        %v2916 = vld [vmem:[#allocation7 + $0xf0] sm:$0xff]
        %v2917 = vld [vmem:[#allocation7 + $0xf8] sm:$0xff]
        %v2918 = vld [vmem:[#allocation7 + $0x100] sm:$0xff]
        %v2919 = vld [vmem:[#allocation7 + $0x108] sm:$0xff]
        %v2920 = vld [vmem:[#allocation7 + $0x110] sm:$0xff]
        %v2921 = vld [vmem:[#allocation7 + $0x118] sm:$0xff]
        %v2922 = vld [vmem:[#allocation7 + $0x120] sm:$0xff]
        %v2923 = vld [vmem:[#allocation7 + $0x128] sm:$0xff]
        %v2924 = vld [vmem:[#allocation7 + $0x130] sm:$0xff]
        %v2925 = vld [vmem:[#allocation7 + $0x138] sm:$0xff]
        %v2926 = vld [vmem:[#allocation7 + $0x140] sm:$0xff]
        %v2927 = vld [vmem:[#allocation7 + $0x148] sm:$0xff]
        %v2928 = vld [vmem:[#allocation7 + $0x150] sm:$0xff]
        %v2929 = vld [vmem:[#allocation7 + $0x158] sm:$0xff]
        %v2930 = vld [vmem:[#allocation7 + $0x160] sm:$0xff]
        %v2931 = vld [vmem:[#allocation7 + $0x168] sm:$0xff]
        %v2932 = vld [vmem:[#allocation7 + $0x170] sm:$0xff]
        %v2933 = vld [vmem:[#allocation7 + $0x178] sm:$0xff]
        %v2934 = vld [vmem:[#allocation7 + $0x180] sm:$0xff]
        %v2935 = vld [vmem:[#allocation7 + $0x188] sm:$0xff]
        %v2936 = vld [vmem:[#allocation7 + $0x190] sm:$0xff]
        %v2937 = vld [vmem:[#allocation7 + $0x198] sm:$0xff]
        %v2938 = vld [vmem:[#allocation7 + $0x1a0] sm:$0xff]
        %v2939 = vld [vmem:[#allocation7 + $0x1a8] sm:$0xff]
        %v2940 = vld [vmem:[#allocation7 + $0x1b0] sm:$0xff]
        %v2941 = vld [vmem:[#allocation7 + $0x1b8] sm:$0xff]
        %v2942 = vld [vmem:[#allocation7 + $0x1c0] sm:$0xff]
        %v2943 = vld [vmem:[#allocation7 + $0x1c8] sm:$0xff]
        %v2944 = vld [vmem:[#allocation7 + $0x1d0] sm:$0xff]
        %v2945 = vld [vmem:[#allocation7 + $0x1d8] sm:$0xff]
        %v2946 = vld [vmem:[#allocation7 + $0x1e0] sm:$0xff]
        %v2947 = vld [vmem:[#allocation7 + $0x1e8] sm:$0xff]
        %v2948 = vld [vmem:[#allocation7 + $0x1f0] sm:$0xff]
        %v2949 = vld [vmem:[#allocation7 + $0x1f8] sm:$0xff]
        %v2950 = vld [vmem:[#allocation7 + $0x200] sm:$0xff]
        %v2951 = vld [vmem:[#allocation7 + $0x208] sm:$0xff]
        %v2952 = vld [vmem:[#allocation7 + $0x210] sm:$0x3f]
        %v2953 = vld [vmem:[#allocation7 + $0x218] sm:$0x3f]
        %v2954 = vld [vmem:[%s5] sm:$0x3]
        %v2956 = vlaneseq
        %v2957 = vshrl.u32 %v2956, 7
        %v2958 = vsub.s32 0, %v2957
        %v2959 = vrot.slane %v2954, %v2958
        %v2960 = vlaneseq
        %v2961 = vshrl.u32 %v2960, 7
        %v2962 = vsub.s32 1, %v2961
        %v2963 = vrot.slane %v2954, %v2962
        %vm2966 = vcmask 113664
        %v2967 = vsel %vm2966, %v2725, 0
        %v2969 = vsel %vm2966, %v2727, 0
        %v2971 = vsel %vm2966, %v2729, 0
        %v2973 = vsel %vm2966, %v2731, 0
        %v2975 = vsel %vm2966, %v2733, 0
        %v2977 = vsel %vm2966, %v2735, 0
        %v2979 = vsel %vm2966, %v2737, 0
        %v2981 = vsel %vm2966, %v2739, 0
        %v2983 = vsel %vm2966, %v2741, 0
        %v2985 = vsel %vm2966, %v2743, 0
        %v2987 = vsel %vm2966, %v2745, 0
        %v2989 = vsel %vm2966, %v2747, 0
        %v2991 = vsel %vm2966, %v2749, 0
        %v2993 = vsel %vm2966, %v2751, 0
        %v2995 = vsel %vm2966, %v2753, 0
        %v2997 = vsel %vm2966, %v2755, 0
        %v2999 = vsel %vm2966, %v2757, 0
        %v3001 = vsel %vm2966, %v2759, 0
        %v3003 = vsel %vm2966, %v2761, 0
        %v3005 = vsel %vm2966, %v2763, 0
        %v3007 = vsel %vm2966, %v2765, 0
        %v3009 = vsel %vm2966, %v2767, 0
        %v3011 = vsel %vm2966, %v2769, 0
        %v3013 = vsel %vm2966, %v2771, 0
        %v3015 = vsel %vm2966, %v2773, 0
        %v3017 = vsel %vm2966, %v2775, 0
        %v3019 = vsel %vm2966, %v2777, 0
        %v3021 = vsel %vm2966, %v2779, 0
        %v3023 = vsel %vm2966, %v2781, 0
        %v3025 = vsel %vm2966, %v2783, 0
        %v3027 = vsel %vm2966, %v2785, 0
        %v3029 = vsel %vm2966, %v2787, 0
        %v3032 = vsel %vm769, %v2952, 0
        %v3035 = vsel %vm769, %v2953, 0
        %3037 = vmatprep.subr.mxu0 %v2887
        %3038 = vmatpush1.msra.mxu0 %v2886
        %3039 = vmatprep.subr.mxu0 %v2889
        %3040 = vmatpush1.msra.mxu0 %v2888
        %3041 = vmatprep.subr.mxu0 %v2891
        %3042 = vmatpush1.msra.mxu0 %v2890
        %3043 = vmatprep.subr.mxu0 %v2893
        %3044 = vmatpush1.msra.mxu0 %v2892
        %3045 = vmatprep.subr.mxu0 %v2895
        %3046 = vmatpush1.msra.mxu0 %v2894
        %3047 = vmatprep.subr.mxu0 %v2897
        %3048 = vmatpush1.msra.mxu0 %v2896
        %3049 = vmatprep.subr.mxu0 %v2899
        %3050 = vmatpush1.msra.mxu0 %v2898
        %3051 = vmatprep.subr.mxu0 %v2901
        %3052 = vmatpush1.msra.mxu0 %v2900
        %3053 = vmatprep.subr.mxu0 %v2903
        %3054 = vmatpush1.msra.mxu0 %v2902
        %3055 = vmatprep.subr.mxu0 %v2905
        %3056 = vmatpush1.msra.mxu0 %v2904
        %3057 = vmatprep.subr.mxu0 %v2907
        %3058 = vmatpush1.msra.mxu0 %v2906
        %3059 = vmatprep.subr.mxu0 %v2909
        %3060 = vmatpush1.msra.mxu0 %v2908
        %3061 = vmatprep.subr.mxu0 %v2911
        %3062 = vmatpush1.msra.mxu0 %v2910
        %3063 = vmatprep.subr.mxu0 %v2913
        %3064 = vmatpush1.msra.mxu0 %v2912
        %3065 = vmatprep.subr.mxu0 %v2915
        %3066 = vmatpush1.msra.mxu0 %v2914
        %3067 = vmatprep.subr.mxu0 %v2917
        %3068 = vmatpush1.msra.mxu0 %v2916
        %3069 = vmatprep.subr.mxu0 %v2919
        %3070 = vmatpush1.msra.mxu0 %v2918
        %3071 = vmatprep.subr.mxu0 %v2921
        %3072 = vmatpush1.msra.mxu0 %v2920
        %3073 = vmatprep.subr.mxu0 %v2923
        %3074 = vmatpush1.msra.mxu0 %v2922
        %3075 = vmatprep.subr.mxu0 %v2925
        %3076 = vmatpush1.msra.mxu0 %v2924
        %3077 = vmatprep.subr.mxu0 %v2927
        %3078 = vmatpush1.msra.mxu0 %v2926
        %3079 = vmatprep.subr.mxu0 %v2929
        %3080 = vmatpush1.msra.mxu0 %v2928
        %3081 = vmatprep.subr.mxu0 %v2931
        %3082 = vmatpush1.msra.mxu0 %v2930
        %3083 = vmatprep.subr.mxu0 %v2933
        %3084 = vmatpush1.msra.mxu0 %v2932
        %3085 = vmatprep.subr.mxu0 %v2935
        %3086 = vmatpush1.msra.mxu0 %v2934
        %3087 = vmatprep.subr.mxu0 %v2937
        %3088 = vmatpush1.msra.mxu0 %v2936
        %3089 = vmatprep.subr.mxu0 %v2939
        %3090 = vmatpush1.msra.mxu0 %v2938
        %3091 = vmatprep.subr.mxu0 %v2941
        %3092 = vmatpush1.msra.mxu0 %v2940
        %3093 = vmatprep.subr.mxu0 %v2943
        %3094 = vmatpush1.msra.mxu0 %v2942
        %3095 = vmatprep.subr.mxu0 %v2945
        %3096 = vmatpush1.msra.mxu0 %v2944
        %3097 = vmatprep.subr.mxu0 %v2947
        %3098 = vmatpush1.msra.mxu0 %v2946
        %3099 = vmatprep.subr.mxu0 %v2949
        %3100 = vmatpush1.msra.mxu0 %v2948
        %3101 = vmatprep.mubr.f32.mxu0 %v2854
        %3102 = vmatmul.mubr.f32.gmra.mrb[0].mxu0 %v2821
        %v3103 = vpop.f32.mrb[0].mxu0
        %v3104 = vadd.f32 %v2959, %v3103
        %v3105 = vpop.f32.mrb[0].mxu0
        %v3106 = vadd.f32 %v2963, %v3105
        %3107 = vmatprep.mubr.f32.mxu0 %v2855
        %3108 = vmatmul.mubr.f32.gmra.mrb[0].mxu0 %v2822
        %v3109 = vpop.f32.mrb[0].mxu0
        %v3110 = vadd.f32 %v2959, %v3109
        %v3111 = vpop.f32.mrb[0].mxu0
        %v3112 = vadd.f32 %v2963, %v3111
        %3113 = vmatprep.mubr.f32.mxu0 %v2856
        %3114 = vmatmul.mubr.f32.gmra.mrb[0].mxu0 %v2823
        %v3115 = vpop.f32.mrb[0].mxu0
        %v3116 = vadd.f32 %v2959, %v3115
        %v3117 = vpop.f32.mrb[0].mxu0
        %v3118 = vadd.f32 %v2963, %v3117
        %3119 = vmatprep.mubr.f32.mxu0 %v2857
        %3120 = vmatmul.mubr.f32.gmra.mrb[0].mxu0 %v2824
        %v3121 = vpop.f32.mrb[0].mxu0
        %v3122 = vadd.f32 %v2959, %v3121
        %v3123 = vpop.f32.mrb[0].mxu0
        %v3124 = vadd.f32 %v2963, %v3123
        %3125 = vmatprep.mubr.f32.mxu0 %v2858
        %3126 = vmatmul.mubr.f32.gmra.mrb[0].mxu0 %v2825
        %v3127 = vpop.f32.mrb[0].mxu0
        %v3128 = vadd.f32 %v2959, %v3127
        %v3129 = vpop.f32.mrb[0].mxu0
        %v3130 = vadd.f32 %v2963, %v3129
        %3131 = vmatprep.mubr.f32.mxu0 %v2859
        %3132 = vmatmul.mubr.f32.gmra.mrb[0].mxu0 %v2826
        %v3133 = vpop.f32.mrb[0].mxu0
        %v3134 = vadd.f32 %v2959, %v3133
        %v3135 = vpop.f32.mrb[0].mxu0
        %v3136 = vadd.f32 %v2963, %v3135
        %3137 = vmatprep.mubr.f32.mxu0 %v2860
        %3138 = vmatmul.mubr.f32.gmra.mrb[0].mxu0 %v2827
        %v3139 = vpop.f32.mrb[0].mxu0
        %v3140 = vadd.f32 %v2959, %v3139
        %v3141 = vpop.f32.mrb[0].mxu0
        %v3142 = vadd.f32 %v2963, %v3141
        %3143 = vmatprep.mubr.f32.mxu0 %v2861
        %3144 = vmatmul.mubr.f32.gmra.mrb[0].mxu0 %v2828
        %v3145 = vpop.f32.mrb[0].mxu0
        %v3146 = vadd.f32 %v2959, %v3145
        %v3147 = vpop.f32.mrb[0].mxu0
        %v3148 = vadd.f32 %v2963, %v3147
        %3149 = vmatprep.mubr.f32.mxu0 %v2862
        %3150 = vmatmul.mubr.f32.gmra.mrb[0].mxu0 %v2829
        %v3151 = vpop.f32.mrb[0].mxu0
        %v3152 = vadd.f32 %v2959, %v3151
        %v3153 = vpop.f32.mrb[0].mxu0
        %v3154 = vadd.f32 %v2963, %v3153
        %3155 = vmatprep.mubr.f32.mxu0 %v2863
        %3156 = vmatmul.mubr.f32.gmra.mrb[0].mxu0 %v2830
        %v3157 = vpop.f32.mrb[0].mxu0
        %v3158 = vadd.f32 %v2959, %v3157
        %v3159 = vpop.f32.mrb[0].mxu0
        %v3160 = vadd.f32 %v2963, %v3159
        %3161 = vmatprep.mubr.f32.mxu0 %v2864
        %3162 = vmatmul.mubr.f32.gmra.mrb[0].mxu0 %v2831
        %v3163 = vpop.f32.mrb[0].mxu0
        %v3164 = vadd.f32 %v2959, %v3163
        %v3165 = vpop.f32.mrb[0].mxu0
        %v3166 = vadd.f32 %v2963, %v3165
        %3167 = vmatprep.mubr.f32.mxu0 %v2865
        %3168 = vmatmul.mubr.f32.gmra.mrb[0].mxu0 %v2832
        %v3169 = vpop.f32.mrb[0].mxu0
        %v3170 = vadd.f32 %v2959, %v3169
        %v3171 = vpop.f32.mrb[0].mxu0
        %v3172 = vadd.f32 %v2963, %v3171
        %3173 = vmatprep.mubr.f32.mxu0 %v2866
        %3174 = vmatmul.mubr.f32.gmra.mrb[0].mxu0 %v2833
        %v3175 = vpop.f32.mrb[0].mxu0
        %v3176 = vadd.f32 %v2959, %v3175
        %v3177 = vpop.f32.mrb[0].mxu0
        %v3178 = vadd.f32 %v2963, %v3177
        %3179 = vmatprep.mubr.f32.mxu0 %v2867
        %3180 = vmatmul.mubr.f32.gmra.mrb[0].mxu0 %v2834
        %v3181 = vpop.f32.mrb[0].mxu0
        %v3182 = vadd.f32 %v2959, %v3181
        %v3183 = vpop.f32.mrb[0].mxu0
        %v3184 = vadd.f32 %v2963, %v3183
        %3185 = vmatprep.mubr.f32.mxu0 %v2868
        %3186 = vmatmul.mubr.f32.gmra.mrb[0].mxu0 %v2835
        %v3187 = vpop.f32.mrb[0].mxu0
        %v3188 = vadd.f32 %v2959, %v3187
        %v3189 = vpop.f32.mrb[0].mxu0
        %v3190 = vadd.f32 %v2963, %v3189
        %3191 = vmatprep.mubr.f32.mxu0 %v2869
        %3192 = vmatmul.mubr.f32.gmra.mrb[0].mxu0 %v2836
        %v3193 = vpop.f32.mrb[0].mxu0
        %v3194 = vadd.f32 %v2959, %v3193
        %v3195 = vpop.f32.mrb[0].mxu0
        %v3196 = vadd.f32 %v2963, %v3195
        %3197 = vmatprep.mubr.f32.mxu0 %v2870
        %3198 = vmatmul.mubr.f32.gmra.mrb[0].mxu0 %v2837
        %v3199 = vpop.f32.mrb[0].mxu0
        %v3200 = vadd.f32 %v2959, %v3199
        %v3201 = vpop.f32.mrb[0].mxu0
        %v3202 = vadd.f32 %v2963, %v3201
        %3203 = vmatprep.mubr.f32.mxu0 %v2871
        %3204 = vmatmul.mubr.f32.gmra.mrb[0].mxu0 %v2838
        %v3205 = vpop.f32.mrb[0].mxu0
        %v3206 = vadd.f32 %v2959, %v3205
        %v3207 = vpop.f32.mrb[0].mxu0
        %v3208 = vadd.f32 %v2963, %v3207
        %3209 = vmatprep.mubr.f32.mxu0 %v2872
        %3210 = vmatmul.mubr.f32.gmra.mrb[0].mxu0 %v2839
        %v3211 = vpop.f32.mrb[0].mxu0
        %v3212 = vadd.f32 %v2959, %v3211
        %v3213 = vpop.f32.mrb[0].mxu0
        %v3214 = vadd.f32 %v2963, %v3213
        %3215 = vmatprep.mubr.f32.mxu0 %v2873
        %3216 = vmatmul.mubr.f32.gmra.mrb[0].mxu0 %v2840
        %v3217 = vpop.f32.mrb[0].mxu0
        %v3218 = vadd.f32 %v2959, %v3217
        %v3219 = vpop.f32.mrb[0].mxu0
        %v3220 = vadd.f32 %v2963, %v3219
        %3221 = vmatprep.mubr.f32.mxu0 %v2874
        %3222 = vmatmul.mubr.f32.gmra.mrb[0].mxu0 %v2841
        %v3223 = vpop.f32.mrb[0].mxu0
        %v3224 = vadd.f32 %v2959, %v3223
        %v3225 = vpop.f32.mrb[0].mxu0
        %v3226 = vadd.f32 %v2963, %v3225
        %3227 = vmatprep.mubr.f32.mxu0 %v2875
        %3228 = vmatmul.mubr.f32.gmra.mrb[0].mxu0 %v2842
        %v3229 = vpop.f32.mrb[0].mxu0
        %v3230 = vadd.f32 %v2959, %v3229
        %v3231 = vpop.f32.mrb[0].mxu0
        %v3232 = vadd.f32 %v2963, %v3231
        %3233 = vmatprep.mubr.f32.mxu0 %v2876
        %3234 = vmatmul.mubr.f32.gmra.mrb[0].mxu0 %v2843
        %v3235 = vpop.f32.mrb[0].mxu0
        %v3236 = vadd.f32 %v2959, %v3235
        %v3237 = vpop.f32.mrb[0].mxu0
        %v3238 = vadd.f32 %v2963, %v3237
        %3239 = vmatprep.mubr.f32.mxu0 %v2877
        %3240 = vmatmul.mubr.f32.gmra.mrb[0].mxu0 %v2844
        %v3241 = vpop.f32.mrb[0].mxu0
        %v3242 = vadd.f32 %v2959, %v3241
        %v3243 = vpop.f32.mrb[0].mxu0
        %v3244 = vadd.f32 %v2963, %v3243
        %3245 = vmatprep.mubr.f32.mxu0 %v2878
        %3246 = vmatmul.mubr.f32.gmra.mrb[0].mxu0 %v2845
        %v3247 = vpop.f32.mrb[0].mxu0
        %v3248 = vadd.f32 %v2959, %v3247
        %v3249 = vpop.f32.mrb[0].mxu0
        %v3250 = vadd.f32 %v2963, %v3249
        %3251 = vmatprep.mubr.f32.mxu0 %v2879
        %3252 = vmatmul.mubr.f32.gmra.mrb[0].mxu0 %v2846
        %v3253 = vpop.f32.mrb[0].mxu0
        %v3254 = vadd.f32 %v2959, %v3253
        %v3255 = vpop.f32.mrb[0].mxu0
        %v3256 = vadd.f32 %v2963, %v3255
        %3257 = vmatprep.mubr.f32.mxu0 %v2880
        %3258 = vmatmul.mubr.f32.gmra.mrb[0].mxu0 %v2847
        %v3259 = vpop.f32.mrb[0].mxu0
        %v3260 = vadd.f32 %v2959, %v3259
        %v3261 = vpop.f32.mrb[0].mxu0
        %v3262 = vadd.f32 %v2963, %v3261
        %3263 = vmatprep.mubr.f32.mxu0 %v2881
        %3264 = vmatmul.mubr.f32.gmra.mrb[0].mxu0 %v2848
        %v3265 = vpop.f32.mrb[0].mxu0
        %v3266 = vadd.f32 %v2959, %v3265
        %v3267 = vpop.f32.mrb[0].mxu0
        %v3268 = vadd.f32 %v2963, %v3267
        %3269 = vmatprep.mubr.f32.mxu0 %v2882
        %3270 = vmatmul.mubr.f32.gmra.mrb[0].mxu0 %v2849
        %v3271 = vpop.f32.mrb[0].mxu0
        %v3272 = vadd.f32 %v2959, %v3271
        %v3273 = vpop.f32.mrb[0].mxu0
        %v3274 = vadd.f32 %v2963, %v3273
        %3275 = vmatprep.mubr.f32.mxu0 %v2883
        %3276 = vmatmul.mubr.f32.gmra.mrb[0].mxu0 %v2850
        %v3277 = vpop.f32.mrb[0].mxu0
        %v3278 = vadd.f32 %v2959, %v3277
        %v3279 = vpop.f32.mrb[0].mxu0
        %v3280 = vadd.f32 %v2963, %v3279
        %3281 = vmatprep.mubr.f32.mxu0 %v2884
        %3282 = vmatmul.mubr.f32.gmra.mrb[0].mxu0 %v2851
        %v3283 = vpop.f32.mrb[0].mxu0
        %v3284 = vadd.f32 %v2959, %v3283
        %v3285 = vpop.f32.mrb[0].mxu0
        %v3286 = vadd.f32 %v2963, %v3285
        %3287 = vmatprep.mubr.f32.mxu0 %v2885
        %3288 = vmatmul.mubr.f32.gmra.mrb[0].mxu0 %v2852
        %v3289 = vpop.f32.mrb[0].mxu0
        %v3290 = vadd.f32 %v2959, %v3289
        %v3291 = vpop.f32.mrb[0].mxu0
        %v3292 = vadd.f32 %v2963, %v3291
        %3293 = vdwg.mxu0
        %3294 = vmatprep.subr.mxu0 %v2951
        %3295 = vmatpush1.msra.mxu0 %v2950
        %3296 = vmatprep.subr.mxu0 %v3035
        %3297 = vmatpush1.msra.mxu0 %v3032
        %3298 = vmatprep.subr.mxu0 0.0
        %3299 = vmatpush1.msra.mxu0 0.0
        %3300 = vmatprep.subr.mxu0 0.0
        %3301 = vmatpush1.msra.mxu0 0.0
        %3302 = vmatprep.subr.mxu0 0.0
        %3303 = vmatpush1.msra.mxu0 0.0
        %3304 = vmatprep.subr.mxu0 0.0
        %3305 = vmatpush1.msra.mxu0 0.0
        %3306 = vmatprep.subr.mxu0 0.0
        %3307 = vmatpush1.msra.mxu0 0.0
        %3308 = vmatprep.subr.mxu0 0.0
        %3309 = vmatpush1.msra.mxu0 0.0
        %3310 = vmatprep.subr.mxu0 0.0
        %3311 = vmatpush1.msra.mxu0 0.0
        %3312 = vmatprep.subr.mxu0 0.0
        %3313 = vmatpush1.msra.mxu0 0.0
        %3314 = vmatprep.subr.mxu0 0.0
        %3315 = vmatpush1.msra.mxu0 0.0
        %3316 = vmatprep.subr.mxu0 0.0
        %3317 = vmatpush1.msra.mxu0 0.0
        %3318 = vmatprep.subr.mxu0 0.0
        %3319 = vmatpush1.msra.mxu0 0.0
        %3320 = vmatprep.subr.mxu0 0.0
        %3321 = vmatpush1.msra.mxu0 0.0
        %3322 = vmatprep.subr.mxu0 0.0
        %3323 = vmatpush1.msra.mxu0 0.0
        %3324 = vmatprep.subr.mxu0 0.0
        %3325 = vmatpush1.msra.mxu0 0.0
        %3326 = vmatprep.subr.mxu0 0.0
        %3327 = vmatpush1.msra.mxu0 0.0
        %3328 = vmatprep.subr.mxu0 0.0
        %3329 = vmatpush1.msra.mxu0 0.0
        %3330 = vmatprep.subr.mxu0 0.0
        %3331 = vmatpush1.msra.mxu0 0.0
        %3332 = vmatprep.subr.mxu0 0.0
        %3333 = vmatpush1.msra.mxu0 0.0
        %3334 = vmatprep.subr.mxu0 0.0
        %3335 = vmatpush1.msra.mxu0 0.0
        %3336 = vmatprep.subr.mxu0 0.0
        %3337 = vmatpush1.msra.mxu0 0.0
        %3338 = vmatprep.subr.mxu0 0.0
        %3339 = vmatpush1.msra.mxu0 0.0
        %3340 = vmatprep.subr.mxu0 0.0
        %3341 = vmatpush1.msra.mxu0 0.0
        %3342 = vmatprep.subr.mxu0 0.0
        %3343 = vmatpush1.msra.mxu0 0.0
        %3344 = vmatprep.subr.mxu0 0.0
        %3345 = vmatpush1.msra.mxu0 0.0
        %3346 = vmatprep.subr.mxu0 0.0
        %3347 = vmatpush1.msra.mxu0 0.0
        %3348 = vmatprep.subr.mxu0 0.0
        %3349 = vmatpush1.msra.mxu0 0.0
        %3350 = vmatprep.subr.mxu0 0.0
        %3351 = vmatpush1.msra.mxu0 0.0
        %3352 = vmatprep.subr.mxu0 0.0
        %3353 = vmatpush1.msra.mxu0 0.0
        %3354 = vmatprep.subr.mxu0 0.0
        %3355 = vmatpush1.msra.mxu0 0.0
        %3356 = vmatprep.subr.mxu0 0.0
        %3357 = vmatpush1.msra.mxu0 0.0
        %3358 = vmatprep.mubr.f32.mxu0 0.0
        %3359 = vmatmul.mubr.f32.gmra.mrb[0].mxu0 %v2967
        %v3360 = vpop.f32.mrb[0].mxu0
        %v3361 = vadd.f32 %v3104, %v3360
        %v3362 = vpop.f32.mrb[0].mxu0
        %v3363 = vadd.f32 %v3106, %v3362
        %3364 = vmatprep.mubr.f32.mxu0 0.0
        %3365 = vmatmul.mubr.f32.gmra.mrb[0].mxu0 %v2969
        %v3366 = vpop.f32.mrb[0].mxu0
        %v3367 = vadd.f32 %v3110, %v3366
        %v3368 = vpop.f32.mrb[0].mxu0
        %v3369 = vadd.f32 %v3112, %v3368
        %3370 = vmatprep.mubr.f32.mxu0 0.0
        %3371 = vmatmul.mubr.f32.gmra.mrb[0].mxu0 %v2971
        %v3372 = vpop.f32.mrb[0].mxu0
        %v3373 = vadd.f32 %v3116, %v3372
        %v3374 = vpop.f32.mrb[0].mxu0
        %v3375 = vadd.f32 %v3118, %v3374
        %3376 = vmatprep.mubr.f32.mxu0 0.0
        %3377 = vmatmul.mubr.f32.gmra.mrb[0].mxu0 %v2973
        %v3378 = vpop.f32.mrb[0].mxu0
        %v3379 = vadd.f32 %v3122, %v3378
        %v3380 = vpop.f32.mrb[0].mxu0
        %v3381 = vadd.f32 %v3124, %v3380
        %3382 = vmatprep.mubr.f32.mxu0 0.0
        %3383 = vmatmul.mubr.f32.gmra.mrb[0].mxu0 %v2975
        %v3384 = vpop.f32.mrb[0].mxu0
        %v3385 = vadd.f32 %v3128, %v3384
        %v3386 = vpop.f32.mrb[0].mxu0
        %v3387 = vadd.f32 %v3130, %v3386
        %3388 = vmatprep.mubr.f32.mxu0 0.0
        %3389 = vmatmul.mubr.f32.gmra.mrb[0].mxu0 %v2977
        %v3390 = vpop.f32.mrb[0].mxu0
        %v3391 = vadd.f32 %v3134, %v3390
        %v3392 = vpop.f32.mrb[0].mxu0
        %v3393 = vadd.f32 %v3136, %v3392
        %3394 = vmatprep.mubr.f32.mxu0 0.0
        %3395 = vmatmul.mubr.f32.gmra.mrb[0].mxu0 %v2979
        %v3396 = vpop.f32.mrb[0].mxu0
        %v3397 = vadd.f32 %v3140, %v3396
        %v3398 = vpop.f32.mrb[0].mxu0
        %v3399 = vadd.f32 %v3142, %v3398
        %3400 = vmatprep.mubr.f32.mxu0 0.0
        %3401 = vmatmul.mubr.f32.gmra.mrb[0].mxu0 %v2981
        %v3402 = vpop.f32.mrb[0].mxu0
        %v3403 = vadd.f32 %v3146, %v3402
        %v3404 = vpop.f32.mrb[0].mxu0
        %v3405 = vadd.f32 %v3148, %v3404
        %3406 = vmatprep.mubr.f32.mxu0 0.0
        %3407 = vmatmul.mubr.f32.gmra.mrb[0].mxu0 %v2983
        %v3408 = vpop.f32.mrb[0].mxu0
        %v3409 = vadd.f32 %v3152, %v3408
        %v3410 = vpop.f32.mrb[0].mxu0
        %v3411 = vadd.f32 %v3154, %v3410
        %3412 = vmatprep.mubr.f32.mxu0 0.0
        %3413 = vmatmul.mubr.f32.gmra.mrb[0].mxu0 %v2985
        %v3414 = vpop.f32.mrb[0].mxu0
        %v3415 = vadd.f32 %v3158, %v3414
        %v3416 = vpop.f32.mrb[0].mxu0
        %v3417 = vadd.f32 %v3160, %v3416
        %3418 = vmatprep.mubr.f32.mxu0 0.0
        %3419 = vmatmul.mubr.f32.gmra.mrb[0].mxu0 %v2987
        %v3420 = vpop.f32.mrb[0].mxu0
        %v3421 = vadd.f32 %v3164, %v3420
        %v3422 = vpop.f32.mrb[0].mxu0
        %v3423 = vadd.f32 %v3166, %v3422
        %3424 = vmatprep.mubr.f32.mxu0 0.0
        %3425 = vmatmul.mubr.f32.gmra.mrb[0].mxu0 %v2989
        %v3426 = vpop.f32.mrb[0].mxu0
        %v3427 = vadd.f32 %v3170, %v3426
        %v3428 = vpop.f32.mrb[0].mxu0
        %v3429 = vadd.f32 %v3172, %v3428
        %3430 = vmatprep.mubr.f32.mxu0 0.0
        %3431 = vmatmul.mubr.f32.gmra.mrb[0].mxu0 %v2991
        %v3432 = vpop.f32.mrb[0].mxu0
        %v3433 = vadd.f32 %v3176, %v3432
        %v3434 = vpop.f32.mrb[0].mxu0
        %v3435 = vadd.f32 %v3178, %v3434
        %3436 = vmatprep.mubr.f32.mxu0 0.0
        %3437 = vmatmul.mubr.f32.gmra.mrb[0].mxu0 %v2993
        %v3438 = vpop.f32.mrb[0].mxu0
        %v3439 = vadd.f32 %v3182, %v3438
        %v3440 = vpop.f32.mrb[0].mxu0
        %v3441 = vadd.f32 %v3184, %v3440
        %3442 = vmatprep.mubr.f32.mxu0 0.0
        %3443 = vmatmul.mubr.f32.gmra.mrb[0].mxu0 %v2995
        %v3444 = vpop.f32.mrb[0].mxu0
        %v3445 = vadd.f32 %v3188, %v3444
        %v3446 = vpop.f32.mrb[0].mxu0
        %v3447 = vadd.f32 %v3190, %v3446
        %3448 = vmatprep.mubr.f32.mxu0 0.0
        %3449 = vmatmul.mubr.f32.gmra.mrb[0].mxu0 %v2997
        %v3450 = vpop.f32.mrb[0].mxu0
        %v3451 = vadd.f32 %v3194, %v3450
        %v3452 = vpop.f32.mrb[0].mxu0
        %v3453 = vadd.f32 %v3196, %v3452
        %3454 = vmatprep.mubr.f32.mxu0 0.0
        %3455 = vmatmul.mubr.f32.gmra.mrb[0].mxu0 %v2999
        %v3456 = vpop.f32.mrb[0].mxu0
        %v3457 = vadd.f32 %v3200, %v3456
        %v3458 = vpop.f32.mrb[0].mxu0
        %v3459 = vadd.f32 %v3202, %v3458
        %3460 = vmatprep.mubr.f32.mxu0 0.0
        %3461 = vmatmul.mubr.f32.gmra.mrb[0].mxu0 %v3001
        %v3462 = vpop.f32.mrb[0].mxu0
        %v3463 = vadd.f32 %v3206, %v3462
        %v3464 = vpop.f32.mrb[0].mxu0
        %v3465 = vadd.f32 %v3208, %v3464
        %3466 = vmatprep.mubr.f32.mxu0 0.0
        %3467 = vmatmul.mubr.f32.gmra.mrb[0].mxu0 %v3003
        %v3468 = vpop.f32.mrb[0].mxu0
        %v3469 = vadd.f32 %v3212, %v3468
        %v3470 = vpop.f32.mrb[0].mxu0
        %v3471 = vadd.f32 %v3214, %v3470
        %3472 = vmatprep.mubr.f32.mxu0 0.0
        %3473 = vmatmul.mubr.f32.gmra.mrb[0].mxu0 %v3005
        %v3474 = vpop.f32.mrb[0].mxu0
        %v3475 = vadd.f32 %v3218, %v3474
        %v3476 = vpop.f32.mrb[0].mxu0
        %v3477 = vadd.f32 %v3220, %v3476
        %3478 = vmatprep.mubr.f32.mxu0 0.0
        %3479 = vmatmul.mubr.f32.gmra.mrb[0].mxu0 %v3007
        %v3480 = vpop.f32.mrb[0].mxu0
        %v3481 = vadd.f32 %v3224, %v3480
        %v3482 = vpop.f32.mrb[0].mxu0
        %v3483 = vadd.f32 %v3226, %v3482
        %3484 = vmatprep.mubr.f32.mxu0 0.0
        %3485 = vmatmul.mubr.f32.gmra.mrb[0].mxu0 %v3009
        %v3486 = vpop.f32.mrb[0].mxu0
        %v3487 = vadd.f32 %v3230, %v3486
        %v3488 = vpop.f32.mrb[0].mxu0
        %v3489 = vadd.f32 %v3232, %v3488
        %3490 = vmatprep.mubr.f32.mxu0 0.0
        %3491 = vmatmul.mubr.f32.gmra.mrb[0].mxu0 %v3011
        %v3492 = vpop.f32.mrb[0].mxu0
        %v3493 = vadd.f32 %v3236, %v3492
        %v3494 = vpop.f32.mrb[0].mxu0
        %v3495 = vadd.f32 %v3238, %v3494
        %3496 = vmatprep.mubr.f32.mxu0 0.0
        %3497 = vmatmul.mubr.f32.gmra.mrb[0].mxu0 %v3013
        %v3498 = vpop.f32.mrb[0].mxu0
        %v3499 = vadd.f32 %v3242, %v3498
        %v3500 = vpop.f32.mrb[0].mxu0
        %v3501 = vadd.f32 %v3244, %v3500
        %3502 = vmatprep.mubr.f32.mxu0 0.0
        %3503 = vmatmul.mubr.f32.gmra.mrb[0].mxu0 %v3015
        %v3504 = vpop.f32.mrb[0].mxu0
        %v3505 = vadd.f32 %v3248, %v3504
        %v3506 = vpop.f32.mrb[0].mxu0
        %v3507 = vadd.f32 %v3250, %v3506
        %3508 = vmatprep.mubr.f32.mxu0 0.0
        %3509 = vmatmul.mubr.f32.gmra.mrb[0].mxu0 %v3017
        %v3510 = vpop.f32.mrb[0].mxu0
        %v3511 = vadd.f32 %v3254, %v3510
        %v3512 = vpop.f32.mrb[0].mxu0
        %v3513 = vadd.f32 %v3256, %v3512
        %3514 = vmatprep.mubr.f32.mxu0 0.0
        %3515 = vmatmul.mubr.f32.gmra.mrb[0].mxu0 %v3019
        %v3516 = vpop.f32.mrb[0].mxu0
        %v3517 = vadd.f32 %v3260, %v3516
        %v3518 = vpop.f32.mrb[0].mxu0
        %v3519 = vadd.f32 %v3262, %v3518
        %3520 = vmatprep.mubr.f32.mxu0 0.0
        %3521 = vmatmul.mubr.f32.gmra.mrb[0].mxu0 %v3021
        %v3522 = vpop.f32.mrb[0].mxu0
        %v3523 = vadd.f32 %v3266, %v3522
        %v3524 = vpop.f32.mrb[0].mxu0
        %v3525 = vadd.f32 %v3268, %v3524
        %3526 = vmatprep.mubr.f32.mxu0 0.0
        %3527 = vmatmul.mubr.f32.gmra.mrb[0].mxu0 %v3023
        %v3528 = vpop.f32.mrb[0].mxu0
        %v3529 = vadd.f32 %v3272, %v3528
        %v3530 = vpop.f32.mrb[0].mxu0
        %v3531 = vadd.f32 %v3274, %v3530
        %3532 = vmatprep.mubr.f32.mxu0 0.0
        %3533 = vmatmul.mubr.f32.gmra.mrb[0].mxu0 %v3025
        %v3534 = vpop.f32.mrb[0].mxu0
        %v3535 = vadd.f32 %v3278, %v3534
        %v3536 = vpop.f32.mrb[0].mxu0
        %v3537 = vadd.f32 %v3280, %v3536
        %3538 = vmatprep.mubr.f32.mxu0 0.0
        %3539 = vmatmul.mubr.f32.gmra.mrb[0].mxu0 %v3027
        %v3540 = vpop.f32.mrb[0].mxu0
        %v3541 = vadd.f32 %v3284, %v3540
        %v3542 = vpop.f32.mrb[0].mxu0
        %v3543 = vadd.f32 %v3286, %v3542
        %3544 = vmatprep.mubr.f32.mxu0 0.0
        %3545 = vmatmul.mubr.f32.gmra.mrb[0].mxu0 %v3029
        %v3546 = vpop.f32.mrb[0].mxu0
        %v3547 = vadd.f32 %v3290, %v3546
        %v3548 = vpop.f32.mrb[0].mxu0
        %v3549 = vadd.f32 %v3292, %v3548
        %3550 = vdwg.mxu0
        %v3551 = vmax.f32 %v3361, 0.0
        %v3552 = vmax.f32 %v3363, 0.0
        %v3553 = vmax.f32 %v3367, 0.0
        %v3554 = vmax.f32 %v3369, 0.0
        %v3555 = vmax.f32 %v3373, 0.0
        %v3556 = vmax.f32 %v3375, 0.0
        %v3557 = vmax.f32 %v3379, 0.0
        %v3558 = vmax.f32 %v3381, 0.0
        %v3559 = vmax.f32 %v3385, 0.0
        %v3560 = vmax.f32 %v3387, 0.0
        %v3561 = vmax.f32 %v3391, 0.0
        %v3562 = vmax.f32 %v3393, 0.0
        %v3563 = vmax.f32 %v3397, 0.0
        %v3564 = vmax.f32 %v3399, 0.0
        %v3565 = vmax.f32 %v3403, 0.0
        %v3566 = vmax.f32 %v3405, 0.0
        %v3567 = vmax.f32 %v3409, 0.0
        %v3568 = vmax.f32 %v3411, 0.0
        %v3569 = vmax.f32 %v3415, 0.0
        %v3570 = vmax.f32 %v3417, 0.0
        %v3571 = vmax.f32 %v3421, 0.0
        %v3572 = vmax.f32 %v3423, 0.0
        %v3573 = vmax.f32 %v3427, 0.0
        %v3574 = vmax.f32 %v3429, 0.0
        %v3575 = vmax.f32 %v3433, 0.0
        %v3576 = vmax.f32 %v3435, 0.0
        %v3577 = vmax.f32 %v3439, 0.0
        %v3578 = vmax.f32 %v3441, 0.0
        %v3579 = vmax.f32 %v3445, 0.0
        %v3580 = vmax.f32 %v3447, 0.0
        %v3581 = vmax.f32 %v3451, 0.0
        %v3582 = vmax.f32 %v3453, 0.0
        %v3583 = vmax.f32 %v3457, 0.0
        %v3584 = vmax.f32 %v3459, 0.0
        %v3585 = vmax.f32 %v3463, 0.0
        %v3586 = vmax.f32 %v3465, 0.0
        %v3587 = vmax.f32 %v3469, 0.0
        %v3588 = vmax.f32 %v3471, 0.0
        %v3589 = vmax.f32 %v3475, 0.0
        %v3590 = vmax.f32 %v3477, 0.0
        %v3591 = vmax.f32 %v3481, 0.0
        %v3592 = vmax.f32 %v3483, 0.0
        %v3593 = vmax.f32 %v3487, 0.0
        %v3594 = vmax.f32 %v3489, 0.0
        %v3595 = vmax.f32 %v3493, 0.0
        %v3596 = vmax.f32 %v3495, 0.0
        %v3597 = vmax.f32 %v3499, 0.0
        %v3598 = vmax.f32 %v3501, 0.0
        %v3599 = vmax.f32 %v3505, 0.0
        %v3600 = vmax.f32 %v3507, 0.0
        %v3601 = vmax.f32 %v3511, 0.0
        %v3602 = vmax.f32 %v3513, 0.0
        %v3603 = vmax.f32 %v3517, 0.0
        %v3604 = vmax.f32 %v3519, 0.0
        %v3605 = vmax.f32 %v3523, 0.0
        %v3606 = vmax.f32 %v3525, 0.0
        %v3607 = vmax.f32 %v3529, 0.0
        %v3608 = vmax.f32 %v3531, 0.0
        %v3609 = vmax.f32 %v3535, 0.0
        %v3610 = vmax.f32 %v3537, 0.0
        %v3611 = vmax.f32 %v3541, 0.0
        %v3612 = vmax.f32 %v3543, 0.0
        %v3613 = vmax.f32 %v3547, 0.0
        %v3614 = vmax.f32 %v3549, 0.0
        %v3679 = vrot.slane %v3551, 2
        %v3680 = vrot.slane %v3553, 2
        %v3681 = vsel %vm769, %v3679, %v3680
        %v3682 = vrot.slane %v3552, 2
        %v3683 = vrot.slane %v3554, 2
        %v3684 = vsel %vm769, %v3682, %v3683
        %v3685 = vrot.slane %v3555, 2
        %v3686 = vsel %vm769, %v3680, %v3685
        %v3687 = vrot.slane %v3556, 2
        %v3688 = vsel %vm769, %v3683, %v3687
        %v3689 = vrot.slane %v3557, 2
        %v3690 = vsel %vm769, %v3685, %v3689
        %v3691 = vrot.slane %v3558, 2
        %v3692 = vsel %vm769, %v3687, %v3691
        %v3693 = vrot.slane %v3559, 2
        %v3694 = vsel %vm769, %v3689, %v3693
        %v3695 = vrot.slane %v3560, 2
        %v3696 = vsel %vm769, %v3691, %v3695
        %v3697 = vrot.slane %v3561, 2
        %v3698 = vsel %vm769, %v3693, %v3697
        %v3699 = vrot.slane %v3562, 2
        %v3700 = vsel %vm769, %v3695, %v3699
        %v3701 = vrot.slane %v3563, 2
        %v3702 = vsel %vm769, %v3697, %v3701
        %v3703 = vrot.slane %v3564, 2
        %v3704 = vsel %vm769, %v3699, %v3703
        %v3705 = vrot.slane %v3565, 2
        %v3706 = vsel %vm769, %v3701, %v3705
        %v3707 = vrot.slane %v3566, 2
        %v3708 = vsel %vm769, %v3703, %v3707
        %v3709 = vrot.slane %v3567, 2
        %v3710 = vsel %vm769, %v3705, %v3709
        %v3711 = vrot.slane %v3568, 2
        %v3712 = vsel %vm769, %v3707, %v3711
        %v3713 = vrot.slane %v3569, 2
        %v3714 = vsel %vm769, %v3709, %v3713
        %v3715 = vrot.slane %v3570, 2
        %v3716 = vsel %vm769, %v3711, %v3715
        %v3717 = vrot.slane %v3571, 2
        %v3718 = vsel %vm769, %v3713, %v3717
        %v3719 = vrot.slane %v3572, 2
        %v3720 = vsel %vm769, %v3715, %v3719
        %v3721 = vrot.slane %v3573, 2
        %v3722 = vsel %vm769, %v3717, %v3721
        %v3723 = vrot.slane %v3574, 2
        %v3724 = vsel %vm769, %v3719, %v3723
        %v3725 = vrot.slane %v3575, 2
        %v3726 = vsel %vm769, %v3721, %v3725
        %v3727 = vrot.slane %v3576, 2
        %v3728 = vsel %vm769, %v3723, %v3727
        %v3729 = vrot.slane %v3577, 2
        %v3730 = vsel %vm769, %v3725, %v3729
        %v3731 = vrot.slane %v3578, 2
        %v3732 = vsel %vm769, %v3727, %v3731
        %v3733 = vrot.slane %v3579, 2
        %v3734 = vsel %vm769, %v3729, %v3733
        %v3735 = vrot.slane %v3580, 2
        %v3736 = vsel %vm769, %v3731, %v3735
        %v3737 = vrot.slane %v3581, 2
        %v3738 = vsel %vm769, %v3733, %v3737
        %v3739 = vrot.slane %v3582, 2
        %v3740 = vsel %vm769, %v3735, %v3739
        %v3741 = vrot.slane %v3583, 2
        %v3742 = vsel %vm769, %v3737, %v3741
        %v3743 = vrot.slane %v3584, 2
        %v3744 = vsel %vm769, %v3739, %v3743
        %v3745 = vrot.slane %v3585, 2
        %v3746 = vsel %vm769, %v3741, %v3745
        %v3747 = vrot.slane %v3586, 2
        %v3748 = vsel %vm769, %v3743, %v3747
        %v3749 = vrot.slane %v3587, 2
        %v3750 = vsel %vm769, %v3745, %v3749
        %v3751 = vrot.slane %v3588, 2
        %v3752 = vsel %vm769, %v3747, %v3751
        %v3753 = vrot.slane %v3589, 2
        %v3754 = vsel %vm769, %v3749, %v3753
        %v3755 = vrot.slane %v3590, 2
        %v3756 = vsel %vm769, %v3751, %v3755
        %v3757 = vrot.slane %v3591, 2
        %v3758 = vsel %vm769, %v3753, %v3757
        %v3759 = vrot.slane %v3592, 2
        %v3760 = vsel %vm769, %v3755, %v3759
        %v3761 = vrot.slane %v3593, 2
        %v3762 = vsel %vm769, %v3757, %v3761
        %v3763 = vrot.slane %v3594, 2
        %v3764 = vsel %vm769, %v3759, %v3763
        %v3765 = vrot.slane %v3595, 2
        %v3766 = vsel %vm769, %v3761, %v3765
        %v3767 = vrot.slane %v3596, 2
        %v3768 = vsel %vm769, %v3763, %v3767
        %v3769 = vrot.slane %v3597, 2
        %v3770 = vsel %vm769, %v3765, %v3769
        %v3771 = vrot.slane %v3598, 2
        %v3772 = vsel %vm769, %v3767, %v3771
        %v3773 = vrot.slane %v3599, 2
        %v3774 = vsel %vm769, %v3769, %v3773
        %v3775 = vrot.slane %v3600, 2
        %v3776 = vsel %vm769, %v3771, %v3775
        %v3777 = vrot.slane %v3601, 2
        %v3778 = vsel %vm769, %v3773, %v3777
        %v3779 = vrot.slane %v3602, 2
        %v3780 = vsel %vm769, %v3775, %v3779
        %v3781 = vrot.slane %v3603, 2
        %v3782 = vsel %vm769, %v3777, %v3781
        %v3783 = vrot.slane %v3604, 2
        %v3784 = vsel %vm769, %v3779, %v3783
        %v3785 = vrot.slane %v3605, 2
        %v3786 = vsel %vm769, %v3781, %v3785
        %v3787 = vrot.slane %v3606, 2
        %v3788 = vsel %vm769, %v3783, %v3787
        %v3789 = vrot.slane %v3607, 2
        %v3790 = vsel %vm769, %v3785, %v3789
        %v3791 = vrot.slane %v3608, 2
        %v3792 = vsel %vm769, %v3787, %v3791
        %v3793 = vrot.slane %v3609, 2
        %v3794 = vsel %vm769, %v3789, %v3793
        %v3795 = vrot.slane %v3610, 2
        %v3796 = vsel %vm769, %v3791, %v3795
        %v3797 = vrot.slane %v3611, 2
        %v3798 = vsel %vm769, %v3793, %v3797
        %v3799 = vrot.slane %v3612, 2
        %v3800 = vsel %vm769, %v3795, %v3799
        %v3801 = vrot.slane %v3613, 2
        %v3802 = vsel %vm769, %v3797, %v3801
        %v3803 = vrot.slane %v3614, 2
        %v3804 = vsel %vm769, %v3799, %v3803
        %v3867 = vmax.f32 %v3551, %v3681
        %v3868 = vmax.f32 %v3552, %v3684
        %v3869 = vmax.f32 %v3553, %v3686
        %v3870 = vmax.f32 %v3554, %v3688
        %v3871 = vmax.f32 %v3555, %v3690
        %v3872 = vmax.f32 %v3556, %v3692
        %v3873 = vmax.f32 %v3557, %v3694
        %v3874 = vmax.f32 %v3558, %v3696
        %v3875 = vmax.f32 %v3559, %v3698
        %v3876 = vmax.f32 %v3560, %v3700
        %v3877 = vmax.f32 %v3561, %v3702
        %v3878 = vmax.f32 %v3562, %v3704
        %v3879 = vmax.f32 %v3563, %v3706
        %v3880 = vmax.f32 %v3564, %v3708
        %v3881 = vmax.f32 %v3565, %v3710
        %v3882 = vmax.f32 %v3566, %v3712
        %v3883 = vmax.f32 %v3567, %v3714
        %v3884 = vmax.f32 %v3568, %v3716
        %v3885 = vmax.f32 %v3569, %v3718
        %v3886 = vmax.f32 %v3570, %v3720
        %v3887 = vmax.f32 %v3571, %v3722
        %v3888 = vmax.f32 %v3572, %v3724
        %v3889 = vmax.f32 %v3573, %v3726
        %v3890 = vmax.f32 %v3574, %v3728
        %v3891 = vmax.f32 %v3575, %v3730
        %v3892 = vmax.f32 %v3576, %v3732
        %v3893 = vmax.f32 %v3577, %v3734
        %v3894 = vmax.f32 %v3578, %v3736
        %v3895 = vmax.f32 %v3579, %v3738
        %v3896 = vmax.f32 %v3580, %v3740
        %v3897 = vmax.f32 %v3581, %v3742
        %v3898 = vmax.f32 %v3582, %v3744
        %v3899 = vmax.f32 %v3583, %v3746
        %v3900 = vmax.f32 %v3584, %v3748
        %v3901 = vmax.f32 %v3585, %v3750
        %v3902 = vmax.f32 %v3586, %v3752
        %v3903 = vmax.f32 %v3587, %v3754
        %v3904 = vmax.f32 %v3588, %v3756
        %v3905 = vmax.f32 %v3589, %v3758
        %v3906 = vmax.f32 %v3590, %v3760
        %v3907 = vmax.f32 %v3591, %v3762
        %v3908 = vmax.f32 %v3592, %v3764
        %v3909 = vmax.f32 %v3593, %v3766
        %v3910 = vmax.f32 %v3594, %v3768
        %v3911 = vmax.f32 %v3595, %v3770
        %v3912 = vmax.f32 %v3596, %v3772
        %v3913 = vmax.f32 %v3597, %v3774
        %v3914 = vmax.f32 %v3598, %v3776
        %v3915 = vmax.f32 %v3599, %v3778
        %v3916 = vmax.f32 %v3600, %v3780
        %v3917 = vmax.f32 %v3601, %v3782
        %v3918 = vmax.f32 %v3602, %v3784
        %v3919 = vmax.f32 %v3603, %v3786
        %v3920 = vmax.f32 %v3604, %v3788
        %v3921 = vmax.f32 %v3605, %v3790
        %v3922 = vmax.f32 %v3606, %v3792
        %v3923 = vmax.f32 %v3607, %v3794
        %v3924 = vmax.f32 %v3608, %v3796
        %v3925 = vmax.f32 %v3609, %v3798
        %v3926 = vmax.f32 %v3610, %v3800
        %v3927 = vmax.f32 %v3611, %v3802
        %v3928 = vmax.f32 %v3612, %v3804
        %3991 = vrot.lane.b32.xlu0 %v3867, 127
        %v3992 = vpop.permute.xlu0 %3991
        %3993 = vrot.lane.b32.xlu0 %v3868, 127
        %v3994 = vpop.permute.xlu0 %3993
        %3995 = vrot.lane.b32.xlu0 %v3869, 127
        %v3996 = vpop.permute.xlu0 %3995
        %3997 = vrot.lane.b32.xlu0 %v3870, 127
        %v3998 = vpop.permute.xlu0 %3997
        %3999 = vrot.lane.b32.xlu0 %v3871, 127
        %v4000 = vpop.permute.xlu0 %3999
        %4001 = vrot.lane.b32.xlu0 %v3872, 127
        %v4002 = vpop.permute.xlu0 %4001
        %4003 = vrot.lane.b32.xlu0 %v3873, 127
        %v4004 = vpop.permute.xlu0 %4003
        %4005 = vrot.lane.b32.xlu0 %v3874, 127
        %v4006 = vpop.permute.xlu0 %4005
        %4007 = vrot.lane.b32.xlu0 %v3875, 127
        %v4008 = vpop.permute.xlu0 %4007
        %4009 = vrot.lane.b32.xlu0 %v3876, 127
        %v4010 = vpop.permute.xlu0 %4009
        %4011 = vrot.lane.b32.xlu0 %v3877, 127
        %v4012 = vpop.permute.xlu0 %4011
        %4013 = vrot.lane.b32.xlu0 %v3878, 127
        %v4014 = vpop.permute.xlu0 %4013
        %4015 = vrot.lane.b32.xlu0 %v3879, 127
        %v4016 = vpop.permute.xlu0 %4015
        %4017 = vrot.lane.b32.xlu0 %v3880, 127
        %v4018 = vpop.permute.xlu0 %4017
        %4019 = vrot.lane.b32.xlu0 %v3881, 127
        %v4020 = vpop.permute.xlu0 %4019
        %4021 = vrot.lane.b32.xlu0 %v3882, 127
        %v4022 = vpop.permute.xlu0 %4021
        %4023 = vrot.lane.b32.xlu0 %v3883, 127
        %v4024 = vpop.permute.xlu0 %4023
        %4025 = vrot.lane.b32.xlu0 %v3884, 127
        %v4026 = vpop.permute.xlu0 %4025
        %4027 = vrot.lane.b32.xlu0 %v3885, 127
        %v4028 = vpop.permute.xlu0 %4027
        %4029 = vrot.lane.b32.xlu0 %v3886, 127
        %v4030 = vpop.permute.xlu0 %4029
        %4031 = vrot.lane.b32.xlu0 %v3887, 127
        %v4032 = vpop.permute.xlu0 %4031
        %4033 = vrot.lane.b32.xlu0 %v3888, 127
        %v4034 = vpop.permute.xlu0 %4033
        %4035 = vrot.lane.b32.xlu0 %v3889, 127
        %v4036 = vpop.permute.xlu0 %4035
        %4037 = vrot.lane.b32.xlu0 %v3890, 127
        %v4038 = vpop.permute.xlu0 %4037
        %4039 = vrot.lane.b32.xlu0 %v3891, 127
        %v4040 = vpop.permute.xlu0 %4039
        %4041 = vrot.lane.b32.xlu0 %v3892, 127
        %v4042 = vpop.permute.xlu0 %4041
        %4043 = vrot.lane.b32.xlu0 %v3893, 127
        %v4044 = vpop.permute.xlu0 %4043
        %4045 = vrot.lane.b32.xlu0 %v3894, 127
        %v4046 = vpop.permute.xlu0 %4045
        %4047 = vrot.lane.b32.xlu0 %v3895, 127
        %v4048 = vpop.permute.xlu0 %4047
        %4049 = vrot.lane.b32.xlu0 %v3896, 127
        %v4050 = vpop.permute.xlu0 %4049
        %4051 = vrot.lane.b32.xlu0 %v3897, 127
        %v4052 = vpop.permute.xlu0 %4051
        %4053 = vrot.lane.b32.xlu0 %v3898, 127
        %v4054 = vpop.permute.xlu0 %4053
        %4055 = vrot.lane.b32.xlu0 %v3899, 127
        %v4056 = vpop.permute.xlu0 %4055
        %4057 = vrot.lane.b32.xlu0 %v3900, 127
        %v4058 = vpop.permute.xlu0 %4057
        %4059 = vrot.lane.b32.xlu0 %v3901, 127
        %v4060 = vpop.permute.xlu0 %4059
        %4061 = vrot.lane.b32.xlu0 %v3902, 127
        %v4062 = vpop.permute.xlu0 %4061
        %4063 = vrot.lane.b32.xlu0 %v3903, 127
        %v4064 = vpop.permute.xlu0 %4063
        %4065 = vrot.lane.b32.xlu0 %v3904, 127
        %v4066 = vpop.permute.xlu0 %4065
        %4067 = vrot.lane.b32.xlu0 %v3905, 127
        %v4068 = vpop.permute.xlu0 %4067
        %4069 = vrot.lane.b32.xlu0 %v3906, 127
        %v4070 = vpop.permute.xlu0 %4069
        %4071 = vrot.lane.b32.xlu0 %v3907, 127
        %v4072 = vpop.permute.xlu0 %4071
        %4073 = vrot.lane.b32.xlu0 %v3908, 127
        %v4074 = vpop.permute.xlu0 %4073
        %4075 = vrot.lane.b32.xlu0 %v3909, 127
        %v4076 = vpop.permute.xlu0 %4075
        %4077 = vrot.lane.b32.xlu0 %v3910, 127
        %v4078 = vpop.permute.xlu0 %4077
        %4079 = vrot.lane.b32.xlu0 %v3911, 127
        %v4080 = vpop.permute.xlu0 %4079
        %4081 = vrot.lane.b32.xlu0 %v3912, 127
        %v4082 = vpop.permute.xlu0 %4081
        %4083 = vrot.lane.b32.xlu0 %v3913, 127
        %v4084 = vpop.permute.xlu0 %4083
        %4085 = vrot.lane.b32.xlu0 %v3914, 127
        %v4086 = vpop.permute.xlu0 %4085
        %4087 = vrot.lane.b32.xlu0 %v3915, 127
        %v4088 = vpop.permute.xlu0 %4087
        %4089 = vrot.lane.b32.xlu0 %v3916, 127
        %v4090 = vpop.permute.xlu0 %4089
        %4091 = vrot.lane.b32.xlu0 %v3917, 127
        %v4092 = vpop.permute.xlu0 %4091
        %4093 = vrot.lane.b32.xlu0 %v3918, 127
        %v4094 = vpop.permute.xlu0 %4093
        %4095 = vrot.lane.b32.xlu0 %v3919, 127
        %v4096 = vpop.permute.xlu0 %4095
        %4097 = vrot.lane.b32.xlu0 %v3920, 127
        %v4098 = vpop.permute.xlu0 %4097
        %4099 = vrot.lane.b32.xlu0 %v3921, 127
        %v4100 = vpop.permute.xlu0 %4099
        %4101 = vrot.lane.b32.xlu0 %v3922, 127
        %v4102 = vpop.permute.xlu0 %4101
        %4103 = vrot.lane.b32.xlu0 %v3923, 127
        %v4104 = vpop.permute.xlu0 %4103
        %4105 = vrot.lane.b32.xlu0 %v3924, 127
        %v4106 = vpop.permute.xlu0 %4105
        %4107 = vrot.lane.b32.xlu0 %v3925, 127
        %v4108 = vpop.permute.xlu0 %4107
        %4109 = vrot.lane.b32.xlu0 %v3926, 127
        %v4110 = vpop.permute.xlu0 %4109
        %4111 = vrot.lane.b32.xlu0 %v3927, 127
        %v4112 = vpop.permute.xlu0 %4111
        %4113 = vrot.lane.b32.xlu0 %v3928, 127
        %v4114 = vpop.permute.xlu0 %4113
        %v4115 = vsel %vm1959, %v3992, %v3994
        %v4116 = vsel %vm1959, %v3996, %v3998
        %v4117 = vsel %vm1959, %v4000, %v4002
        %v4118 = vsel %vm1959, %v4004, %v4006
        %v4119 = vsel %vm1959, %v4008, %v4010
        %v4120 = vsel %vm1959, %v4012, %v4014
        %v4121 = vsel %vm1959, %v4016, %v4018
        %v4122 = vsel %vm1959, %v4020, %v4022
        %v4123 = vsel %vm1959, %v4024, %v4026
        %v4124 = vsel %vm1959, %v4028, %v4030
        %v4125 = vsel %vm1959, %v4032, %v4034
        %v4126 = vsel %vm1959, %v4036, %v4038
        %v4127 = vsel %vm1959, %v4040, %v4042
        %v4128 = vsel %vm1959, %v4044, %v4046
        %v4129 = vsel %vm1959, %v4048, %v4050
        %v4130 = vsel %vm1959, %v4052, %v4054
        %v4131 = vsel %vm1959, %v4056, %v4058
        %v4132 = vsel %vm1959, %v4060, %v4062
        %v4133 = vsel %vm1959, %v4064, %v4066
        %v4134 = vsel %vm1959, %v4068, %v4070
        %v4135 = vsel %vm1959, %v4072, %v4074
        %v4136 = vsel %vm1959, %v4076, %v4078
        %v4137 = vsel %vm1959, %v4080, %v4082
        %v4138 = vsel %vm1959, %v4084, %v4086
        %v4139 = vsel %vm1959, %v4088, %v4090
        %v4140 = vsel %vm1959, %v4092, %v4094
        %v4141 = vsel %vm1959, %v4096, %v4098
        %v4142 = vsel %vm1959, %v4100, %v4102
        %v4143 = vsel %vm1959, %v4104, %v4106
        %v4144 = vsel %vm1959, %v4108, %v4110
        %v4145 = vsel %vm1959, %v4112, %v4114
        %v4208 = vmax.f32 %v3867, %v4115
        %v4209 = vmax.f32 %v3868, %v3994
        %v4210 = vmax.f32 %v3869, %v4116
        %v4211 = vmax.f32 %v3870, %v3998
        %v4212 = vmax.f32 %v3871, %v4117
        %v4213 = vmax.f32 %v3872, %v4002
        %v4214 = vmax.f32 %v3873, %v4118
        %v4215 = vmax.f32 %v3874, %v4006
        %v4216 = vmax.f32 %v3875, %v4119
        %v4217 = vmax.f32 %v3876, %v4010
        %v4218 = vmax.f32 %v3877, %v4120
        %v4219 = vmax.f32 %v3878, %v4014
        %v4220 = vmax.f32 %v3879, %v4121
        %v4221 = vmax.f32 %v3880, %v4018
        %v4222 = vmax.f32 %v3881, %v4122
        %v4223 = vmax.f32 %v3882, %v4022
        %v4224 = vmax.f32 %v3883, %v4123
        %v4225 = vmax.f32 %v3884, %v4026
        %v4226 = vmax.f32 %v3885, %v4124
        %v4227 = vmax.f32 %v3886, %v4030
        %v4228 = vmax.f32 %v3887, %v4125
        %v4229 = vmax.f32 %v3888, %v4034
        %v4230 = vmax.f32 %v3889, %v4126
        %v4231 = vmax.f32 %v3890, %v4038
        %v4232 = vmax.f32 %v3891, %v4127
        %v4233 = vmax.f32 %v3892, %v4042
        %v4234 = vmax.f32 %v3893, %v4128
        %v4235 = vmax.f32 %v3894, %v4046
        %v4236 = vmax.f32 %v3895, %v4129
        %v4237 = vmax.f32 %v3896, %v4050
        %v4238 = vmax.f32 %v3897, %v4130
        %v4239 = vmax.f32 %v3898, %v4054
        %v4240 = vmax.f32 %v3899, %v4131
        %v4241 = vmax.f32 %v3900, %v4058
        %v4242 = vmax.f32 %v3901, %v4132
        %v4243 = vmax.f32 %v3902, %v4062
        %v4244 = vmax.f32 %v3903, %v4133
        %v4245 = vmax.f32 %v3904, %v4066
        %v4246 = vmax.f32 %v3905, %v4134
        %v4247 = vmax.f32 %v3906, %v4070
        %v4248 = vmax.f32 %v3907, %v4135
        %v4249 = vmax.f32 %v3908, %v4074
        %v4250 = vmax.f32 %v3909, %v4136
        %v4251 = vmax.f32 %v3910, %v4078
        %v4252 = vmax.f32 %v3911, %v4137
        %v4253 = vmax.f32 %v3912, %v4082
        %v4254 = vmax.f32 %v3913, %v4138
        %v4255 = vmax.f32 %v3914, %v4086
        %v4256 = vmax.f32 %v3915, %v4139
        %v4257 = vmax.f32 %v3916, %v4090
        %v4258 = vmax.f32 %v3917, %v4140
        %v4259 = vmax.f32 %v3918, %v4094
        %v4260 = vmax.f32 %v3919, %v4141
        %v4261 = vmax.f32 %v3920, %v4098
        %v4262 = vmax.f32 %v3921, %v4142
        %v4263 = vmax.f32 %v3922, %v4102
        %v4264 = vmax.f32 %v3923, %v4143
        %v4265 = vmax.f32 %v3924, %v4106
        %v4266 = vmax.f32 %v3925, %v4144
        %v4267 = vmax.f32 %v3926, %v4110
        %v4268 = vmax.f32 %v3927, %v4145
        %v4269 = vmax.f32 %v3928, %v4114
        %v4270 = vld [vmem:[%s6] sm:$0xff]
        %v4271 = vld [vmem:[%s6 + $0x8] sm:$0xff]
        %v4272 = vld [vmem:[%s6 + $0x10] sm:$0xff]
        %v4273 = vld [vmem:[%s6 + $0x18] sm:$0xff]
        %v4274 = vld [vmem:[%s6 + $0x20] sm:$0xff]
        %v4275 = vld [vmem:[%s6 + $0x28] sm:$0xff]
        %v4276 = vld [vmem:[%s6 + $0x30] sm:$0xff]
        %v4277 = vld [vmem:[%s6 + $0x38] sm:$0xff]
        %v4278 = vld [vmem:[%s6 + $0x40] sm:$0xff]
        %v4279 = vld [vmem:[%s6 + $0x48] sm:$0xff]
        %v4280 = vld [vmem:[%s6 + $0x50] sm:$0xff]
        %v4281 = vld [vmem:[%s6 + $0x58] sm:$0xff]
        %v4282 = vld [vmem:[%s6 + $0x60] sm:$0xff]
        %v4283 = vld [vmem:[%s6 + $0x68] sm:$0xff]
        %v4284 = vld [vmem:[%s6 + $0x70] sm:$0xff]
        %v4285 = vld [vmem:[%s6 + $0x78] sm:$0xff]
        %v4286 = vld [vmem:[%s6 + $0x80] sm:$0xff]
        %v4287 = vld [vmem:[%s6 + $0x88] sm:$0xff]
        %v4288 = vld [vmem:[%s6 + $0x90] sm:$0xff]
        %v4289 = vld [vmem:[%s6 + $0x98] sm:$0xff]
        %v4290 = vld [vmem:[%s6 + $0xa0] sm:$0xff]
        %v4291 = vld [vmem:[%s6 + $0xa8] sm:$0xff]
        %v4292 = vld [vmem:[%s6 + $0xb0] sm:$0xff]
        %v4293 = vld [vmem:[%s6 + $0xb8] sm:$0xff]
        %v4294 = vld [vmem:[%s6 + $0xc0] sm:$0xff]
        %v4295 = vld [vmem:[%s6 + $0xc8] sm:$0x7f]
        %vm4296 = vcmask 646144
        %v4298 = vsel %vm4296, %v4209, 0
        %v4301 = vsel %vm4296, %v4211, 0
        %v4304 = vsel %vm4296, %v4213, 0
        %v4307 = vsel %vm4296, %v4215, 0
        %v4310 = vsel %vm4296, %v4217, 0
        %v4313 = vsel %vm4296, %v4219, 0
        %v4316 = vsel %vm4296, %v4221, 0
        %v4319 = vsel %vm4296, %v4223, 0
        %v4322 = vsel %vm4296, %v4225, 0
        %v4325 = vsel %vm4296, %v4227, 0
        %v4328 = vsel %vm4296, %v4229, 0
        %v4331 = vsel %vm4296, %v4231, 0
        %v4334 = vsel %vm4296, %v4233, 0
        %v4337 = vsel %vm4296, %v4235, 0
        %v4340 = vsel %vm4296, %v4237, 0
        %v4343 = vsel %vm4296, %v4239, 0
        %v4346 = vsel %vm4296, %v4241, 0
        %v4349 = vsel %vm4296, %v4243, 0
        %v4352 = vsel %vm4296, %v4245, 0
        %v4355 = vsel %vm4296, %v4247, 0
        %v4358 = vsel %vm4296, %v4249, 0
        %v4361 = vsel %vm4296, %v4251, 0
        %v4364 = vsel %vm4296, %v4253, 0
        %v4367 = vsel %vm4296, %v4255, 0
        %v4370 = vsel %vm4296, %v4257, 0
        %v4373 = vsel %vm4296, %v4259, 0
        %v4376 = vsel %vm4296, %v4261, 0
        %v4379 = vsel %vm4296, %v4263, 0
        %v4382 = vsel %vm4296, %v4265, 0
        %v4385 = vsel %vm4296, %v4267, 0
        %v4388 = vsel %vm4296, %v4269, 0
        %v4391 = vsel %vm609, %v4295, 0
        %4393 = vmatprep.subr.mxu0 0.0
        %4394 = vmatpush1.msra.mxu0 %v4270
        %4395 = vmatprep.subr.mxu0 0.0
        %4396 = vmatpush1.msra.mxu0 %v4271
        %4397 = vmatprep.subr.mxu0 0.0
        %4398 = vmatpush1.msra.mxu0 %v4272
        %4399 = vmatprep.subr.mxu0 0.0
        %4400 = vmatpush1.msra.mxu0 %v4273
        %4401 = vmatprep.subr.mxu0 0.0
        %4402 = vmatpush1.msra.mxu0 %v4274
        %4403 = vmatprep.subr.mxu0 0.0
        %4404 = vmatpush1.msra.mxu0 %v4275
        %4405 = vmatprep.subr.mxu0 0.0
        %4406 = vmatpush1.msra.mxu0 %v4276
        %4407 = vmatprep.subr.mxu0 0.0
        %4408 = vmatpush1.msra.mxu0 %v4277
        %4409 = vmatprep.subr.mxu0 0.0
        %4410 = vmatpush1.msra.mxu0 %v4278
        %4411 = vmatprep.subr.mxu0 0.0
        %4412 = vmatpush1.msra.mxu0 %v4279
        %4413 = vmatprep.subr.mxu0 0.0
        %4414 = vmatpush1.msra.mxu0 %v4280
        %4415 = vmatprep.subr.mxu0 0.0
        %4416 = vmatpush1.msra.mxu0 %v4281
        %4417 = vmatprep.subr.mxu0 0.0
        %4418 = vmatpush1.msra.mxu0 %v4282
        %4419 = vmatprep.subr.mxu0 0.0
        %4420 = vmatpush1.msra.mxu0 %v4283
        %4421 = vmatprep.subr.mxu0 0.0
        %4422 = vmatpush1.msra.mxu0 %v4284
        %4423 = vmatprep.subr.mxu0 0.0
        %4424 = vmatpush1.msra.mxu0 %v4285
        %4425 = vmatprep.subr.mxu0 0.0
        %4426 = vmatpush1.msra.mxu0 %v4286
        %4427 = vmatprep.subr.mxu0 0.0
        %4428 = vmatpush1.msra.mxu0 %v4287
        %4429 = vmatprep.subr.mxu0 0.0
        %4430 = vmatpush1.msra.mxu0 %v4288
        %4431 = vmatprep.subr.mxu0 0.0
        %4432 = vmatpush1.msra.mxu0 %v4289
        %4433 = vmatprep.subr.mxu0 0.0
        %4434 = vmatpush1.msra.mxu0 %v4290
        %4435 = vmatprep.subr.mxu0 0.0
        %4436 = vmatpush1.msra.mxu0 %v4291
        %4437 = vmatprep.subr.mxu0 0.0
        %4438 = vmatpush1.msra.mxu0 %v4292
        %4439 = vmatprep.subr.mxu0 0.0
        %4440 = vmatpush1.msra.mxu0 %v4293
        %4441 = vmatprep.subr.mxu0 0.0
        %4442 = vmatpush1.msra.mxu0 %v4294
        %4443 = vmatprep.subr.mxu0 0.0
        %4444 = vmatpush1.msra.mxu0 %v4391
        %4445 = vmatprep.subr.mxu0 0.0
        %4446 = vmatpush1.msra.mxu0 0.0
        %4447 = vmatprep.subr.mxu0 0.0
        %4448 = vmatpush1.msra.mxu0 0.0
        %4449 = vmatprep.subr.mxu0 0.0
        %4450 = vmatpush1.msra.mxu0 0.0
        %4451 = vmatprep.subr.mxu0 0.0
        %4452 = vmatpush1.msra.mxu0 0.0
        %4453 = vmatprep.subr.mxu0 0.0
        %4454 = vmatpush1.msra.mxu0 0.0
        %4455 = vmatprep.subr.mxu0 0.0
        %4456 = vmatpush1.msra.mxu0 0.0
        %4457 = vmatprep.mubr.f32.mxu0 %v4298
        %4458 = vmatmul.mubr.f32.gmra.mrb[0].mxu0 %v4208
        %v4459 = vpop.f32.mrb[0].mxu0
        %v4460 = vadd.f32 0.0, %v4459
        %v4461 = vpop.f32.mrb[0].mxu0
        %4462 = vmatprep.mubr.f32.mxu0 %v4301
        %4463 = vmatmul.mubr.f32.gmra.mrb[0].mxu0 %v4210
        %v4464 = vpop.f32.mrb[0].mxu0
        %v4465 = vadd.f32 0.0, %v4464
        %v4466 = vpop.f32.mrb[0].mxu0
        %4467 = vmatprep.mubr.f32.mxu0 %v4304
        %4468 = vmatmul.mubr.f32.gmra.mrb[0].mxu0 %v4212
        %v4469 = vpop.f32.mrb[0].mxu0
        %v4470 = vadd.f32 0.0, %v4469
        %v4471 = vpop.f32.mrb[0].mxu0
        %4472 = vmatprep.mubr.f32.mxu0 %v4307
        %4473 = vmatmul.mubr.f32.gmra.mrb[0].mxu0 %v4214
        %v4474 = vpop.f32.mrb[0].mxu0
        %v4475 = vadd.f32 0.0, %v4474
        %v4476 = vpop.f32.mrb[0].mxu0
        %4477 = vmatprep.mubr.f32.mxu0 %v4310
        %4478 = vmatmul.mubr.f32.gmra.mrb[0].mxu0 %v4216
        %v4479 = vpop.f32.mrb[0].mxu0
        %v4480 = vadd.f32 0.0, %v4479
        %v4481 = vpop.f32.mrb[0].mxu0
        %4482 = vmatprep.mubr.f32.mxu0 %v4313
        %4483 = vmatmul.mubr.f32.gmra.mrb[0].mxu0 %v4218
        %v4484 = vpop.f32.mrb[0].mxu0
        %v4485 = vadd.f32 0.0, %v4484
        %v4486 = vpop.f32.mrb[0].mxu0
        %4487 = vmatprep.mubr.f32.mxu0 %v4316
        %4488 = vmatmul.mubr.f32.gmra.mrb[0].mxu0 %v4220
        %v4489 = vpop.f32.mrb[0].mxu0
        %v4490 = vadd.f32 0.0, %v4489
        %v4491 = vpop.f32.mrb[0].mxu0
        %4492 = vmatprep.mubr.f32.mxu0 %v4319
        %4493 = vmatmul.mubr.f32.gmra.mrb[0].mxu0 %v4222
        %v4494 = vpop.f32.mrb[0].mxu0
        %v4495 = vadd.f32 0.0, %v4494
        %v4496 = vpop.f32.mrb[0].mxu0
        %4497 = vmatprep.mubr.f32.mxu0 %v4322
        %4498 = vmatmul.mubr.f32.gmra.mrb[0].mxu0 %v4224
        %v4499 = vpop.f32.mrb[0].mxu0
        %v4500 = vadd.f32 0.0, %v4499
        %v4501 = vpop.f32.mrb[0].mxu0
        %4502 = vmatprep.mubr.f32.mxu0 %v4325
        %4503 = vmatmul.mubr.f32.gmra.mrb[0].mxu0 %v4226
        %v4504 = vpop.f32.mrb[0].mxu0
        %v4505 = vadd.f32 0.0, %v4504
        %v4506 = vpop.f32.mrb[0].mxu0
        %4507 = vmatprep.mubr.f32.mxu0 %v4328
        %4508 = vmatmul.mubr.f32.gmra.mrb[0].mxu0 %v4228
        %v4509 = vpop.f32.mrb[0].mxu0
        %v4510 = vadd.f32 0.0, %v4509
        %v4511 = vpop.f32.mrb[0].mxu0
        %4512 = vmatprep.mubr.f32.mxu0 %v4331
        %4513 = vmatmul.mubr.f32.gmra.mrb[0].mxu0 %v4230
        %v4514 = vpop.f32.mrb[0].mxu0
        %v4515 = vadd.f32 0.0, %v4514
        %v4516 = vpop.f32.mrb[0].mxu0
        %4517 = vmatprep.mubr.f32.mxu0 %v4334
        %4518 = vmatmul.mubr.f32.gmra.mrb[0].mxu0 %v4232
        %v4519 = vpop.f32.mrb[0].mxu0
        %v4520 = vadd.f32 0.0, %v4519
        %v4521 = vpop.f32.mrb[0].mxu0
        %4522 = vmatprep.mubr.f32.mxu0 %v4337
        %4523 = vmatmul.mubr.f32.gmra.mrb[0].mxu0 %v4234
        %v4524 = vpop.f32.mrb[0].mxu0
        %v4525 = vadd.f32 0.0, %v4524
        %v4526 = vpop.f32.mrb[0].mxu0
        %4527 = vmatprep.mubr.f32.mxu0 %v4340
        %4528 = vmatmul.mubr.f32.gmra.mrb[0].mxu0 %v4236
        %v4529 = vpop.f32.mrb[0].mxu0
        %v4530 = vadd.f32 0.0, %v4529
        %v4531 = vpop.f32.mrb[0].mxu0
        %4532 = vmatprep.mubr.f32.mxu0 %v4343
        %4533 = vmatmul.mubr.f32.gmra.mrb[0].mxu0 %v4238
        %v4534 = vpop.f32.mrb[0].mxu0
        %v4535 = vadd.f32 0.0, %v4534
        %v4536 = vpop.f32.mrb[0].mxu0
        %4537 = vmatprep.mubr.f32.mxu0 %v4346
        %4538 = vmatmul.mubr.f32.gmra.mrb[0].mxu0 %v4240
        %v4539 = vpop.f32.mrb[0].mxu0
        %v4540 = vadd.f32 0.0, %v4539
        %v4541 = vpop.f32.mrb[0].mxu0
        %4542 = vmatprep.mubr.f32.mxu0 %v4349
        %4543 = vmatmul.mubr.f32.gmra.mrb[0].mxu0 %v4242
        %v4544 = vpop.f32.mrb[0].mxu0
        %v4545 = vadd.f32 0.0, %v4544
        %v4546 = vpop.f32.mrb[0].mxu0
        %4547 = vmatprep.mubr.f32.mxu0 %v4352
        %4548 = vmatmul.mubr.f32.gmra.mrb[0].mxu0 %v4244
        %v4549 = vpop.f32.mrb[0].mxu0
        %v4550 = vadd.f32 0.0, %v4549
        %v4551 = vpop.f32.mrb[0].mxu0
        %4552 = vmatprep.mubr.f32.mxu0 %v4355
        %4553 = vmatmul.mubr.f32.gmra.mrb[0].mxu0 %v4246
        %v4554 = vpop.f32.mrb[0].mxu0
        %v4555 = vadd.f32 0.0, %v4554
        %v4556 = vpop.f32.mrb[0].mxu0
        %4557 = vmatprep.mubr.f32.mxu0 %v4358
        %4558 = vmatmul.mubr.f32.gmra.mrb[0].mxu0 %v4248
        %v4559 = vpop.f32.mrb[0].mxu0
        %v4560 = vadd.f32 0.0, %v4559
        %v4561 = vpop.f32.mrb[0].mxu0
        %4562 = vmatprep.mubr.f32.mxu0 %v4361
        %4563 = vmatmul.mubr.f32.gmra.mrb[0].mxu0 %v4250
        %v4564 = vpop.f32.mrb[0].mxu0
        %v4565 = vadd.f32 0.0, %v4564
        %v4566 = vpop.f32.mrb[0].mxu0
        %4567 = vmatprep.mubr.f32.mxu0 %v4364
        %4568 = vmatmul.mubr.f32.gmra.mrb[0].mxu0 %v4252
        %v4569 = vpop.f32.mrb[0].mxu0
        %v4570 = vadd.f32 0.0, %v4569
        %v4571 = vpop.f32.mrb[0].mxu0
        %4572 = vmatprep.mubr.f32.mxu0 %v4367
        %4573 = vmatmul.mubr.f32.gmra.mrb[0].mxu0 %v4254
        %v4574 = vpop.f32.mrb[0].mxu0
        %v4575 = vadd.f32 0.0, %v4574
        %v4576 = vpop.f32.mrb[0].mxu0
        %4577 = vmatprep.mubr.f32.mxu0 %v4370
        %4578 = vmatmul.mubr.f32.gmra.mrb[0].mxu0 %v4256
        %v4579 = vpop.f32.mrb[0].mxu0
        %v4580 = vadd.f32 0.0, %v4579
        %v4581 = vpop.f32.mrb[0].mxu0
        %4582 = vmatprep.mubr.f32.mxu0 %v4373
        %4583 = vmatmul.mubr.f32.gmra.mrb[0].mxu0 %v4258
        %v4584 = vpop.f32.mrb[0].mxu0
        %v4585 = vadd.f32 0.0, %v4584
        %v4586 = vpop.f32.mrb[0].mxu0
        %4587 = vmatprep.mubr.f32.mxu0 %v4376
        %4588 = vmatmul.mubr.f32.gmra.mrb[0].mxu0 %v4260
        %v4589 = vpop.f32.mrb[0].mxu0
        %v4590 = vadd.f32 0.0, %v4589
        %v4591 = vpop.f32.mrb[0].mxu0
        %4592 = vmatprep.mubr.f32.mxu0 %v4379
        %4593 = vmatmul.mubr.f32.gmra.mrb[0].mxu0 %v4262
        %v4594 = vpop.f32.mrb[0].mxu0
        %v4595 = vadd.f32 0.0, %v4594
        %v4596 = vpop.f32.mrb[0].mxu0
        %4597 = vmatprep.mubr.f32.mxu0 %v4382
        %4598 = vmatmul.mubr.f32.gmra.mrb[0].mxu0 %v4264
        %v4599 = vpop.f32.mrb[0].mxu0
        %v4600 = vadd.f32 0.0, %v4599
        %v4601 = vpop.f32.mrb[0].mxu0
        %4602 = vmatprep.mubr.f32.mxu0 %v4385
        %4603 = vmatmul.mubr.f32.gmra.mrb[0].mxu0 %v4266
        %v4604 = vpop.f32.mrb[0].mxu0
        %v4605 = vadd.f32 0.0, %v4604
        %v4606 = vpop.f32.mrb[0].mxu0
        %4607 = vmatprep.mubr.f32.mxu0 %v4388
        %4608 = vmatmul.mubr.f32.gmra.mrb[0].mxu0 %v4268
        %v4609 = vpop.f32.mrb[0].mxu0
        %v4610 = vadd.f32 0.0, %v4609
        %v4611 = vpop.f32.mrb[0].mxu0
        %4612 = vdwg.mxu0
        %v4613 = vld [vmem:[#allocation8] sm:$0xff]
        %v4614 = vld [vmem:[#allocation8 + $0x8] sm:$0xff]
        %vm4615 = vcmask 973824
        %v4617 = vsel %vm4615, %v4614, 0
        %v4620 = vsel %vm609, %v4610, 0
        %4622 = vmatprep.subr.mxu0 0.0
        %4623 = vmatpush1.msra.mxu0 %v4460
        %4624 = vmatprep.subr.mxu0 0.0
        %4625 = vmatpush1.msra.mxu0 %v4465
        %4626 = vmatprep.subr.mxu0 0.0
        %4627 = vmatpush1.msra.mxu0 %v4470
        %4628 = vmatprep.subr.mxu0 0.0
        %4629 = vmatpush1.msra.mxu0 %v4475
        %4630 = vmatprep.subr.mxu0 0.0
        %4631 = vmatpush1.msra.mxu0 %v4480
        %4632 = vmatprep.subr.mxu0 0.0
        %4633 = vmatpush1.msra.mxu0 %v4485
        %4634 = vmatprep.subr.mxu0 0.0
        %4635 = vmatpush1.msra.mxu0 %v4490
        %4636 = vmatprep.subr.mxu0 0.0
        %4637 = vmatpush1.msra.mxu0 %v4495
        %4638 = vmatprep.subr.mxu0 0.0
        %4639 = vmatpush1.msra.mxu0 %v4500
        %4640 = vmatprep.subr.mxu0 0.0
        %4641 = vmatpush1.msra.mxu0 %v4505
        %4642 = vmatprep.subr.mxu0 0.0
        %4643 = vmatpush1.msra.mxu0 %v4510
        %4644 = vmatprep.subr.mxu0 0.0
        %4645 = vmatpush1.msra.mxu0 %v4515
        %4646 = vmatprep.subr.mxu0 0.0
        %4647 = vmatpush1.msra.mxu0 %v4520
        %4648 = vmatprep.subr.mxu0 0.0
        %4649 = vmatpush1.msra.mxu0 %v4525
        %4650 = vmatprep.subr.mxu0 0.0
        %4651 = vmatpush1.msra.mxu0 %v4530
        %4652 = vmatprep.subr.mxu0 0.0
        %4653 = vmatpush1.msra.mxu0 %v4535
        %4654 = vmatprep.subr.mxu0 0.0
        %4655 = vmatpush1.msra.mxu0 %v4540
        %4656 = vmatprep.subr.mxu0 0.0
        %4657 = vmatpush1.msra.mxu0 %v4545
        %4658 = vmatprep.subr.mxu0 0.0
        %4659 = vmatpush1.msra.mxu0 %v4550
        %4660 = vmatprep.subr.mxu0 0.0
        %4661 = vmatpush1.msra.mxu0 %v4555
        %4662 = vmatprep.subr.mxu0 0.0
        %4663 = vmatpush1.msra.mxu0 %v4560
        %4664 = vmatprep.subr.mxu0 0.0
        %4665 = vmatpush1.msra.mxu0 %v4565
        %4666 = vmatprep.subr.mxu0 0.0
        %4667 = vmatpush1.msra.mxu0 %v4570
        %4668 = vmatprep.subr.mxu0 0.0
        %4669 = vmatpush1.msra.mxu0 %v4575
        %4670 = vmatprep.subr.mxu0 0.0
        %4671 = vmatpush1.msra.mxu0 %v4580
        %4672 = vmatprep.subr.mxu0 0.0
        %4673 = vmatpush1.msra.mxu0 %v4585
        %4674 = vmatprep.subr.mxu0 0.0
        %4675 = vmatpush1.msra.mxu0 %v4590
        %4676 = vmatprep.subr.mxu0 0.0
        %4677 = vmatpush1.msra.mxu0 %v4595
        %4678 = vmatprep.subr.mxu0 0.0
        %4679 = vmatpush1.msra.mxu0 %v4600
        %4680 = vmatprep.subr.mxu0 0.0
        %4681 = vmatpush1.msra.mxu0 %v4605
        %4682 = vmatprep.subr.mxu0 0.0
        %4683 = vmatpush1.msra.mxu0 %v4620
        %4684 = vmatprep.subr.mxu0 0.0
        %4685 = vmatpush1.msra.mxu0 0.0
        %4686 = vmatprep.mubr.f32.mxu0 %v4617
        %4687 = vmatmul.mubr.f32.gmra.mrb[0].mxu0 %v4613
        %v4688 = vpop.f32.mrb[0].mxu0
        %v4689 = vadd.f32 0.0, %v4688
        %v4690 = vpop.f32.mrb[0].mxu0
        %4691 = vdwg.mxu0
        %s4692 = scalar_lea.vmem [#allocation8], 16
        %v4693 = vld [vmem:[%s4692] sm:$0xff]
        %v4694 = vld [vmem:[%s4692 + $0x8] sm:$0xff]
        %v4696 = vsel %vm4615, %v4694, 0
        %4698 = vmatprep.subr.mxu0 0.0
        %4699 = vmatpush1.msra.mxu0 %v4460
        %4700 = vmatprep.subr.mxu0 0.0
        %4701 = vmatpush1.msra.mxu0 %v4465
        %4702 = vmatprep.subr.mxu0 0.0
        %4703 = vmatpush1.msra.mxu0 %v4470
        %4704 = vmatprep.subr.mxu0 0.0
        %4705 = vmatpush1.msra.mxu0 %v4475
        %4706 = vmatprep.subr.mxu0 0.0
        %4707 = vmatpush1.msra.mxu0 %v4480
        %4708 = vmatprep.subr.mxu0 0.0
        %4709 = vmatpush1.msra.mxu0 %v4485
        %4710 = vmatprep.subr.mxu0 0.0
        %4711 = vmatpush1.msra.mxu0 %v4490
        %4712 = vmatprep.subr.mxu0 0.0
        %4713 = vmatpush1.msra.mxu0 %v4495
        %4714 = vmatprep.subr.mxu0 0.0
        %4715 = vmatpush1.msra.mxu0 %v4500
        %4716 = vmatprep.subr.mxu0 0.0
        %4717 = vmatpush1.msra.mxu0 %v4505
        %4718 = vmatprep.subr.mxu0 0.0
        %4719 = vmatpush1.msra.mxu0 %v4510
        %4720 = vmatprep.subr.mxu0 0.0
        %4721 = vmatpush1.msra.mxu0 %v4515
        %4722 = vmatprep.subr.mxu0 0.0
        %4723 = vmatpush1.msra.mxu0 %v4520
        %4724 = vmatprep.subr.mxu0 0.0
        %4725 = vmatpush1.msra.mxu0 %v4525
        %4726 = vmatprep.subr.mxu0 0.0
        %4727 = vmatpush1.msra.mxu0 %v4530
        %4728 = vmatprep.subr.mxu0 0.0
        %4729 = vmatpush1.msra.mxu0 %v4535
        %4730 = vmatprep.subr.mxu0 0.0
        %4731 = vmatpush1.msra.mxu0 %v4540
        %4732 = vmatprep.subr.mxu0 0.0
        %4733 = vmatpush1.msra.mxu0 %v4545
        %4734 = vmatprep.subr.mxu0 0.0
        %4735 = vmatpush1.msra.mxu0 %v4550
        %4736 = vmatprep.subr.mxu0 0.0
        %4737 = vmatpush1.msra.mxu0 %v4555
        %4738 = vmatprep.subr.mxu0 0.0
        %4739 = vmatpush1.msra.mxu0 %v4560
        %4740 = vmatprep.subr.mxu0 0.0
        %4741 = vmatpush1.msra.mxu0 %v4565
        %4742 = vmatprep.subr.mxu0 0.0
        %4743 = vmatpush1.msra.mxu0 %v4570
        %4744 = vmatprep.subr.mxu0 0.0
        %4745 = vmatpush1.msra.mxu0 %v4575
        %4746 = vmatprep.subr.mxu0 0.0
        %4747 = vmatpush1.msra.mxu0 %v4580
        %4748 = vmatprep.subr.mxu0 0.0
        %4749 = vmatpush1.msra.mxu0 %v4585
        %4750 = vmatprep.subr.mxu0 0.0
        %4751 = vmatpush1.msra.mxu0 %v4590
        %4752 = vmatprep.subr.mxu0 0.0
        %4753 = vmatpush1.msra.mxu0 %v4595
        %4754 = vmatprep.subr.mxu0 0.0
        %4755 = vmatpush1.msra.mxu0 %v4600
        %4756 = vmatprep.subr.mxu0 0.0
        %4757 = vmatpush1.msra.mxu0 %v4605
        %4758 = vmatprep.subr.mxu0 0.0
        %4759 = vmatpush1.msra.mxu0 %v4620
        %4760 = vmatprep.subr.mxu0 0.0
        %4761 = vmatpush1.msra.mxu0 0.0
        %4762 = vmatprep.mubr.f32.mxu0 %v4696
        %4763 = vmatmul.mubr.f32.gmra.mrb[0].mxu0 %v4693
        %v4764 = vpop.f32.mrb[0].mxu0
        %v4765 = vadd.f32 0.0, %v4764
        %v4766 = vpop.f32.mrb[0].mxu0
        %4767 = vdwg.mxu0
        %s4768 = scalar_lea.vmem [#allocation8], 32
        %v4769 = vld [vmem:[%s4768] sm:$0xff]
        %v4770 = vld [vmem:[%s4768 + $0x8] sm:$0xff]
        %v4772 = vsel %vm4615, %v4770, 0
        %4774 = vmatprep.subr.mxu0 0.0
        %4775 = vmatpush1.msra.mxu0 %v4460
        %4776 = vmatprep.subr.mxu0 0.0
        %4777 = vmatpush1.msra.mxu0 %v4465
        %4778 = vmatprep.subr.mxu0 0.0
        %4779 = vmatpush1.msra.mxu0 %v4470
        %4780 = vmatprep.subr.mxu0 0.0
        %4781 = vmatpush1.msra.mxu0 %v4475
        %4782 = vmatprep.subr.mxu0 0.0
        %4783 = vmatpush1.msra.mxu0 %v4480
        %4784 = vmatprep.subr.mxu0 0.0
        %4785 = vmatpush1.msra.mxu0 %v4485
        %4786 = vmatprep.subr.mxu0 0.0
        %4787 = vmatpush1.msra.mxu0 %v4490
        %4788 = vmatprep.subr.mxu0 0.0
        %4789 = vmatpush1.msra.mxu0 %v4495
        %4790 = vmatprep.subr.mxu0 0.0
        %4791 = vmatpush1.msra.mxu0 %v4500
        %4792 = vmatprep.subr.mxu0 0.0
        %4793 = vmatpush1.msra.mxu0 %v4505
        %4794 = vmatprep.subr.mxu0 0.0
        %4795 = vmatpush1.msra.mxu0 %v4510
        %4796 = vmatprep.subr.mxu0 0.0
        %4797 = vmatpush1.msra.mxu0 %v4515
        %4798 = vmatprep.subr.mxu0 0.0
        %4799 = vmatpush1.msra.mxu0 %v4520
        %4800 = vmatprep.subr.mxu0 0.0
        %4801 = vmatpush1.msra.mxu0 %v4525
        %4802 = vmatprep.subr.mxu0 0.0
        %4803 = vmatpush1.msra.mxu0 %v4530
        %4804 = vmatprep.subr.mxu0 0.0
        %4805 = vmatpush1.msra.mxu0 %v4535
        %4806 = vmatprep.subr.mxu0 0.0
        %4807 = vmatpush1.msra.mxu0 %v4540
        %4808 = vmatprep.subr.mxu0 0.0
        %4809 = vmatpush1.msra.mxu0 %v4545
        %4810 = vmatprep.subr.mxu0 0.0
        %4811 = vmatpush1.msra.mxu0 %v4550
        %4812 = vmatprep.subr.mxu0 0.0
        %4813 = vmatpush1.msra.mxu0 %v4555
        %4814 = vmatprep.subr.mxu0 0.0
        %4815 = vmatpush1.msra.mxu0 %v4560
        %4816 = vmatprep.subr.mxu0 0.0
        %4817 = vmatpush1.msra.mxu0 %v4565
        %4818 = vmatprep.subr.mxu0 0.0
        %4819 = vmatpush1.msra.mxu0 %v4570
        %4820 = vmatprep.subr.mxu0 0.0
        %4821 = vmatpush1.msra.mxu0 %v4575
        %4822 = vmatprep.subr.mxu0 0.0
        %4823 = vmatpush1.msra.mxu0 %v4580
        %4824 = vmatprep.subr.mxu0 0.0
        %4825 = vmatpush1.msra.mxu0 %v4585
        %4826 = vmatprep.subr.mxu0 0.0
        %4827 = vmatpush1.msra.mxu0 %v4590
        %4828 = vmatprep.subr.mxu0 0.0
        %4829 = vmatpush1.msra.mxu0 %v4595
        %4830 = vmatprep.subr.mxu0 0.0
        %4831 = vmatpush1.msra.mxu0 %v4600
        %4832 = vmatprep.subr.mxu0 0.0
        %4833 = vmatpush1.msra.mxu0 %v4605
        %4834 = vmatprep.subr.mxu0 0.0
        %4835 = vmatpush1.msra.mxu0 %v4620
        %4836 = vmatprep.subr.mxu0 0.0
        %4837 = vmatpush1.msra.mxu0 0.0
        %4838 = vmatprep.mubr.f32.mxu0 %v4772
        %4839 = vmatmul.mubr.f32.gmra.mrb[0].mxu0 %v4769
        %v4840 = vpop.f32.mrb[0].mxu0
        %v4841 = vadd.f32 0.0, %v4840
        %v4842 = vpop.f32.mrb[0].mxu0
        %4843 = vdwg.mxu0
        %s4844 = scalar_lea.vmem [#allocation8], 48
        %v4845 = vld [vmem:[%s4844] sm:$0xff]
        %v4846 = vld [vmem:[%s4844 + $0x8] sm:$0xff]
        %v4848 = vsel %vm4615, %v4846, 0
        %4850 = vmatprep.subr.mxu0 0.0
        %4851 = vmatpush1.msra.mxu0 %v4460
        %4852 = vmatprep.subr.mxu0 0.0
        %4853 = vmatpush1.msra.mxu0 %v4465
        %4854 = vmatprep.subr.mxu0 0.0
        %4855 = vmatpush1.msra.mxu0 %v4470
        %4856 = vmatprep.subr.mxu0 0.0
        %4857 = vmatpush1.msra.mxu0 %v4475
        %4858 = vmatprep.subr.mxu0 0.0
        %4859 = vmatpush1.msra.mxu0 %v4480
        %4860 = vmatprep.subr.mxu0 0.0
        %4861 = vmatpush1.msra.mxu0 %v4485
        %4862 = vmatprep.subr.mxu0 0.0
        %4863 = vmatpush1.msra.mxu0 %v4490
        %4864 = vmatprep.subr.mxu0 0.0
        %4865 = vmatpush1.msra.mxu0 %v4495
        %4866 = vmatprep.subr.mxu0 0.0
        %4867 = vmatpush1.msra.mxu0 %v4500
        %4868 = vmatprep.subr.mxu0 0.0
        %4869 = vmatpush1.msra.mxu0 %v4505
        %4870 = vmatprep.subr.mxu0 0.0
        %4871 = vmatpush1.msra.mxu0 %v4510
        %4872 = vmatprep.subr.mxu0 0.0
        %4873 = vmatpush1.msra.mxu0 %v4515
        %4874 = vmatprep.subr.mxu0 0.0
        %4875 = vmatpush1.msra.mxu0 %v4520
        %4876 = vmatprep.subr.mxu0 0.0
        %4877 = vmatpush1.msra.mxu0 %v4525
        %4878 = vmatprep.subr.mxu0 0.0
        %4879 = vmatpush1.msra.mxu0 %v4530
        %4880 = vmatprep.subr.mxu0 0.0
        %4881 = vmatpush1.msra.mxu0 %v4535
        %4882 = vmatprep.subr.mxu0 0.0
        %4883 = vmatpush1.msra.mxu0 %v4540
        %4884 = vmatprep.subr.mxu0 0.0
        %4885 = vmatpush1.msra.mxu0 %v4545
        %4886 = vmatprep.subr.mxu0 0.0
        %4887 = vmatpush1.msra.mxu0 %v4550
        %4888 = vmatprep.subr.mxu0 0.0
        %4889 = vmatpush1.msra.mxu0 %v4555
        %4890 = vmatprep.subr.mxu0 0.0
        %4891 = vmatpush1.msra.mxu0 %v4560
        %4892 = vmatprep.subr.mxu0 0.0
        %4893 = vmatpush1.msra.mxu0 %v4565
        %4894 = vmatprep.subr.mxu0 0.0
        %4895 = vmatpush1.msra.mxu0 %v4570
        %4896 = vmatprep.subr.mxu0 0.0
        %4897 = vmatpush1.msra.mxu0 %v4575
        %4898 = vmatprep.subr.mxu0 0.0
        %4899 = vmatpush1.msra.mxu0 %v4580
        %4900 = vmatprep.subr.mxu0 0.0
        %4901 = vmatpush1.msra.mxu0 %v4585
        %4902 = vmatprep.subr.mxu0 0.0
        %4903 = vmatpush1.msra.mxu0 %v4590
        %4904 = vmatprep.subr.mxu0 0.0
        %4905 = vmatpush1.msra.mxu0 %v4595
        %4906 = vmatprep.subr.mxu0 0.0
        %4907 = vmatpush1.msra.mxu0 %v4600
        %4908 = vmatprep.subr.mxu0 0.0
        %4909 = vmatpush1.msra.mxu0 %v4605
        %4910 = vmatprep.subr.mxu0 0.0
        %4911 = vmatpush1.msra.mxu0 %v4620
        %4912 = vmatprep.subr.mxu0 0.0
        %4913 = vmatpush1.msra.mxu0 0.0
        %4914 = vmatprep.mubr.f32.mxu0 %v4848
        %4915 = vmatmul.mubr.f32.gmra.mrb[0].mxu0 %v4845
        %v4916 = vpop.f32.mrb[0].mxu0
        %v4917 = vadd.f32 0.0, %v4916
        %v4918 = vpop.f32.mrb[0].mxu0
        %4919 = vdwg.mxu0
        %s4920 = scalar_lea.vmem [#allocation8], 64
        %v4921 = vld [vmem:[%s4920] sm:$0xff]
        %v4922 = vld [vmem:[%s4920 + $0x8] sm:$0xff]
        %v4924 = vsel %vm4615, %v4922, 0
        %4926 = vmatprep.subr.mxu0 0.0
        %4927 = vmatpush1.msra.mxu0 %v4460
        %4928 = vmatprep.subr.mxu0 0.0
        %4929 = vmatpush1.msra.mxu0 %v4465
        %4930 = vmatprep.subr.mxu0 0.0
        %4931 = vmatpush1.msra.mxu0 %v4470
        %4932 = vmatprep.subr.mxu0 0.0
        %4933 = vmatpush1.msra.mxu0 %v4475
        %4934 = vmatprep.subr.mxu0 0.0
        %4935 = vmatpush1.msra.mxu0 %v4480
        %4936 = vmatprep.subr.mxu0 0.0
        %4937 = vmatpush1.msra.mxu0 %v4485
        %4938 = vmatprep.subr.mxu0 0.0
        %4939 = vmatpush1.msra.mxu0 %v4490
        %4940 = vmatprep.subr.mxu0 0.0
        %4941 = vmatpush1.msra.mxu0 %v4495
        %4942 = vmatprep.subr.mxu0 0.0
        %4943 = vmatpush1.msra.mxu0 %v4500
        %4944 = vmatprep.subr.mxu0 0.0
        %4945 = vmatpush1.msra.mxu0 %v4505
        %4946 = vmatprep.subr.mxu0 0.0
        %4947 = vmatpush1.msra.mxu0 %v4510
        %4948 = vmatprep.subr.mxu0 0.0
        %4949 = vmatpush1.msra.mxu0 %v4515
        %4950 = vmatprep.subr.mxu0 0.0
        %4951 = vmatpush1.msra.mxu0 %v4520
        %4952 = vmatprep.subr.mxu0 0.0
        %4953 = vmatpush1.msra.mxu0 %v4525
        %4954 = vmatprep.subr.mxu0 0.0
        %4955 = vmatpush1.msra.mxu0 %v4530
        %4956 = vmatprep.subr.mxu0 0.0
        %4957 = vmatpush1.msra.mxu0 %v4535
        %4958 = vmatprep.subr.mxu0 0.0
        %4959 = vmatpush1.msra.mxu0 %v4540
        %4960 = vmatprep.subr.mxu0 0.0
        %4961 = vmatpush1.msra.mxu0 %v4545
        %4962 = vmatprep.subr.mxu0 0.0
        %4963 = vmatpush1.msra.mxu0 %v4550
        %4964 = vmatprep.subr.mxu0 0.0
        %4965 = vmatpush1.msra.mxu0 %v4555
        %4966 = vmatprep.subr.mxu0 0.0
        %4967 = vmatpush1.msra.mxu0 %v4560
        %4968 = vmatprep.subr.mxu0 0.0
        %4969 = vmatpush1.msra.mxu0 %v4565
        %4970 = vmatprep.subr.mxu0 0.0
        %4971 = vmatpush1.msra.mxu0 %v4570
        %4972 = vmatprep.subr.mxu0 0.0
        %4973 = vmatpush1.msra.mxu0 %v4575
        %4974 = vmatprep.subr.mxu0 0.0
        %4975 = vmatpush1.msra.mxu0 %v4580
        %4976 = vmatprep.subr.mxu0 0.0
        %4977 = vmatpush1.msra.mxu0 %v4585
        %4978 = vmatprep.subr.mxu0 0.0
        %4979 = vmatpush1.msra.mxu0 %v4590
        %4980 = vmatprep.subr.mxu0 0.0
        %4981 = vmatpush1.msra.mxu0 %v4595
        %4982 = vmatprep.subr.mxu0 0.0
        %4983 = vmatpush1.msra.mxu0 %v4600
        %4984 = vmatprep.subr.mxu0 0.0
        %4985 = vmatpush1.msra.mxu0 %v4605
        %4986 = vmatprep.subr.mxu0 0.0
        %4987 = vmatpush1.msra.mxu0 %v4620
        %4988 = vmatprep.subr.mxu0 0.0
        %4989 = vmatpush1.msra.mxu0 0.0
        %4990 = vmatprep.mubr.f32.mxu0 %v4924
        %4991 = vmatmul.mubr.f32.gmra.mrb[0].mxu0 %v4921
        %v4992 = vpop.f32.mrb[0].mxu0
        %v4993 = vadd.f32 0.0, %v4992
        %v4994 = vpop.f32.mrb[0].mxu0
        %4995 = vdwg.mxu0
        %s4996 = scalar_lea.vmem [#allocation8], 80
        %v4997 = vld [vmem:[%s4996] sm:$0xff]
        %v4998 = vld [vmem:[%s4996 + $0x8] sm:$0xff]
        %v5000 = vsel %vm4615, %v4998, 0
        %5002 = vmatprep.subr.mxu0 0.0
        %5003 = vmatpush1.msra.mxu0 %v4460
        %5004 = vmatprep.subr.mxu0 0.0
        %5005 = vmatpush1.msra.mxu0 %v4465
        %5006 = vmatprep.subr.mxu0 0.0
        %5007 = vmatpush1.msra.mxu0 %v4470
        %5008 = vmatprep.subr.mxu0 0.0
        %5009 = vmatpush1.msra.mxu0 %v4475
        %5010 = vmatprep.subr.mxu0 0.0
        %5011 = vmatpush1.msra.mxu0 %v4480
        %5012 = vmatprep.subr.mxu0 0.0
        %5013 = vmatpush1.msra.mxu0 %v4485
        %5014 = vmatprep.subr.mxu0 0.0
        %5015 = vmatpush1.msra.mxu0 %v4490
        %5016 = vmatprep.subr.mxu0 0.0
        %5017 = vmatpush1.msra.mxu0 %v4495
        %5018 = vmatprep.subr.mxu0 0.0
        %5019 = vmatpush1.msra.mxu0 %v4500
        %5020 = vmatprep.subr.mxu0 0.0
        %5021 = vmatpush1.msra.mxu0 %v4505
        %5022 = vmatprep.subr.mxu0 0.0
        %5023 = vmatpush1.msra.mxu0 %v4510
        %5024 = vmatprep.subr.mxu0 0.0
        %5025 = vmatpush1.msra.mxu0 %v4515
        %5026 = vmatprep.subr.mxu0 0.0
        %5027 = vmatpush1.msra.mxu0 %v4520
        %5028 = vmatprep.subr.mxu0 0.0
        %5029 = vmatpush1.msra.mxu0 %v4525
        %5030 = vmatprep.subr.mxu0 0.0
        %5031 = vmatpush1.msra.mxu0 %v4530
        %5032 = vmatprep.subr.mxu0 0.0
        %5033 = vmatpush1.msra.mxu0 %v4535
        %5034 = vmatprep.subr.mxu0 0.0
        %5035 = vmatpush1.msra.mxu0 %v4540
        %5036 = vmatprep.subr.mxu0 0.0
        %5037 = vmatpush1.msra.mxu0 %v4545
        %5038 = vmatprep.subr.mxu0 0.0
        %5039 = vmatpush1.msra.mxu0 %v4550
        %5040 = vmatprep.subr.mxu0 0.0
        %5041 = vmatpush1.msra.mxu0 %v4555
        %5042 = vmatprep.subr.mxu0 0.0
        %5043 = vmatpush1.msra.mxu0 %v4560
        %5044 = vmatprep.subr.mxu0 0.0
        %5045 = vmatpush1.msra.mxu0 %v4565
        %5046 = vmatprep.subr.mxu0 0.0
        %5047 = vmatpush1.msra.mxu0 %v4570
        %5048 = vmatprep.subr.mxu0 0.0
        %5049 = vmatpush1.msra.mxu0 %v4575
        %5050 = vmatprep.subr.mxu0 0.0
        %5051 = vmatpush1.msra.mxu0 %v4580
        %5052 = vmatprep.subr.mxu0 0.0
        %5053 = vmatpush1.msra.mxu0 %v4585
        %5054 = vmatprep.subr.mxu0 0.0
        %5055 = vmatpush1.msra.mxu0 %v4590
        %5056 = vmatprep.subr.mxu0 0.0
        %5057 = vmatpush1.msra.mxu0 %v4595
        %5058 = vmatprep.subr.mxu0 0.0
        %5059 = vmatpush1.msra.mxu0 %v4600
        %5060 = vmatprep.subr.mxu0 0.0
        %5061 = vmatpush1.msra.mxu0 %v4605
        %5062 = vmatprep.subr.mxu0 0.0
        %5063 = vmatpush1.msra.mxu0 %v4620
        %5064 = vmatprep.subr.mxu0 0.0
        %5065 = vmatpush1.msra.mxu0 0.0
        %5066 = vmatprep.mubr.f32.mxu0 %v5000
        %5067 = vmatmul.mubr.f32.gmra.mrb[0].mxu0 %v4997
        %v5068 = vpop.f32.mrb[0].mxu0
        %v5069 = vadd.f32 0.0, %v5068
        %v5070 = vpop.f32.mrb[0].mxu0
        %5071 = vdwg.mxu0
        %5073 = vrot.lane.b32.xlu0 %v4765, 96
        %v5074 = vpop.permute.xlu0 %5073
        %5077 = vrot.lane.b32.xlu0 %v4841, 64
        %v5078 = vpop.permute.xlu0 %5077
        %5081 = vrot.lane.b32.xlu0 %v4917, 32
        %v5082 = vpop.permute.xlu0 %5081
        %5085 = vrot.lane.b32.xlu0 %v5069, 96
        %v5086 = vpop.permute.xlu0 %5085
        %v5088 = vsel %vm1031, %v4689, %v5074
        %v5089 = vsel %vm962, %v5074, %v5078
        %v5090 = vsel %vm929, %v5078, %v5082
        %v5091 = vsel %vm1031, %v4993, %v5086
        %v5092 = vld [vmem:[%s8] sm:$0xff]
        %v5093 = vld [vmem:[%s8 + $0x8] sm:$0xff]
        %v5094 = vld [vmem:[%s8 + $0x10] sm:$0xff]
        %v5095 = vld [vmem:[%s8 + $0x18] sm:$0xff]
        %v5096 = vld [vmem:[%s8 + $0x20] sm:$0xff]
        %v5097 = vld [vmem:[%s8 + $0x28] sm:$0xff]
        %v5098 = vld [vmem:[%s8 + $0x30] sm:$0xff]
        %v5099 = vld [vmem:[%s8 + $0x38] sm:$0xff]
        %v5100 = vld [vmem:[%s8 + $0x40] sm:$0xff]
        %v5101 = vld [vmem:[%s8 + $0x48] sm:$0xff]
        %v5102 = vld [vmem:[%s8 + $0x50] sm:$0xff]
        %v5103 = vld [vmem:[%s8 + $0x58] sm:$0xff]
        %v5104 = vld [vmem:[%s8 + $0x60] sm:$0xff]
        %v5105 = vld [vmem:[%s8 + $0x68] sm:$0xff]
        %v5106 = vld [vmem:[%s8 + $0x70] sm:$0xff]
        %v5107 = vld [vmem:[%s8 + $0x78] sm:$0xff]
        %v5108 = vld [vmem:[%s8 + $0x80] sm:$0xff]
        %v5109 = vld [vmem:[%s8 + $0x88] sm:$0xff]
        %v5110 = vld [vmem:[%s8 + $0x90] sm:$0xff]
        %v5111 = vld [vmem:[%s8 + $0x98] sm:$0xff]
        %v5112 = vld [vmem:[%s8 + $0xa0] sm:$0xff]
        %v5113 = vld [vmem:[%s8 + $0xa8] sm:$0xff]
        %v5114 = vld [vmem:[%s8 + $0xb0] sm:$0xff]
        %v5115 = vld [vmem:[%s8 + $0xb8] sm:$0xff]
        %v5116 = vld [vmem:[%s8 + $0xc0] sm:$0xff]
        %v5117 = vld [vmem:[%s8 + $0xc8] sm:$0xff]
        %v5118 = vld [vmem:[%s8 + $0xd0] sm:$0xff]
        %v5119 = vld [vmem:[%s8 + $0xd8] sm:$0xff]
        %v5120 = vld [vmem:[%s8 + $0xe0] sm:$0xff]
        %v5121 = vld [vmem:[%s8 + $0xe8] sm:$0xff]
        %v5122 = vld [vmem:[%s8 + $0xf0] sm:$0xff]
        %v5123 = vld [vmem:[%s8 + $0xf8] sm:$0xff]
        %v5124 = vld [vmem:[%s8 + $0x100] sm:$0xff]
        %v5125 = vld [vmem:[%s8 + $0x108] sm:$0xff]
        %v5126 = vld [vmem:[%s8 + $0x110] sm:$0xff]
        %v5127 = vld [vmem:[%s8 + $0x118] sm:$0xff]
        %v5128 = vld [vmem:[%s8 + $0x120] sm:$0xff]
        %v5129 = vld [vmem:[%s8 + $0x128] sm:$0xff]
        %v5130 = vld [vmem:[%s8 + $0x130] sm:$0xff]
        %v5131 = vld [vmem:[%s8 + $0x138] sm:$0xff]
        %v5132 = vld [vmem:[%s8 + $0x140] sm:$0xff]
        %v5133 = vld [vmem:[%s8 + $0x148] sm:$0xff]
        %v5134 = vld [vmem:[%s8 + $0x150] sm:$0xff]
        %v5135 = vld [vmem:[%s8 + $0x158] sm:$0xff]
        %v5136 = vld [vmem:[%s8 + $0x160] sm:$0xff]
        %v5137 = vld [vmem:[%s8 + $0x168] sm:$0xff]
        %v5138 = vld [vmem:[%s8 + $0x170] sm:$0xff]
        %v5139 = vld [vmem:[%s8 + $0x178] sm:$0xff]
        %v5140 = vld [vmem:[%s8 + $0x180] sm:$0xff]
        %v5141 = vld [vmem:[%s8 + $0x188] sm:$0xff]
        %v5142 = vld [vmem:[%s8 + $0x190] sm:$0xff]
        %v5143 = vld [vmem:[%s8 + $0x198] sm:$0xff]
        %v5144 = vld [vmem:[%s8 + $0x1a0] sm:$0xff]
        %v5145 = vld [vmem:[%s8 + $0x1a8] sm:$0xff]
        %v5146 = vld [vmem:[%s8 + $0x1b0] sm:$0xff]
        %v5147 = vld [vmem:[%s8 + $0x1b8] sm:$0xff]
        %v5148 = vld [vmem:[%s8 + $0x1c0] sm:$0xff]
        %v5149 = vld [vmem:[%s8 + $0x1c8] sm:$0xff]
        %v5150 = vld [vmem:[%s8 + $0x1d0] sm:$0xff]
        %v5151 = vld [vmem:[%s8 + $0x1d8] sm:$0xff]
        %v5152 = vld [vmem:[%s8 + $0x1e0] sm:$0xff]
        %v5153 = vld [vmem:[%s8 + $0x1e8] sm:$0xff]
        %v5154 = vld [vmem:[%s8 + $0x1f0] sm:$0xff]
        %v5155 = vld [vmem:[%s8 + $0x1f8] sm:$0xff]
        %v5156 = vld [vmem:[%s8 + $0x200] sm:$0xff]
        %v5157 = vld [vmem:[%s8 + $0x208] sm:$0xff]
        %v5158 = vld [vmem:[%s8 + $0x210] sm:$0xff]
        %v5159 = vld [vmem:[%s8 + $0x218] sm:$0xff]
        %v5160 = vld [vmem:[%s8 + $0x220] sm:$0xff]
        %v5161 = vld [vmem:[%s8 + $0x228] sm:$0xff]
        %v5162 = vld [vmem:[%s8 + $0x230] sm:$0xff]
        %v5163 = vld [vmem:[%s8 + $0x238] sm:$0xff]
        %v5164 = vld [vmem:[%s9] sm:$0x1]
        %v5166 = vlaneseq
        %v5167 = vshrl.u32 %v5166, 7
        %v5168 = vsub.s32 0, %v5167
        %v5169 = vrot.slane %v5164, %v5168
        %v5171 = vsel %vm962, %v5086, 0
        %5173 = vmatprep.subr.mxu0 0.0
        %5174 = vmatpush1.msra.mxu0 %v5092
        %5175 = vmatprep.subr.mxu0 0.0
        %5176 = vmatpush1.msra.mxu0 %v5093
        %5177 = vmatprep.subr.mxu0 0.0
        %5178 = vmatpush1.msra.mxu0 %v5094
        %5179 = vmatprep.subr.mxu0 0.0
        %5180 = vmatpush1.msra.mxu0 %v5095
        %5181 = vmatprep.subr.mxu0 0.0
        %5182 = vmatpush1.msra.mxu0 %v5096
        %5183 = vmatprep.subr.mxu0 0.0
        %5184 = vmatpush1.msra.mxu0 %v5097
        %5185 = vmatprep.subr.mxu0 0.0
        %5186 = vmatpush1.msra.mxu0 %v5098
        %5187 = vmatprep.subr.mxu0 0.0
        %5188 = vmatpush1.msra.mxu0 %v5099
        %5189 = vmatprep.subr.mxu0 0.0
        %5190 = vmatpush1.msra.mxu0 %v5100
        %5191 = vmatprep.subr.mxu0 0.0
        %5192 = vmatpush1.msra.mxu0 %v5101
        %5193 = vmatprep.subr.mxu0 0.0
        %5194 = vmatpush1.msra.mxu0 %v5102
        %5195 = vmatprep.subr.mxu0 0.0
        %5196 = vmatpush1.msra.mxu0 %v5103
        %5197 = vmatprep.subr.mxu0 0.0
        %5198 = vmatpush1.msra.mxu0 %v5104
        %5199 = vmatprep.subr.mxu0 0.0
        %5200 = vmatpush1.msra.mxu0 %v5105
        %5201 = vmatprep.subr.mxu0 0.0
        %5202 = vmatpush1.msra.mxu0 %v5106
        %5203 = vmatprep.subr.mxu0 0.0
        %5204 = vmatpush1.msra.mxu0 %v5107
        %5205 = vmatprep.subr.mxu0 0.0
        %5206 = vmatpush1.msra.mxu0 %v5108
        %5207 = vmatprep.subr.mxu0 0.0
        %5208 = vmatpush1.msra.mxu0 %v5109
        %5209 = vmatprep.subr.mxu0 0.0
        %5210 = vmatpush1.msra.mxu0 %v5110
        %5211 = vmatprep.subr.mxu0 0.0
        %5212 = vmatpush1.msra.mxu0 %v5111
        %5213 = vmatprep.subr.mxu0 0.0
        %5214 = vmatpush1.msra.mxu0 %v5112
        %5215 = vmatprep.subr.mxu0 0.0
        %5216 = vmatpush1.msra.mxu0 %v5113
        %5217 = vmatprep.subr.mxu0 0.0
        %5218 = vmatpush1.msra.mxu0 %v5114
        %5219 = vmatprep.subr.mxu0 0.0
        %5220 = vmatpush1.msra.mxu0 %v5115
        %5221 = vmatprep.subr.mxu0 0.0
        %5222 = vmatpush1.msra.mxu0 %v5116
        %5223 = vmatprep.subr.mxu0 0.0
        %5224 = vmatpush1.msra.mxu0 %v5117
        %5225 = vmatprep.subr.mxu0 0.0
        %5226 = vmatpush1.msra.mxu0 %v5118
        %5227 = vmatprep.subr.mxu0 0.0
        %5228 = vmatpush1.msra.mxu0 %v5119
        %5229 = vmatprep.subr.mxu0 0.0
        %5230 = vmatpush1.msra.mxu0 %v5120
        %5231 = vmatprep.subr.mxu0 0.0
        %5232 = vmatpush1.msra.mxu0 %v5121
        %5233 = vmatprep.subr.mxu0 0.0
        %5234 = vmatpush1.msra.mxu0 %v5122
        %5235 = vmatprep.subr.mxu0 0.0
        %5236 = vmatpush1.msra.mxu0 %v5123
        %5237 = vmatprep.mubr.f32.mxu0 %v5089
        %5238 = vmatmul.mubr.f32.gmra.mrb[0].mxu0 %v5088
        %v5239 = vpop.f32.mrb[0].mxu0
        %v5240 = vadd.f32 %v5169, %v5239
        %v5241 = vpop.f32.mrb[0].mxu0
        %5242 = vdwg.mxu0
        %5243 = vmatprep.subr.mxu0 0.0
        %5244 = vmatpush1.msra.mxu0 %v5124
        %5245 = vmatprep.subr.mxu0 0.0
        %5246 = vmatpush1.msra.mxu0 %v5125
        %5247 = vmatprep.subr.mxu0 0.0
        %5248 = vmatpush1.msra.mxu0 %v5126
        %5249 = vmatprep.subr.mxu0 0.0
        %5250 = vmatpush1.msra.mxu0 %v5127
        %5251 = vmatprep.subr.mxu0 0.0
        %5252 = vmatpush1.msra.mxu0 %v5128
        %5253 = vmatprep.subr.mxu0 0.0
        %5254 = vmatpush1.msra.mxu0 %v5129
        %5255 = vmatprep.subr.mxu0 0.0
        %5256 = vmatpush1.msra.mxu0 %v5130
        %5257 = vmatprep.subr.mxu0 0.0
        %5258 = vmatpush1.msra.mxu0 %v5131
        %5259 = vmatprep.subr.mxu0 0.0
        %5260 = vmatpush1.msra.mxu0 %v5132
        %5261 = vmatprep.subr.mxu0 0.0
        %5262 = vmatpush1.msra.mxu0 %v5133
        %5263 = vmatprep.subr.mxu0 0.0
        %5264 = vmatpush1.msra.mxu0 %v5134
        %5265 = vmatprep.subr.mxu0 0.0
        %5266 = vmatpush1.msra.mxu0 %v5135
        %5267 = vmatprep.subr.mxu0 0.0
        %5268 = vmatpush1.msra.mxu0 %v5136
        %5269 = vmatprep.subr.mxu0 0.0
        %5270 = vmatpush1.msra.mxu0 %v5137
        %5271 = vmatprep.subr.mxu0 0.0
        %5272 = vmatpush1.msra.mxu0 %v5138
        %5273 = vmatprep.subr.mxu0 0.0
        %5274 = vmatpush1.msra.mxu0 %v5139
        %5275 = vmatprep.subr.mxu0 0.0
        %5276 = vmatpush1.msra.mxu0 %v5140
        %5277 = vmatprep.subr.mxu0 0.0
        %5278 = vmatpush1.msra.mxu0 %v5141
        %5279 = vmatprep.subr.mxu0 0.0
        %5280 = vmatpush1.msra.mxu0 %v5142
        %5281 = vmatprep.subr.mxu0 0.0
        %5282 = vmatpush1.msra.mxu0 %v5143
        %5283 = vmatprep.subr.mxu0 0.0
        %5284 = vmatpush1.msra.mxu0 %v5144
        %5285 = vmatprep.subr.mxu0 0.0
        %5286 = vmatpush1.msra.mxu0 %v5145
        %5287 = vmatprep.subr.mxu0 0.0
        %5288 = vmatpush1.msra.mxu0 %v5146
        %5289 = vmatprep.subr.mxu0 0.0
        %5290 = vmatpush1.msra.mxu0 %v5147
        %5291 = vmatprep.subr.mxu0 0.0
        %5292 = vmatpush1.msra.mxu0 %v5148
        %5293 = vmatprep.subr.mxu0 0.0
        %5294 = vmatpush1.msra.mxu0 %v5149
        %5295 = vmatprep.subr.mxu0 0.0
        %5296 = vmatpush1.msra.mxu0 %v5150
        %5297 = vmatprep.subr.mxu0 0.0
        %5298 = vmatpush1.msra.mxu0 %v5151
        %5299 = vmatprep.subr.mxu0 0.0
        %5300 = vmatpush1.msra.mxu0 %v5152
        %5301 = vmatprep.subr.mxu0 0.0
        %5302 = vmatpush1.msra.mxu0 %v5153
        %5303 = vmatprep.subr.mxu0 0.0
        %5304 = vmatpush1.msra.mxu0 %v5154
        %5305 = vmatprep.subr.mxu0 0.0
        %5306 = vmatpush1.msra.mxu0 %v5155
        %5307 = vmatprep.mubr.f32.mxu0 %v5091
        %5308 = vmatmul.mubr.f32.gmra.mrb[0].mxu0 %v5090
        %v5309 = vpop.f32.mrb[0].mxu0
        %v5310 = vadd.f32 %v5240, %v5309
        %v5311 = vpop.f32.mrb[0].mxu0
        %5312 = vdwg.mxu0
        %5313 = vmatprep.subr.mxu0 0.0
        %5314 = vmatpush1.msra.mxu0 %v5156
        %5315 = vmatprep.subr.mxu0 0.0
        %5316 = vmatpush1.msra.mxu0 %v5157
        %5317 = vmatprep.subr.mxu0 0.0
        %5318 = vmatpush1.msra.mxu0 %v5158
        %5319 = vmatprep.subr.mxu0 0.0
        %5320 = vmatpush1.msra.mxu0 %v5159
        %5321 = vmatprep.subr.mxu0 0.0
        %5322 = vmatpush1.msra.mxu0 %v5160
        %5323 = vmatprep.subr.mxu0 0.0
        %5324 = vmatpush1.msra.mxu0 %v5161
        %5325 = vmatprep.subr.mxu0 0.0
        %5326 = vmatpush1.msra.mxu0 %v5162
        %5327 = vmatprep.subr.mxu0 0.0
        %5328 = vmatpush1.msra.mxu0 %v5163
        %5329 = vmatprep.subr.mxu0 0.0
        %5330 = vmatpush1.msra.mxu0 0.0
        %5331 = vmatprep.subr.mxu0 0.0
        %5332 = vmatpush1.msra.mxu0 0.0
        %5333 = vmatprep.subr.mxu0 0.0
        %5334 = vmatpush1.msra.mxu0 0.0
        %5335 = vmatprep.subr.mxu0 0.0
        %5336 = vmatpush1.msra.mxu0 0.0
        %5337 = vmatprep.subr.mxu0 0.0
        %5338 = vmatpush1.msra.mxu0 0.0
        %5339 = vmatprep.subr.mxu0 0.0
        %5340 = vmatpush1.msra.mxu0 0.0
        %5341 = vmatprep.subr.mxu0 0.0
        %5342 = vmatpush1.msra.mxu0 0.0
        %5343 = vmatprep.subr.mxu0 0.0
        %5344 = vmatpush1.msra.mxu0 0.0
        %5345 = vmatprep.subr.mxu0 0.0
        %5346 = vmatpush1.msra.mxu0 0.0
        %5347 = vmatprep.subr.mxu0 0.0
        %5348 = vmatpush1.msra.mxu0 0.0
        %5349 = vmatprep.subr.mxu0 0.0
        %5350 = vmatpush1.msra.mxu0 0.0
        %5351 = vmatprep.subr.mxu0 0.0
        %5352 = vmatpush1.msra.mxu0 0.0
        %5353 = vmatprep.subr.mxu0 0.0
        %5354 = vmatpush1.msra.mxu0 0.0
        %5355 = vmatprep.subr.mxu0 0.0
        %5356 = vmatpush1.msra.mxu0 0.0
        %5357 = vmatprep.subr.mxu0 0.0
        %5358 = vmatpush1.msra.mxu0 0.0
        %5359 = vmatprep.subr.mxu0 0.0
        %5360 = vmatpush1.msra.mxu0 0.0
        %5361 = vmatprep.subr.mxu0 0.0
        %5362 = vmatpush1.msra.mxu0 0.0
        %5363 = vmatprep.subr.mxu0 0.0
        %5364 = vmatpush1.msra.mxu0 0.0
        %5365 = vmatprep.subr.mxu0 0.0
        %5366 = vmatpush1.msra.mxu0 0.0
        %5367 = vmatprep.subr.mxu0 0.0
        %5368 = vmatpush1.msra.mxu0 0.0
        %5369 = vmatprep.subr.mxu0 0.0
        %5370 = vmatpush1.msra.mxu0 0.0
        %5371 = vmatprep.subr.mxu0 0.0
        %5372 = vmatpush1.msra.mxu0 0.0
        %5373 = vmatprep.subr.mxu0 0.0
        %5374 = vmatpush1.msra.mxu0 0.0
        %5375 = vmatprep.subr.mxu0 0.0
        %5376 = vmatpush1.msra.mxu0 0.0
        %5377 = vmatprep.mubr.f32.mxu0 0.0
        %5378 = vmatmul.mubr.f32.gmra.mrb[0].mxu0 %v5171
        %v5379 = vpop.f32.mrb[0].mxu0
        %v5380 = vadd.f32 %v5310, %v5379
        %v5381 = vpop.f32.mrb[0].mxu0
        %5382 = vdwg.mxu0
        %v5383 = vmax.f32 %v5380, 0.0
        %v5384 = vld [vmem:[%s10] sm:$0xff]
        %v5385 = vld [vmem:[%s10 + $0x8] sm:$0xff]
        %v5386 = vld [vmem:[%s10 + $0x10] sm:$0xff]
        %v5387 = vld [vmem:[%s10 + $0x18] sm:$0xff]
        %v5388 = vld [vmem:[%s10 + $0x20] sm:$0xff]
        %v5389 = vld [vmem:[%s10 + $0x28] sm:$0xff]
        %v5390 = vld [vmem:[%s10 + $0x30] sm:$0xff]
        %v5391 = vld [vmem:[%s10 + $0x38] sm:$0xff]
        %v5392 = vld [vmem:[%s10 + $0x40] sm:$0xff]
        %v5393 = vld [vmem:[%s10 + $0x48] sm:$0xff]
        %v5394 = vld [vmem:[%s10 + $0x50] sm:$0xff]
        %v5395 = vld [vmem:[%s10 + $0x58] sm:$0xff]
        %v5396 = vld [vmem:[%s10 + $0x60] sm:$0xff]
        %v5397 = vld [vmem:[%s10 + $0x68] sm:$0xff]
        %v5398 = vld [vmem:[%s10 + $0x70] sm:$0xff]
        %v5399 = vld [vmem:[%s11] sm:$0x1]
        %v5401 = vlaneseq
        %v5402 = vshrl.u32 %v5401, 7
        %v5403 = vsub.s32 0, %v5402
        %v5404 = vrot.slane %v5399, %v5403
        %vm5406 = vcmask 982016
        %v5408 = vsel %vm5406, %v5383, 0
        %5410 = vmatprep.subr.mxu0 0.0
        %5411 = vmatpush1.msra.mxu0 %v5384
        %5412 = vmatprep.subr.mxu0 0.0
        %5413 = vmatpush1.msra.mxu0 %v5385
        %5414 = vmatprep.subr.mxu0 0.0
        %5415 = vmatpush1.msra.mxu0 %v5386
        %5416 = vmatprep.subr.mxu0 0.0
        %5417 = vmatpush1.msra.mxu0 %v5387
        %5418 = vmatprep.subr.mxu0 0.0
        %5419 = vmatpush1.msra.mxu0 %v5388
        %5420 = vmatprep.subr.mxu0 0.0
        %5421 = vmatpush1.msra.mxu0 %v5389
        %5422 = vmatprep.subr.mxu0 0.0
        %5423 = vmatpush1.msra.mxu0 %v5390
        %5424 = vmatprep.subr.mxu0 0.0
        %5425 = vmatpush1.msra.mxu0 %v5391
        %5426 = vmatprep.subr.mxu0 0.0
        %5427 = vmatpush1.msra.mxu0 %v5392
        %5428 = vmatprep.subr.mxu0 0.0
        %5429 = vmatpush1.msra.mxu0 %v5393
        %5430 = vmatprep.subr.mxu0 0.0
        %5431 = vmatpush1.msra.mxu0 %v5394
        %5432 = vmatprep.subr.mxu0 0.0
        %5433 = vmatpush1.msra.mxu0 %v5395
        %5434 = vmatprep.subr.mxu0 0.0
        %5435 = vmatpush1.msra.mxu0 %v5396
        %5436 = vmatprep.subr.mxu0 0.0
        %5437 = vmatpush1.msra.mxu0 %v5397
        %5438 = vmatprep.subr.mxu0 0.0
        %5439 = vmatpush1.msra.mxu0 %v5398
        %5440 = vmatprep.subr.mxu0 0.0
        %5441 = vmatpush1.msra.mxu0 0.0
        %5442 = vmatprep.subr.mxu0 0.0
        %5443 = vmatpush1.msra.mxu0 0.0
        %5444 = vmatprep.subr.mxu0 0.0
        %5445 = vmatpush1.msra.mxu0 0.0
        %5446 = vmatprep.subr.mxu0 0.0
        %5447 = vmatpush1.msra.mxu0 0.0
        %5448 = vmatprep.subr.mxu0 0.0
        %5449 = vmatpush1.msra.mxu0 0.0
        %5450 = vmatprep.subr.mxu0 0.0
        %5451 = vmatpush1.msra.mxu0 0.0
        %5452 = vmatprep.subr.mxu0 0.0
        %5453 = vmatpush1.msra.mxu0 0.0
        %5454 = vmatprep.subr.mxu0 0.0
        %5455 = vmatpush1.msra.mxu0 0.0
        %5456 = vmatprep.subr.mxu0 0.0
        %5457 = vmatpush1.msra.mxu0 0.0
        %5458 = vmatprep.subr.mxu0 0.0
        %5459 = vmatpush1.msra.mxu0 0.0
        %5460 = vmatprep.subr.mxu0 0.0
        %5461 = vmatpush1.msra.mxu0 0.0
        %5462 = vmatprep.subr.mxu0 0.0
        %5463 = vmatpush1.msra.mxu0 0.0
        %5464 = vmatprep.subr.mxu0 0.0
        %5465 = vmatpush1.msra.mxu0 0.0
        %5466 = vmatprep.subr.mxu0 0.0
        %5467 = vmatpush1.msra.mxu0 0.0
        %5468 = vmatprep.subr.mxu0 0.0
        %5469 = vmatpush1.msra.mxu0 0.0
        %5470 = vmatprep.subr.mxu0 0.0
        %5471 = vmatpush1.msra.mxu0 0.0
        %5472 = vmatprep.subr.mxu0 0.0
        %5473 = vmatpush1.msra.mxu0 0.0
        %5474 = vmatprep.mubr.f32.mxu0 0.0
        %5475 = vmatmul.mubr.f32.gmra.mrb[0].mxu0 %v5408
        %v5476 = vpop.f32.mrb[0].mxu0
        %v5477 = vadd.f32 %v5404, %v5476
        %v5478 = vpop.f32.mrb[0].mxu0
        %5479 = vdwg.mxu0
        %v5480 = vmax.f32 %v5477, 0.0
        %v5481 = vld [vmem:[#allocation10] sm:$0xff]
        %v5482 = vld [vmem:[#allocation10 + $0x8] sm:$0xff]
        %v5483 = vld [vmem:[#allocation10 + $0x10] sm:$0xff]
        %v5484 = vld [vmem:[#allocation10 + $0x18] sm:$0xff]
        %v5485 = vld [vmem:[#allocation10 + $0x20] sm:$0xff]
        %v5486 = vld [vmem:[#allocation10 + $0x28] sm:$0xff]
        %v5487 = vld [vmem:[#allocation10 + $0x30] sm:$0xff]
        %v5488 = vld [vmem:[#allocation10 + $0x38] sm:$0xff]
        %v5489 = vld [vmem:[#allocation10 + $0x40] sm:$0xff]
        %v5490 = vld [vmem:[#allocation10 + $0x48] sm:$0xff]
        %v5491 = vld [vmem:[#allocation10 + $0x50] sm:$0xf]
        %v5492 = vld [vmem:[%s13] sm:$0x1]
        %v5494 = vlaneseq
        %v5495 = vshrl.u32 %v5494, 7
        %v5496 = vsub.s32 0, %v5495
        %v5497 = vrot.slane %v5492, %v5496
        %vm5499 = vcmask 687104
        %v5501 = vsel %vm5499, %v5480, 0
        %v5504 = vsel %vm2660, %v5491, 0
        %5506 = vmatprep.subr.mxu0 0.0
        %5507 = vmatpush1.msra.mxu0 %v5481
        %5508 = vmatprep.subr.mxu0 0.0
        %5509 = vmatpush1.msra.mxu0 %v5482
        %5510 = vmatprep.subr.mxu0 0.0
        %5511 = vmatpush1.msra.mxu0 %v5483
        %5512 = vmatprep.subr.mxu0 0.0
        %5513 = vmatpush1.msra.mxu0 %v5484
        %5514 = vmatprep.subr.mxu0 0.0
        %5515 = vmatpush1.msra.mxu0 %v5485
        %5516 = vmatprep.subr.mxu0 0.0
        %5517 = vmatpush1.msra.mxu0 %v5486
        %5518 = vmatprep.subr.mxu0 0.0
        %5519 = vmatpush1.msra.mxu0 %v5487
        %5520 = vmatprep.subr.mxu0 0.0
        %5521 = vmatpush1.msra.mxu0 %v5488
        %5522 = vmatprep.subr.mxu0 0.0
        %5523 = vmatpush1.msra.mxu0 %v5489
        %5524 = vmatprep.subr.mxu0 0.0
        %5525 = vmatpush1.msra.mxu0 %v5490
        %5526 = vmatprep.subr.mxu0 0.0
        %5527 = vmatpush1.msra.mxu0 %v5504
        %5528 = vmatprep.subr.mxu0 0.0
        %5529 = vmatpush1.msra.mxu0 0.0
        %5530 = vmatprep.subr.mxu0 0.0
        %5531 = vmatpush1.msra.mxu0 0.0
        %5532 = vmatprep.subr.mxu0 0.0
        %5533 = vmatpush1.msra.mxu0 0.0
        %5534 = vmatprep.subr.mxu0 0.0
        %5535 = vmatpush1.msra.mxu0 0.0
        %5536 = vmatprep.subr.mxu0 0.0
        %5537 = vmatpush1.msra.mxu0 0.0
        %5538 = vmatprep.subr.mxu0 0.0
        %5539 = vmatpush1.msra.mxu0 0.0
        %5540 = vmatprep.subr.mxu0 0.0
        %5541 = vmatpush1.msra.mxu0 0.0
        %5542 = vmatprep.subr.mxu0 0.0
        %5543 = vmatpush1.msra.mxu0 0.0
        %5544 = vmatprep.subr.mxu0 0.0
        %5545 = vmatpush1.msra.mxu0 0.0
        %5546 = vmatprep.subr.mxu0 0.0
        %5547 = vmatpush1.msra.mxu0 0.0
        %5548 = vmatprep.subr.mxu0 0.0
        %5549 = vmatpush1.msra.mxu0 0.0
        %5550 = vmatprep.subr.mxu0 0.0
        %5551 = vmatpush1.msra.mxu0 0.0
        %5552 = vmatprep.subr.mxu0 0.0
        %5553 = vmatpush1.msra.mxu0 0.0
        %5554 = vmatprep.subr.mxu0 0.0
        %5555 = vmatpush1.msra.mxu0 0.0
        %5556 = vmatprep.subr.mxu0 0.0
        %5557 = vmatpush1.msra.mxu0 0.0
        %5558 = vmatprep.subr.mxu0 0.0
        %5559 = vmatpush1.msra.mxu0 0.0
        %5560 = vmatprep.subr.mxu0 0.0
        %5561 = vmatpush1.msra.mxu0 0.0
        %5562 = vmatprep.subr.mxu0 0.0
        %5563 = vmatpush1.msra.mxu0 0.0
        %5564 = vmatprep.subr.mxu0 0.0
        %5565 = vmatpush1.msra.mxu0 0.0
        %5566 = vmatprep.subr.mxu0 0.0
        %5567 = vmatpush1.msra.mxu0 0.0
        %5568 = vmatprep.subr.mxu0 0.0
        %5569 = vmatpush1.msra.mxu0 0.0
        %5570 = vmatprep.mubr.f32.mxu0 0.0
        %5571 = vmatmul.mubr.f32.gmra.mrb[0].mxu0 %v5501
        %v5572 = vpop.f32.mrb[0].mxu0
        %v5573 = vadd.f32 %v5497, %v5572
        %v5574 = vpop.f32.mrb[0].mxu0
        %5575 = vdwg.mxu0
        %5576 = vst [vmem:[%s543] sm:$0xff] %v5573
        %s5577 = sand.u32 %s340, 1
        %s5578 = scalar_lea.sflag [#allocation4], %s5577
        %s5579 = sand.u32 %s340, 1
        %s5580 = smul.addr %s5579, 8
        %s5581 = scalar_lea.vmem [#allocation11], %s5580
        // Predicated region
        $region97: #{lenet_forward.1} parent=75 // pred_check
          %p5582 = pneg %p350
        $region98: #{lenet_forward.1} parent=75 // pred_check_branch
          %5584 = sbr.rel (%p5582) target = $region100
        $region99: #{lenet_forward.1} parent=75 // pred_region
          %s5586 = ssub.s32 128, 128
          %5587 = vsyncadd %s5578, %s5586
          %s5588 = smul.addr %s33, 128
          %s5589 = scalar_lea.hbm %s14, %s5588
          %s5591 = sshll.u32 %s5581, 4
          %s5592 = int_to_ptr.vmem [resolvable:$true] %s5591
          %5594 = dma.vmem_to_hbm [thread:$0]  %s5592, 128, %s5589, %s5578
        $region100: #{lenet_forward.1} parent=75 // pred_fallthru
          _
      $region76: #{lenet_forward.1} parent=5 // pred_fallthru
        _
      %p5595 = scmp.le.s32.totalorder 2, %s28
      // Predicated region
      $region101: #{lenet_forward.1} parent=5 // pred_check
        %p5596 = pneg %p5595
      $region102: #{lenet_forward.1} parent=5 // pred_check_branch
        %5598 = sbr.rel (%p5596) target = $region104
      $region103: #{lenet_forward.1} parent=5 // pred_region
        %s5599 = ssub.s32 %s28, 2
        // Predicated region
        $region105: #{lenet_forward.1} parent=103 // pred_check
          %p5600 = pneg %p356
        $region106: #{lenet_forward.1} parent=103 // pred_check_branch
          %5602 = sbr.rel (%p5600) target = $region108
        $region107: #{lenet_forward.1} parent=103 // pred_region
          %s5603 = sand.u32 %s341, 1
          %s5604 = scalar_lea.sflag [#allocation4], %s5603
          %s5605 = sand.u32 %s341, 1
          %s5606 = smul.addr %s5605, 8
          %s5607 = scalar_lea.vmem [#allocation11], %s5606
          %5608 = dma.done %s5604, 128
        $region108: #{lenet_forward.1} parent=103 // pred_fallthru
          _
      $region104: #{lenet_forward.1} parent=5 // pred_fallthru
        _
    $region6: #{lenet_forward.1} parent=1 // loop_footer
      %s32 = sadd.s32 1, %s28
    $region7: #{lenet_forward.1} parent=1 // loop_footer_branch
      %27 = sbr.rel target = $region3
    $region8: #{lenet_forward.1} parent=1 // loop_exit
      _
    %5609 = vsyncpa [#allocation3], 1
    %s5610 = scalar_lea.sflag [#allocation3], 1
    %5611 = vsyncpa %s5610, 1
    %5612 = vsyncpa [#allocation6], 1
    %5613 = vsyncpa [#allocation9], 1
    %5614 = vsyncpa [#allocation4], 1
    %s5615 = scalar_lea.sflag [#allocation4], 1
    %5616 = vsyncpa %s5615, 1

</llo_original>
